<compile_context>
chip_gen: v7x
topology: tpu7x:2x2x1
jax: 0.10.0
libtpu: 0.0.40
codegen_flags: <defaults>
</compile_context>

<pallas_src>
import jax
import jax.numpy as jnp
from jax.experimental import pallas as pl
from jax.experimental.pallas import tpu as pltpu


# -----------------------------------------------------------------------------
# GELU: erf via Abramowitz-Stegun 7.1.26 (|err| <= 1.5e-7); the divide runs on the
# EUP via pl.reciprocal(approx=True) so it stays off the VALU.
# -----------------------------------------------------------------------------
def _erf_kernel(x):
    a1, a2, a3, a4, a5 = 0.254829592, -0.284496736, 1.421413741, -1.453152027, 1.061405429
    pp = 0.3275911
    ax = jnp.abs(x)
    t = pl.reciprocal(1.0 + pp * ax, approx=True)
    poly = ((((a5 * t + a4) * t + a3) * t + a2) * t + a1) * t
    y = 1.0 - poly * jnp.exp(-ax * ax)
    return jnp.where(x >= 0, y, -y)


def _gelu_kernel(x):
    return 0.5 * x * (1.0 + _erf_kernel(x * 0.7071067811865476))


def _round_up(n, m):
    return ((n + m - 1) // m) * m


def _vmem_bytes(shape, dtype):
    """Lane/sublane-padded VMEM footprint of one buffer (last dim -> 128 lanes,
    second-to-last -> dtype sublane multiple)."""
    it = jnp.dtype(dtype).itemsize
    sub = max(8, 32 // it)                       # f32: 8, bf16: 16, int8: 32
    if len(shape) == 0:
        return 4 * 128
    if len(shape) == 1:
        return _round_up(shape[0], 128) * it
    lead = 1
    for d in shape[:-2]:
        lead *= d
    return lead * _round_up(shape[-2], sub) * _round_up(shape[-1], 128) * it


def _pick_row_tile(S, vmem_cap):
    """Bigger row tiles on 128 MiB chips (v5e/v6e), smaller on v7x's 64 MiB."""
    target = 32 if vmem_cap >= 96 * 2 ** 20 else 16
    best = 1
    for d in range(1, min(S, target) + 1):
        if S % d == 0:
            best = d
    return best


# -----------------------------------------------------------------------------
# Pallas forward
# -----------------------------------------------------------------------------
def features_to_2d(x, dist_mat, params, *, kernel_size=5, eps=1e-5, row_tile=None):
    """x: (B, 2*in_c, S) 1D features, dist_mat: (1, S, S).  Returns (B, Cout, S, S)."""
    B, C2, S = x.shape
    in_c = C2 // 2
    Cin = in_c + 4
    w = params["cw"]                              # (Cout, Cin, K, K)
    Cout, Cin_w, K, K2 = w.shape
    assert K == kernel_size and K2 == kernel_size and Cin_w == Cin
    p = K // 2
    G = Cin // 8
    assert G >= 1 and Cin % G == 0
    gs = Cin // G
    f32 = jnp.float32

    # hardware query (with fallback) for tile-size / VMEM-limit choices
    try:
        cap = int(getattr(pltpu.get_tpu_info(), "vmem_capacity_bytes", 64 * 2 ** 20))
    except Exception:
        cap = 64 * 2 ** 20

    TR = row_tile if row_tile is not None else _pick_row_tile(S, cap)
    assert S % TR == 0, f"row_tile={TR} must divide S={S}"
    ntiles = S // TR

    Sp = S + 2 * p                    # padded image height / width (logical)
    Wp = _round_up(S + 2 * p, 8)      # padded row pitch, sublane aligned
    nrows = TR + 2 * p                # padded image rows built per tile
    NT = nrows * Wp + 8               # scratch rows (+8 zero rows for the kj tap overrun)
    Mt = TR * Wp                      # wide-output rows per tile

    # ---- wrapper-side prep: layout plumbing + analytic GroupNorm scale/shift --------
    x_nlc = jnp.transpose(x, (0, 2, 1))                       # (B, S, 2*in_c)
    h1 = x_nlc[:, :, :in_c]
    h2 = x_nlc[:, :, in_c:]
    h1pad = jnp.pad(h1, ((0, 0), (p, p), (0, 0)))             # (B, Sp, in_c) row-padded
    h2pad = jnp.pad(h2, ((0, 0), (p, Wp - S - p), (0, 0)))    # (B, Wp, in_c) col-padded

    dist = dist_mat.reshape(S, S).astype(f32)
    distpad = jnp.pad(dist, ((p, p), (p, Wp - S - p)))        # (Sp, Wp) lane-dense

    # GroupNorm statistics (stable):
    #   two_d channel c:  mean = m1_c + m2_c, var = var1_c + var2_c (outer-sum identity)
    #   feature channels: direct mean/var of the (S,S) maps
    #   group var = mean_c(var_c) + mean_c((mu_c - mu_g)^2)
    h1f = h1.astype(f32)
    h2f = h2.astype(f32)
    m1, v1 = jnp.mean(h1f, axis=1), jnp.var(h1f, axis=1)      # (B, in_c)
    m2, v2 = jnp.mean(h2f, axis=1), jnp.var(h2f, axis=1)
    ii = jax.lax.broadcasted_iota(jnp.int32, (S, S), 0)
    jj = jax.lax.broadcasted_iota(jnp.int32, (S, S), 1)
    tri = jnp.where(jj > ii, 1.0, -1.0).astype(f32)
    fmaps = jnp.stack([tri, dist, dist * dist, dist * tri], axis=0)        # (4, S, S)
    mf = jnp.mean(fmaps, axis=(1, 2))
    vf = jnp.var(fmaps, axis=(1, 2))
    mu_c = jnp.concatenate([m1 + m2, jnp.broadcast_to(mf, (B, 4))], axis=1)   # (B, Cin)
    var_c = jnp.concatenate([v1 + v2, jnp.broadcast_to(vf, (B, 4))], axis=1)  # (B, Cin)
    mu_cg = mu_c.reshape(B, G, gs)
    mu_g = jnp.mean(mu_cg, axis=2, keepdims=True)                             # (B, G, 1)
    var_g = jnp.mean(var_c.reshape(B, G, gs) + (mu_cg - mu_g) ** 2, axis=2, keepdims=True)
    inv_g = jax.lax.rsqrt(var_g + eps)
    gamma = params["gn_g"].astype(f32).reshape(1, G, gs)
    beta = params["gn_b"].astype(f32).reshape(1, G, gs)
    scale = (gamma * inv_g).reshape(B, 1, Cin)                                # (B, 1, Cin)
    shift = (beta - mu_g * gamma * inv_g).reshape(B, 1, Cin)

    # fused conv weights for the kj-im2col: wf[ki, kj*Cin + c, o] = w[o, c, ki, kj]; bf16 MXU
    wf = jnp.transpose(w, (2, 3, 1, 0)).reshape(K, K * Cin, Cout).astype(jnp.bfloat16)
    cb = params["cb"].reshape(1, Cout).astype(f32)

    def kernel(h1_ref, h2_ref, dist_ref, scale_ref, shift_ref, wf_ref, cb_ref,
               o_ref, xpad_ref):
        t = pl.program_id(1)
        r0 = t * TR
        if TR % 8 == 0:
            r0 = pl.multiple_of(r0, 8)

        # ---- build the TR+2p padded activation rows this tile needs (one pass) -------
        h1v = h1_ref[pl.ds(r0, nrows), :].astype(f32)          # (nrows, in_c)
        h2v = h2_ref[...].astype(f32)                          # (Wp, in_c)
        dv = dist_ref[pl.ds(r0, nrows), :]                     # (nrows, Wp) f32

        two_d = h1v[:, None, :] + h2v[None, :, :]              # (nrows, Wp, in_c)
        ip2 = jax.lax.broadcasted_iota(jnp.int32, (nrows, Wp), 0) + r0   # padded row index
        jp2 = jax.lax.broadcasted_iota(jnp.int32, (nrows, Wp), 1)        # padded col index
        tri2 = jnp.where(jp2 > ip2, 1.0, -1.0).astype(f32)
        msk2 = jnp.where((ip2 >= p) & (ip2 < p + S) & (jp2 >= p) & (jp2 < p + S),
                         1.0, 0.0).astype(f32)                 # conv zero-padding mask
        tri3 = tri2[:, :, None]                                # (nrows, Wp, 1)
        dv3 = dv[:, :, None]
        msk3 = msk2[:, :, None]

        # channel order matches torch.cat((two_d, triu, dist, dist**2, dist*triu))
        raw = jnp.concatenate([two_d, tri3, dv3, dv3 * dv3, dv3 * tri3], axis=-1)

        act = _gelu_kernel(raw * scale_ref[...] + shift_ref[...])     # GN affine + GELU
        act = act * msk3                                               # bake in zero padding

        xpad_ref[0:nrows * Wp, :] = act.reshape(nrows * Wp, Cin).astype(jnp.bfloat16)
        xpad_ref[nrows * Wp:NT, :] = jnp.zeros((NT - nrows * Wp, Cin), jnp.bfloat16)

        # ---- conv: K MXU matmuls, kj taps concatenated on the fly in bf16 ------------
        acc = jnp.zeros((Mt, Cout), f32)
        for ki in range(K):
            off = ki * Wp                                       # static, 8-aligned
            xs = jnp.concatenate(
                [xpad_ref[off + kj:off + kj + Mt, :] for kj in range(K)], axis=1)
            acc = acc + jnp.dot(xs, wf_ref[ki], preferred_element_type=f32)
        o_ref[...] = (acc + cb_ref[...]).astype(o_ref.dtype)

    # ---- VMEM budget: lane/sublane-padded estimate, clamped to the chip capacity ----
    xdt = x.dtype
    bf16 = jnp.bfloat16
    blocks = (_vmem_bytes((Sp, in_c), xdt) + _vmem_bytes((Wp, in_c), xdt)
              + _vmem_bytes((Sp, Wp), f32) + 2 * _vmem_bytes((1, 1, Cin), f32)
              + _vmem_bytes((K, K * Cin, Cout), bf16) + _vmem_bytes((1, Cout), f32)
              + _vmem_bytes((Mt, Cout), f32))
    temps = (8 * _vmem_bytes((nrows * Wp, Cin), f32)            # elementwise build chain
             + 2 * _vmem_bytes((Mt, K * Cin), bf16)             # per-ki tap concat
             + 2 * _vmem_bytes((Mt, Cout), f32))                # conv accumulator
    est = 2 * blocks + _vmem_bytes((NT, Cin), bf16) + temps
    vmem_limit = int(min(int(0.9 * cap), max(24 * 2 ** 20, int(1.3 * est))))

    out_wide = pl.pallas_call(
        kernel,
        out_shape=jax.ShapeDtypeStruct((B, S * Wp, Cout), f32),
        grid=(B, ntiles),
        in_specs=[
            pl.BlockSpec((None, Sp, in_c), lambda b, t: (b, 0, 0)),      # h1 (row-padded)
            pl.BlockSpec((None, Wp, in_c), lambda b, t: (b, 0, 0)),      # h2 (col-padded)
            pl.BlockSpec((Sp, Wp), lambda b, t: (0, 0)),                 # dist (lane-dense)
            pl.BlockSpec((1, 1, Cin), lambda b, t: (b, 0, 0)),           # GN scale (per batch)
            pl.BlockSpec((1, 1, Cin), lambda b, t: (b, 0, 0)),           # GN shift
            pl.BlockSpec((K, K * Cin, Cout), lambda b, t: (0, 0, 0)),    # fused conv weights
            pl.BlockSpec((1, Cout), lambda b, t: (0, 0)),                # conv bias
        ],
        out_specs=pl.BlockSpec((None, Mt, Cout), lambda b, t: (b, t, 0)),
        scratch_shapes=[pltpu.VMEM((NT, Cin), jnp.bfloat16)],            # bf16 padded rows
        compiler_params=pltpu.CompilerParams(
            dimension_semantics=("parallel", "parallel"),
            vmem_limit_bytes=vmem_limit,
        ),
    )(h1pad, h2pad, distpad, scale, shift, wf, cb)

    out = out_wide.reshape(B, S, Wp, Cout)[:, :, :S, :]    # drop wide-output slack columns
    return jnp.transpose(out, (0, 3, 1, 2))                # NCHW


# -----------------------------------------------------------------------------
# Pure-JAX f32 reference (matches the PyTorch module)
# -----------------------------------------------------------------------------
def _ref_group_norm(x, G, gamma, beta, eps=1e-5):
    B, C = x.shape[0], x.shape[1]
    xg = x.reshape(B, G, -1)
    mu = jnp.mean(xg, axis=-1, keepdims=True)
    var = jnp.mean((xg - mu) ** 2, axis=-1, keepdims=True)
    xn = ((xg - mu) / jnp.sqrt(var + eps)).reshape(x.shape)
    return xn * gamma.reshape(1, C, 1, 1) + beta.reshape(1, C, 1, 1)


def ref_forward(x, dist_mat, params, *, kernel_size=5, eps=1e-5):
    B, C2, S = x.shape
    in_c = C2 // 2
    half1 = x[:, :in_c, :]
    half2 = x[:, in_c:, :]
    two_d = half1[:, :, :, None] + half2[:, :, None, :]          # (B, in_c, S, S)
    dist = jnp.broadcast_to(dist_mat.reshape(1, 1, S, S), (B, 1, S, S)).astype(x.dtype)
    ii = jax.lax.broadcasted_iota(jnp.int32, (S, S), 0)
    jj = jax.lax.broadcasted_iota(jnp.int32, (S, S), 1)
    triu = jnp.where(jj > ii, 1.0, -1.0).astype(x.dtype)
    triu = jnp.broadcast_to(triu.reshape(1, 1, S, S), (B, 1, S, S))
    x2d = jnp.concatenate([two_d, triu, dist, dist * dist, dist * triu], axis=1)
    Cin = x2d.shape[1]
    h = _ref_group_norm(x2d, Cin // 8, params["gn_g"], params["gn_b"], eps)
    h = 0.5 * h * (1.0 + jax.lax.erf(h * 0.7071067811865476))    # exact GELU
    pad = kernel_size // 2
    out = jax.lax.conv_general_dilated(
        h, params["cw"], window_strides=(1, 1),
        padding=[(pad, pad), (pad, pad)],
        dimension_numbers=("NCHW", "OIHW", "NCHW"),
        precision=jax.lax.Precision.HIGHEST)
    return out + params["cb"].reshape(1, -1, 1, 1)


if __name__ == "__main__":
    # Small shapes consistent with the module: x has 2*in_c channels, conv block sees
    # in_c+4 channels (must be divisible by its GroupNorm group count Cin//8).
    B, S = 2, 16
    in_c = 12                     # x channels = 24
    Cin = in_c + 4                # 16
    Cout = 32
    K = 5

    key = jax.random.PRNGKey(0)
    ks = jax.random.split(key, 5)
    x = jax.random.normal(ks[0], (B, 2 * in_c, S), jnp.float32)
    idx = jnp.arange(S, dtype=jnp.float32)
    dist_mat = jnp.log1p(jnp.abs(idx[:, None] - idx[None, :]))[None]   # (1, S, S)

    params = dict(
        gn_g=1.0 + 0.1 * jax.random.normal(ks[1], (Cin,), jnp.float32),
        gn_b=0.1 * jax.random.normal(ks[2], (Cin,), jnp.float32),
        cw=0.05 * jax.random.normal(ks[3], (Cout, Cin, K, K), jnp.float32),
        cb=0.05 * jax.random.normal(ks[4], (Cout,), jnp.float32),
    )

    # row_tile=8 -> two row tiles per batch element, exercising the tiled grid path.
    out = features_to_2d(x, dist_mat, params, kernel_size=K, row_tile=8)
    out = jax.block_until_ready(out)

    ref = ref_forward(x, dist_mat, params, kernel_size=K)
    assert out.shape == ref.shape == (B, Cout, S, S), (out.shape, ref.shape)
    max_err = float(jnp.max(jnp.abs(out - ref)))
    # kernel uses bf16 MXU operands + approx-erf GELU vs f32 exact reference
    assert max_err < 5e-2, f"max abs error {max_err}"
    print("KERNEL_OK")
</pallas_src>

<mosaic_0001>
module attributes {stable_mosaic.version = 11 : i64} {
  func.func @kernel(%arg0: i32, %arg1: i32, %arg2: memref<1x20x12xf32, #tpu.memory_space<vmem>>, %arg3: memref<1x24x12xf32, #tpu.memory_space<vmem>>, %arg4: memref<20x24xf32, #tpu.memory_space<vmem>>, %arg5: memref<1x1x16xf32, #tpu.memory_space<vmem>>, %arg6: memref<1x1x16xf32, #tpu.memory_space<vmem>>, %arg7: memref<5x80x32xbf16, #tpu.memory_space<vmem>>, %arg8: memref<1x32xf32, #tpu.memory_space<vmem>>, %arg9: memref<1x192x32xf32, #tpu.memory_space<vmem>>, %arg10: memref<296x16xbf16, #tpu.memory_space<vmem>>) attributes {dimension_semantics = [#tpu.dimension_semantics<parallel>, #tpu.dimension_semantics<parallel>], iteration_bounds = array<i64: 2, 2>, scalar_prefetch = 0 : i64, scratch_operands = 1 : i64, tpu.core_type = #tpu.core_type<tc>, window_params = [{transform_indices = @transform_0, window_bounds = array<i64: 1, 20, 12>}, {transform_indices = @transform_1, window_bounds = array<i64: 1, 24, 12>}, {pipeline_mode = #tpu.pipeline_mode<synchronous>, transform_indices = @transform_2, window_bounds = array<i64: 20, 24>}, {transform_indices = @transform_3, window_bounds = array<i64: 1, 1, 16>}, {transform_indices = @transform_4, window_bounds = array<i64: 1, 1, 16>}, {pipeline_mode = #tpu.pipeline_mode<synchronous>, transform_indices = @transform_5, window_bounds = array<i64: 5, 80, 32>}, {pipeline_mode = #tpu.pipeline_mode<synchronous>, transform_indices = @transform_6, window_bounds = array<i64: 1, 32>}, {transform_indices = @transform_7, window_bounds = array<i64: 1, 192, 32>}]} {
    %c8_i32 = arith.constant 8 : i32
    %0 = arith.muli %arg1, %c8_i32 : i32
    %1 = tpu.assume_multiple %0, 8 : i32
    %c0 = arith.constant 0 : index
    %2 = arith.index_cast %1 : i32 to index
    %c0_0 = arith.constant 0 : index
    %3 = vector.load %arg2[%c0, %2, %c0_0] : memref<1x20x12xf32, #tpu.memory_space<vmem>>, vector<1x12x12xf32>
    %4 = vector.shape_cast %3 : vector<1x12x12xf32> to vector<12x12xf32>
    %c0_1 = arith.constant 0 : index
    %c0_2 = arith.constant 0 : index
    %c0_3 = arith.constant 0 : index
    %5 = vector.load %arg3[%c0_1, %c0_2, %c0_3] : memref<1x24x12xf32, #tpu.memory_space<vmem>>, vector<1x24x12xf32>
    %6 = vector.shape_cast %5 : vector<1x24x12xf32> to vector<24x12xf32>
    %7 = arith.index_cast %1 : i32 to index
    %c0_4 = arith.constant 0 : index
    %8 = vector.load %arg4[%7, %c0_4] : memref<20x24xf32, #tpu.memory_space<vmem>>, vector<12x24xf32>
    %9 = vector.shape_cast %4 : vector<12x12xf32> to vector<12x1x12xf32>
    %10 = vector.shape_cast %6 : vector<24x12xf32> to vector<1x24x12xf32>
    %11 = vector.broadcast %9 : vector<12x1x12xf32> to vector<12x24x12xf32>
    %12 = vector.broadcast %10 : vector<1x24x12xf32> to vector<12x24x12xf32>
    %13 = arith.addf %11, %12 : vector<12x24x12xf32>
    %14 = tpu.iota {dimensions = array<i32: 0>} : vector<12x24xi32>
    %15 = vector.broadcast %1 : i32 to vector<12x24xi32>
    %16 = arith.addi %14, %15 : vector<12x24xi32>
    %17 = tpu.iota {dimensions = array<i32: 1>} : vector<12x24xi32>
    %18 = arith.cmpi sgt, %17, %16 : vector<12x24xi32>
    %cst = arith.constant 1.000000e+00 : f32
    %cst_5 = arith.constant -1.000000e+00 : f32
    %19 = vector.broadcast %cst : f32 to vector<12x24xf32>
    %20 = vector.broadcast %cst_5 : f32 to vector<12x24xf32>
    %21 = arith.select %18, %19, %20 : vector<12x24xi1>, vector<12x24xf32>
    %c2_i32 = arith.constant 2 : i32
    %22 = vector.broadcast %c2_i32 : i32 to vector<12x24xi32>
    %23 = arith.cmpi sge, %16, %22 : vector<12x24xi32>
    %c18_i32 = arith.constant 18 : i32
    %24 = vector.broadcast %c18_i32 : i32 to vector<12x24xi32>
    %25 = arith.cmpi slt, %16, %24 : vector<12x24xi32>
    %26 = arith.andi %23, %25 : vector<12x24xi1>
    %c2_i32_6 = arith.constant 2 : i32
    %27 = vector.broadcast %c2_i32_6 : i32 to vector<12x24xi32>
    %28 = arith.cmpi sge, %17, %27 : vector<12x24xi32>
    %29 = arith.andi %26, %28 : vector<12x24xi1>
    %c18_i32_7 = arith.constant 18 : i32
    %30 = vector.broadcast %c18_i32_7 : i32 to vector<12x24xi32>
    %31 = arith.cmpi slt, %17, %30 : vector<12x24xi32>
    %32 = arith.andi %29, %31 : vector<12x24xi1>
    %cst_8 = arith.constant 1.000000e+00 : f32
    %cst_9 = arith.constant 0.000000e+00 : f32
    %33 = vector.broadcast %cst_8 : f32 to vector<12x24xf32>
    %34 = vector.broadcast %cst_9 : f32 to vector<12x24xf32>
    %35 = arith.select %32, %33, %34 : vector<12x24xi1>, vector<12x24xf32>
    %36 = vector.shape_cast %21 : vector<12x24xf32> to vector<12x24x1xf32>
    %37 = vector.shape_cast %8 : vector<12x24xf32> to vector<12x24x1xf32>
    %38 = vector.shape_cast %35 : vector<12x24xf32> to vector<12x24x1xf32>
    %39 = arith.mulf %37, %37 : vector<12x24x1xf32>
    %40 = arith.mulf %37, %36 : vector<12x24x1xf32>
    %41 = tpu.concatenate %13, %36, %37, %39, %40 in 2 : vector<12x24x12xf32>, vector<12x24x1xf32>, vector<12x24x1xf32>, vector<12x24x1xf32>, vector<12x24x1xf32> -> vector<12x24x16xf32>
    %c0_10 = arith.constant 0 : index
    %c0_11 = arith.constant 0 : index
    %c0_12 = arith.constant 0 : index
    %42 = vector.load %arg5[%c0_10, %c0_11, %c0_12] : memref<1x1x16xf32, #tpu.memory_space<vmem>>, vector<1x1x16xf32>
    %43 = vector.broadcast %42 : vector<1x1x16xf32> to vector<12x24x16xf32>
    %44 = arith.mulf %41, %43 : vector<12x24x16xf32>
    %c0_13 = arith.constant 0 : index
    %c0_14 = arith.constant 0 : index
    %c0_15 = arith.constant 0 : index
    %45 = vector.load %arg6[%c0_13, %c0_14, %c0_15] : memref<1x1x16xf32, #tpu.memory_space<vmem>>, vector<1x1x16xf32>
    %46 = vector.broadcast %45 : vector<1x1x16xf32> to vector<12x24x16xf32>
    %47 = arith.addf %44, %46 : vector<12x24x16xf32>
    %cst_16 = arith.constant 5.000000e-01 : f32
    %48 = vector.broadcast %cst_16 : f32 to vector<12x24x16xf32>
    %49 = arith.mulf %48, %47 : vector<12x24x16xf32>
    %cst_17 = arith.constant 0.707106769 : f32
    %50 = vector.broadcast %cst_17 : f32 to vector<12x24x16xf32>
    %51 = arith.mulf %47, %50 : vector<12x24x16xf32>
    %52 = math.absf %51 : vector<12x24x16xf32>
    %cst_18 = arith.constant 0.327591091 : f32
    %53 = vector.broadcast %cst_18 : f32 to vector<12x24x16xf32>
    %54 = arith.mulf %53, %52 : vector<12x24x16xf32>
    %cst_19 = arith.constant 1.000000e+00 : f32
    %55 = vector.broadcast %cst_19 : f32 to vector<12x24x16xf32>
    %56 = arith.addf %55, %54 : vector<12x24x16xf32>
    %57 = tpu.reciprocal %56 {approx = true} : vector<12x24x16xf32> -> vector<12x24x16xf32>
    %cst_20 = arith.constant 1.06140542 : f32
    %58 = vector.broadcast %cst_20 : f32 to vector<12x24x16xf32>
    %59 = arith.mulf %58, %57 : vector<12x24x16xf32>
    %cst_21 = arith.constant -1.45315206 : f32
    %60 = vector.broadcast %cst_21 : f32 to vector<12x24x16xf32>
    %61 = arith.addf %59, %60 : vector<12x24x16xf32>
    %62 = arith.mulf %61, %57 : vector<12x24x16xf32>
    %cst_22 = arith.constant 1.42141378 : f32
    %63 = vector.broadcast %cst_22 : f32 to vector<12x24x16xf32>
    %64 = arith.addf %62, %63 : vector<12x24x16xf32>
    %65 = arith.mulf %64, %57 : vector<12x24x16xf32>
    %cst_23 = arith.constant -0.284496725 : f32
    %66 = vector.broadcast %cst_23 : f32 to vector<12x24x16xf32>
    %67 = arith.addf %65, %66 : vector<12x24x16xf32>
    %68 = arith.mulf %67, %57 : vector<12x24x16xf32>
    %cst_24 = arith.constant 0.254829586 : f32
    %69 = vector.broadcast %cst_24 : f32 to vector<12x24x16xf32>
    %70 = arith.addf %68, %69 : vector<12x24x16xf32>
    %71 = arith.mulf %70, %57 : vector<12x24x16xf32>
    %cst_25 = arith.constant 0.000000e+00 : f32
    %72 = vector.broadcast %cst_25 : f32 to vector<12x24x16xf32>
    %73 = arith.subf %72, %52 : vector<12x24x16xf32>
    %74 = arith.mulf %73, %52 : vector<12x24x16xf32>
    %75 = math.exp %74 : vector<12x24x16xf32>
    %76 = arith.mulf %71, %75 : vector<12x24x16xf32>
    %cst_26 = arith.constant 1.000000e+00 : f32
    %77 = vector.broadcast %cst_26 : f32 to vector<12x24x16xf32>
    %78 = arith.subf %77, %76 : vector<12x24x16xf32>
    %cst_27 = arith.constant 0.000000e+00 : f32
    %79 = vector.broadcast %cst_27 : f32 to vector<12x24x16xf32>
    %80 = arith.cmpf oge, %51, %79 : vector<12x24x16xf32>
    %cst_28 = arith.constant 0.000000e+00 : f32
    %81 = vector.broadcast %cst_28 : f32 to vector<12x24x16xf32>
    %82 = arith.subf %81, %78 : vector<12x24x16xf32>
    %83 = arith.select %80, %78, %82 : vector<12x24x16xi1>, vector<12x24x16xf32>
    %cst_29 = arith.constant 1.000000e+00 : f32
    %84 = vector.broadcast %cst_29 : f32 to vector<12x24x16xf32>
    %85 = arith.addf %84, %83 : vector<12x24x16xf32>
    %86 = arith.mulf %49, %85 : vector<12x24x16xf32>
    %87 = vector.broadcast %38 : vector<12x24x1xf32> to vector<12x24x16xf32>
    %88 = arith.mulf %86, %87 : vector<12x24x16xf32>
    %89 = vector.shape_cast %88 : vector<12x24x16xf32> to vector<288x16xf32>
    %90 = arith.truncf %89 : vector<288x16xf32> to vector<288x16xbf16>
    %c0_30 = arith.constant 0 : index
    %c0_31 = arith.constant 0 : index
    %91 = vector.load %arg10[%c0_30, %c0_31] : memref<296x16xbf16, #tpu.memory_space<vmem>>, vector<288x16xbf16>
    tpu.vector_store %arg10[%c0_30, %c0_31], %90 {strides = array<i32>} : memref<296x16xbf16, #tpu.memory_space<vmem>>, vector<288x16xbf16>,
    %cst_32 = arith.constant 0.000000e+00 : bf16
    %92 = vector.broadcast %cst_32 : bf16 to vector<8x16xbf16>
    %c288 = arith.constant 288 : index
    %c0_33 = arith.constant 0 : index
    %93 = vector.load %arg10[%c288, %c0_33] : memref<296x16xbf16, #tpu.memory_space<vmem>>, vector<8x16xbf16>
    tpu.vector_store %arg10[%c288, %c0_33], %92 {strides = array<i32>} : memref<296x16xbf16, #tpu.memory_space<vmem>>, vector<8x16xbf16>,
    %cst_34 = arith.constant 0.000000e+00 : f32
    %94 = vector.broadcast %cst_34 : f32 to vector<192x32xf32>
    %c0_35 = arith.constant 0 : index
    %c0_36 = arith.constant 0 : index
    %95 = vector.load %arg10[%c0_35, %c0_36] : memref<296x16xbf16, #tpu.memory_space<vmem>>, vector<192x16xbf16>
    %c1 = arith.constant 1 : index
    %c0_37 = arith.constant 0 : index
    %96 = vector.load %arg10[%c1, %c0_37] : memref<296x16xbf16, #tpu.memory_space<vmem>>, vector<192x16xbf16>
    %c2 = arith.constant 2 : index
    %c0_38 = arith.constant 0 : index
    %97 = vector.load %arg10[%c2, %c0_38] : memref<296x16xbf16, #tpu.memory_space<vmem>>, vector<192x16xbf16>
    %c3 = arith.constant 3 : index
    %c0_39 = arith.constant 0 : index
    %98 = vector.load %arg10[%c3, %c0_39] : memref<296x16xbf16, #tpu.memory_space<vmem>>, vector<192x16xbf16>
    %c4 = arith.constant 4 : index
    %c0_40 = arith.constant 0 : index
    %99 = vector.load %arg10[%c4, %c0_40] : memref<296x16xbf16, #tpu.memory_space<vmem>>, vector<192x16xbf16>
    %100 = tpu.concatenate %95, %96, %97, %98, %99 in 1 : vector<192x16xbf16>, vector<192x16xbf16>, vector<192x16xbf16>, vector<192x16xbf16>, vector<192x16xbf16> -> vector<192x80xbf16>
    %c0_41 = arith.constant 0 : index
    %c0_42 = arith.constant 0 : index
    %c0_43 = arith.constant 0 : index
    %101 = vector.load %arg7[%c0_41, %c0_42, %c0_43] : memref<5x80x32xbf16, #tpu.memory_space<vmem>>, vector<1x80x32xbf16>
    %102 = vector.shape_cast %101 : vector<1x80x32xbf16> to vector<80x32xbf16>
    %cst_44 = arith.constant dense<0.000000e+00> : vector<192x32xf32>
    %103 = tpu.matmul %100, %102, %cst_44 {dimension_numbers = #tpu.dot_dimension_numbers<[1], [0], [0], [1], [0, 0, 1, 1], [], []>} : vector<192x80xbf16>, vector<80x32xbf16>, vector<192x32xf32> -> vector<192x32xf32>
    %104 = arith.addf %94, %103 : vector<192x32xf32>
    %c24 = arith.constant 24 : index
    %c0_45 = arith.constant 0 : index
    %105 = vector.load %arg10[%c24, %c0_45] : memref<296x16xbf16, #tpu.memory_space<vmem>>, vector<192x16xbf16>
    %c25 = arith.constant 25 : index
    %c0_46 = arith.constant 0 : index
    %106 = vector.load %arg10[%c25, %c0_46] : memref<296x16xbf16, #tpu.memory_space<vmem>>, vector<192x16xbf16>
    %c26 = arith.constant 26 : index
    %c0_47 = arith.constant 0 : index
    %107 = vector.load %arg10[%c26, %c0_47] : memref<296x16xbf16, #tpu.memory_space<vmem>>, vector<192x16xbf16>
    %c27 = arith.constant 27 : index
    %c0_48 = arith.constant 0 : index
    %108 = vector.load %arg10[%c27, %c0_48] : memref<296x16xbf16, #tpu.memory_space<vmem>>, vector<192x16xbf16>
    %c28 = arith.constant 28 : index
    %c0_49 = arith.constant 0 : index
    %109 = vector.load %arg10[%c28, %c0_49] : memref<296x16xbf16, #tpu.memory_space<vmem>>, vector<192x16xbf16>
    %110 = tpu.concatenate %105, %106, %107, %108, %109 in 1 : vector<192x16xbf16>, vector<192x16xbf16>, vector<192x16xbf16>, vector<192x16xbf16>, vector<192x16xbf16> -> vector<192x80xbf16>
    %c1_50 = arith.constant 1 : index
    %c0_51 = arith.constant 0 : index
    %c0_52 = arith.constant 0 : index
    %111 = vector.load %arg7[%c1_50, %c0_51, %c0_52] : memref<5x80x32xbf16, #tpu.memory_space<vmem>>, vector<1x80x32xbf16>
    %112 = vector.shape_cast %111 : vector<1x80x32xbf16> to vector<80x32xbf16>
    %cst_53 = arith.constant dense<0.000000e+00> : vector<192x32xf32>
    %113 = tpu.matmul %110, %112, %cst_53 {dimension_numbers = #tpu.dot_dimension_numbers<[1], [0], [0], [1], [0, 0, 1, 1], [], []>} : vector<192x80xbf16>, vector<80x32xbf16>, vector<192x32xf32> -> vector<192x32xf32>
    %114 = arith.addf %104, %113 : vector<192x32xf32>
    %c48 = arith.constant 48 : index
    %c0_54 = arith.constant 0 : index
    %115 = vector.load %arg10[%c48, %c0_54] : memref<296x16xbf16, #tpu.memory_space<vmem>>, vector<192x16xbf16>
    %c49 = arith.constant 49 : index
    %c0_55 = arith.constant 0 : index
    %116 = vector.load %arg10[%c49, %c0_55] : memref<296x16xbf16, #tpu.memory_space<vmem>>, vector<192x16xbf16>
    %c50 = arith.constant 50 : index
    %c0_56 = arith.constant 0 : index
    %117 = vector.load %arg10[%c50, %c0_56] : memref<296x16xbf16, #tpu.memory_space<vmem>>, vector<192x16xbf16>
    %c51 = arith.constant 51 : index
    %c0_57 = arith.constant 0 : index
    %118 = vector.load %arg10[%c51, %c0_57] : memref<296x16xbf16, #tpu.memory_space<vmem>>, vector<192x16xbf16>
    %c52 = arith.constant 52 : index
    %c0_58 = arith.constant 0 : index
    %119 = vector.load %arg10[%c52, %c0_58] : memref<296x16xbf16, #tpu.memory_space<vmem>>, vector<192x16xbf16>
    %120 = tpu.concatenate %115, %116, %117, %118, %119 in 1 : vector<192x16xbf16>, vector<192x16xbf16>, vector<192x16xbf16>, vector<192x16xbf16>, vector<192x16xbf16> -> vector<192x80xbf16>
    %c2_59 = arith.constant 2 : index
    %c0_60 = arith.constant 0 : index
    %c0_61 = arith.constant 0 : index
    %121 = vector.load %arg7[%c2_59, %c0_60, %c0_61] : memref<5x80x32xbf16, #tpu.memory_space<vmem>>, vector<1x80x32xbf16>
    %122 = vector.shape_cast %121 : vector<1x80x32xbf16> to vector<80x32xbf16>
    %cst_62 = arith.constant dense<0.000000e+00> : vector<192x32xf32>
    %123 = tpu.matmul %120, %122, %cst_62 {dimension_numbers = #tpu.dot_dimension_numbers<[1], [0], [0], [1], [0, 0, 1, 1], [], []>} : vector<192x80xbf16>, vector<80x32xbf16>, vector<192x32xf32> -> vector<192x32xf32>
    %124 = arith.addf %114, %123 : vector<192x32xf32>
    %c72 = arith.constant 72 : index
    %c0_63 = arith.constant 0 : index
    %125 = vector.load %arg10[%c72, %c0_63] : memref<296x16xbf16, #tpu.memory_space<vmem>>, vector<192x16xbf16>
    %c73 = arith.constant 73 : index
    %c0_64 = arith.constant 0 : index
    %126 = vector.load %arg10[%c73, %c0_64] : memref<296x16xbf16, #tpu.memory_space<vmem>>, vector<192x16xbf16>
    %c74 = arith.constant 74 : index
    %c0_65 = arith.constant 0 : index
    %127 = vector.load %arg10[%c74, %c0_65] : memref<296x16xbf16, #tpu.memory_space<vmem>>, vector<192x16xbf16>
    %c75 = arith.constant 75 : index
    %c0_66 = arith.constant 0 : index
    %128 = vector.load %arg10[%c75, %c0_66] : memref<296x16xbf16, #tpu.memory_space<vmem>>, vector<192x16xbf16>
    %c76 = arith.constant 76 : index
    %c0_67 = arith.constant 0 : index
    %129 = vector.load %arg10[%c76, %c0_67] : memref<296x16xbf16, #tpu.memory_space<vmem>>, vector<192x16xbf16>
    %130 = tpu.concatenate %125, %126, %127, %128, %129 in 1 : vector<192x16xbf16>, vector<192x16xbf16>, vector<192x16xbf16>, vector<192x16xbf16>, vector<192x16xbf16> -> vector<192x80xbf16>
    %c3_68 = arith.constant 3 : index
    %c0_69 = arith.constant 0 : index
    %c0_70 = arith.constant 0 : index
    %131 = vector.load %arg7[%c3_68, %c0_69, %c0_70] : memref<5x80x32xbf16, #tpu.memory_space<vmem>>, vector<1x80x32xbf16>
    %132 = vector.shape_cast %131 : vector<1x80x32xbf16> to vector<80x32xbf16>
    %cst_71 = arith.constant dense<0.000000e+00> : vector<192x32xf32>
    %133 = tpu.matmul %130, %132, %cst_71 {dimension_numbers = #tpu.dot_dimension_numbers<[1], [0], [0], [1], [0, 0, 1, 1], [], []>} : vector<192x80xbf16>, vector<80x32xbf16>, vector<192x32xf32> -> vector<192x32xf32>
    %134 = arith.addf %124, %133 : vector<192x32xf32>
    %c96 = arith.constant 96 : index
    %c0_72 = arith.constant 0 : index
    %135 = vector.load %arg10[%c96, %c0_72] : memref<296x16xbf16, #tpu.memory_space<vmem>>, vector<192x16xbf16>
    %c97 = arith.constant 97 : index
    %c0_73 = arith.constant 0 : index
    %136 = vector.load %arg10[%c97, %c0_73] : memref<296x16xbf16, #tpu.memory_space<vmem>>, vector<192x16xbf16>
    %c98 = arith.constant 98 : index
    %c0_74 = arith.constant 0 : index
    %137 = vector.load %arg10[%c98, %c0_74] : memref<296x16xbf16, #tpu.memory_space<vmem>>, vector<192x16xbf16>
    %c99 = arith.constant 99 : index
    %c0_75 = arith.constant 0 : index
    %138 = vector.load %arg10[%c99, %c0_75] : memref<296x16xbf16, #tpu.memory_space<vmem>>, vector<192x16xbf16>
    %c100 = arith.constant 100 : index
    %c0_76 = arith.constant 0 : index
    %139 = vector.load %arg10[%c100, %c0_76] : memref<296x16xbf16, #tpu.memory_space<vmem>>, vector<192x16xbf16>
    %140 = tpu.concatenate %135, %136, %137, %138, %139 in 1 : vector<192x16xbf16>, vector<192x16xbf16>, vector<192x16xbf16>, vector<192x16xbf16>, vector<192x16xbf16> -> vector<192x80xbf16>
    %c4_77 = arith.constant 4 : index
    %c0_78 = arith.constant 0 : index
    %c0_79 = arith.constant 0 : index
    %141 = vector.load %arg7[%c4_77, %c0_78, %c0_79] : memref<5x80x32xbf16, #tpu.memory_space<vmem>>, vector<1x80x32xbf16>
    %142 = vector.shape_cast %141 : vector<1x80x32xbf16> to vector<80x32xbf16>
    %cst_80 = arith.constant dense<0.000000e+00> : vector<192x32xf32>
    %143 = tpu.matmul %140, %142, %cst_80 {dimension_numbers = #tpu.dot_dimension_numbers<[1], [0], [0], [1], [0, 0, 1, 1], [], []>} : vector<192x80xbf16>, vector<80x32xbf16>, vector<192x32xf32> -> vector<192x32xf32>
    %144 = arith.addf %134, %143 : vector<192x32xf32>
    %c0_81 = arith.constant 0 : index
    %c0_82 = arith.constant 0 : index
    %145 = vector.load %arg8[%c0_81, %c0_82] : memref<1x32xf32, #tpu.memory_space<vmem>>, vector<1x32xf32>
    %146 = vector.broadcast %145 : vector<1x32xf32> to vector<192x32xf32>
    %147 = arith.addf %144, %146 : vector<192x32xf32>
    %c0_83 = arith.constant 0 : index
    %c0_84 = arith.constant 0 : index
    %c0_85 = arith.constant 0 : index
    %148 = vector.load %arg9[%c0_83, %c0_84, %c0_85] : memref<1x192x32xf32, #tpu.memory_space<vmem>>, vector<1x192x32xf32>
    %149 = vector.shape_cast %148 : vector<1x192x32xf32> to vector<192x32xf32>
    %150 = vector.shape_cast %147 : vector<192x32xf32> to vector<1x192x32xf32>
    tpu.vector_store %arg9[%c0_83, %c0_84, %c0_85], %150 {strides = array<i32>} : memref<1x192x32xf32, #tpu.memory_space<vmem>>, vector<1x192x32xf32>,
    return
  }
  func.func @transform_0(%arg0: i32, %arg1: i32) -> (i32, i32, i32) {
    %c0_i32 = arith.constant 0 : i32
    %c0_i32_0 = arith.constant 0 : i32
    %c0_i32_1 = arith.constant 0 : i32
    return %arg0, %c0_i32, %c0_i32_0 : i32, i32, i32
  }
  func.func @transform_1(%arg0: i32, %arg1: i32) -> (i32, i32, i32) {
    %c0_i32 = arith.constant 0 : i32
    %c0_i32_0 = arith.constant 0 : i32
    %c0_i32_1 = arith.constant 0 : i32
    return %arg0, %c0_i32, %c0_i32_0 : i32, i32, i32
  }
  func.func @transform_2(%arg0: i32, %arg1: i32) -> (i32, i32) {
    %c0_i32 = arith.constant 0 : i32
    %c0_i32_0 = arith.constant 0 : i32
    %c0_i32_1 = arith.constant 0 : i32
    return %c0_i32, %c0_i32_0 : i32, i32
  }
  func.func @transform_3(%arg0: i32, %arg1: i32) -> (i32, i32, i32) {
    %c0_i32 = arith.constant 0 : i32
    %c0_i32_0 = arith.constant 0 : i32
    %c0_i32_1 = arith.constant 0 : i32
    return %arg0, %c0_i32, %c0_i32_0 : i32, i32, i32
  }
  func.func @transform_4(%arg0: i32, %arg1: i32) -> (i32, i32, i32) {
    %c0_i32 = arith.constant 0 : i32
    %c0_i32_0 = arith.constant 0 : i32
    %c0_i32_1 = arith.constant 0 : i32
    return %arg0, %c0_i32, %c0_i32_0 : i32, i32, i32
  }
  func.func @transform_5(%arg0: i32, %arg1: i32) -> (i32, i32, i32) {
    %c0_i32 = arith.constant 0 : i32
    %c0_i32_0 = arith.constant 0 : i32
    %c0_i32_1 = arith.constant 0 : i32
    %c0_i32_2 = arith.constant 0 : i32
    return %c0_i32, %c0_i32_0, %c0_i32_1 : i32, i32, i32
  }
  func.func @transform_6(%arg0: i32, %arg1: i32) -> (i32, i32) {
    %c0_i32 = arith.constant 0 : i32
    %c0_i32_0 = arith.constant 0 : i32
    %c0_i32_1 = arith.constant 0 : i32
    return %c0_i32, %c0_i32_0 : i32, i32
  }
  func.func @transform_7(%arg0: i32, %arg1: i32) -> (i32, i32, i32) {
    %c0_i32 = arith.constant 0 : i32
    %c0_i32_0 = arith.constant 0 : i32
    return %arg0, %arg1, %c0_i32 : i32, i32, i32
  }
}

</mosaic_0001>

<llo_original>
// kernel: tpu_custom_call.1
$region0: #{tpu_custom_call.1}
  #allocation0 [shape = 'u32[]', space=smem, size = 0x4, offset = 0x4, fixed_abs, tag = 'smem constant byte address 0x4 - core index']
  #allocation1 [shape = 'u32[144,128]{1,0:T(1,128)}', space=vmem, size = 0x12000, scoped, tag = 'internal scratch']
  #allocation2 [shape = 'bf16[296,16]{1,0:T(8,128)(2,1)}', space=vmem, size = 0x12800, scoped, tag = 'scratch operand']
  %s0 = inlined_call_operand.vmem [shape: f32[2,20,12], index: 0, kind: input, shape index: {}]
  %s1 = inlined_call_operand.vmem [shape: f32[2,24,12], index: 1, kind: input, shape index: {}]
  %s2 = inlined_call_operand.vmem [shape: f32[20,24], index: 2, kind: input, shape index: {}]
  %s3 = inlined_call_operand.vmem [shape: f32[2,1,16], index: 3, kind: input, shape index: {}]
  %s4 = inlined_call_operand.vmem [shape: f32[2,1,16], index: 4, kind: input, shape index: {}]
  %s5 = inlined_call_operand.vmem [shape: bf16[5,80,32], index: 5, kind: input, shape index: {}]
  %s6 = inlined_call_operand.vmem [shape: f32[1,32], index: 6, kind: input, shape index: {}]
  %s7 = inlined_call_operand.vmem [shape: f32[2,384,32], index: 7, kind: output, shape index: {}]
  %s8 = sld [smem:[#allocation0]]
  $region61: #{tpu_custom_call.1} parent=0
    _
  %s10 = ssub.s32 1, %s8
  %s11 = scalar_select 0, %s10, %s8
  loop: start=0, step=1, limit=6
  $region2: #{tpu_custom_call.1} parent=0 // loop_pre_header
    _
  $region3: #{tpu_custom_call.1} parent=0 // loop_header
    %s13 = sphi 0, %s17
    %p14 = scmp.ge.s32.totalorder %s13, 6
    %s20 = sphi 0, %s32
    %s21 = sphi 0, %s28
    %s22 = sphi 0, %s20
    %s23 = sphi 0, %s21
    %s24 = sphi 0, %s22
    %s25 = sphi 0, %s23
    %s35 = sphi 0, %s37
    %s38 = sphi 0, %s35
    %s39 = sphi 0, %s38
    %s55 = sphi 0, %s39
    %s61 = sphi 0, %s63
    %s64 = sphi 0, %s61
    %s65 = sphi 0, %s64
    %s81 = sphi 0, %s65
    %s85 = sphi 0, %s85
    %s87 = sphi 0, %s85
    %s88 = sphi 0, %s87
    %s102 = sphi 0, %s88
    %s108 = sphi 0, %s110
    %s111 = sphi 0, %s108
    %s112 = sphi 0, %s111
    %s128 = sphi 0, %s112
    %s134 = sphi 0, %s136
    %s137 = sphi 0, %s134
    %s138 = sphi 0, %s137
    %s154 = sphi 0, %s138
    %s158 = sphi 0, %s158
    %s160 = sphi 0, %s158
    %s161 = sphi 0, %s160
    %s175 = sphi 0, %s161
    %s179 = sphi 0, %s179
    %s181 = sphi 0, %s179
    %s182 = sphi 0, %s181
    %s196 = sphi 0, %s182
    %s204 = sphi 0, %s206
    %s207 = sphi 0, %s204
    %s208 = sphi 0, %s207
    %s224 = sphi 0, %s208
  $region4: #{tpu_custom_call.1} parent=0 // loop_header_branch
    %16 = sbr.rel (%p14) target = $region8
  $region5: #{tpu_custom_call.1} parent=0 // loop_body
    %s18 = ssub.s32 %s13, 1
    %s19 = ssub.s32 %s13, 2
    %s26 = sadd.s32 1, %s21
    %p27 = scmp.ge.s32.totalorder %s26, 2
    %s28 = scalar_select %p27, 0, %s26
    %s29 = sadd.s32 1, %s20
    %s30 = scalar_select %p27, %s29, %s20
    %p31 = scmp.ge.s32.totalorder %s30, 2
    %s32 = scalar_select %p31, 0, %s30
    %s33 = ssub.s32 %s20, %s32
    %p34 = scmp.eq.s32.totalorder %s33, 0
    %s36 = sadd.s32 %s35, 1
    %s37 = scalar_select %p34, %s35, %s36
    %p40 = pneg %p34
    %p41 = scmp.eq.s32.totalorder %s13, 3
    %p42 = por %p40, %p41
    %p43 = scmp.ne.s32.totalorder %s35, %s38
    %p44 = scmp.eq.s32.totalorder %s13, 0
    %p45 = por %p43, %p44
    %p46 = scmp.ne.s32.totalorder %s35, %s38
    %p47 = scmp.eq.s32.totalorder %s18, 3
    %p48 = por %p46, %p47
    %p49 = scmp.ne.s32.totalorder %s38, %s39
    %p50 = scmp.eq.s32.totalorder %s18, 0
    %p51 = por %p49, %p50
    %p52 = scmp.ne.s32.totalorder %s38, %s39
    %p53 = scmp.eq.s32.totalorder %s19, 3
    %p54 = por %p52, %p53
    %p56 = scmp.ne.s32.totalorder %s39, %s55
    %p57 = scmp.eq.s32.totalorder %s19, 0
    %p58 = por %p56, %p57
    %s59 = ssub.s32 %s20, %s32
    %p60 = scmp.eq.s32.totalorder %s59, 0
    %s62 = sadd.s32 %s61, 1
    %s63 = scalar_select %p60, %s61, %s62
    %p66 = pneg %p60
    %p67 = scmp.eq.s32.totalorder %s13, 3
    %p68 = por %p66, %p67
    %p69 = scmp.ne.s32.totalorder %s61, %s64
    %p70 = scmp.eq.s32.totalorder %s13, 0
    %p71 = por %p69, %p70
    %p72 = scmp.ne.s32.totalorder %s61, %s64
    %p73 = scmp.eq.s32.totalorder %s18, 3
    %p74 = por %p72, %p73
    %p75 = scmp.ne.s32.totalorder %s64, %s65
    %p76 = scmp.eq.s32.totalorder %s18, 0
    %p77 = por %p75, %p76
    %p78 = scmp.ne.s32.totalorder %s64, %s65
    %p79 = scmp.eq.s32.totalorder %s19, 3
    %p80 = por %p78, %p79
    %p82 = scmp.ne.s32.totalorder %s65, %s81
    %p83 = scmp.eq.s32.totalorder %s19, 0
    %p84 = por %p82, %p83
    %s86 = sadd.s32 %s85, 1
    %p89 = scmp.eq.s32.totalorder %s13, 3
    %p90 = scmp.ne.s32.totalorder %s85, %s87
    %p91 = scmp.eq.s32.totalorder %s13, 0
    %p92 = por %p90, %p91
    %p93 = scmp.ne.s32.totalorder %s85, %s87
    %p94 = scmp.eq.s32.totalorder %s18, 3
    %p95 = por %p93, %p94
    %p96 = scmp.ne.s32.totalorder %s87, %s88
    %p97 = scmp.eq.s32.totalorder %s18, 0
    %p98 = por %p96, %p97
    %p99 = scmp.ne.s32.totalorder %s87, %s88
    %p100 = scmp.eq.s32.totalorder %s19, 3
    %p101 = por %p99, %p100
    %p103 = scmp.ne.s32.totalorder %s88, %s102
    %p104 = scmp.eq.s32.totalorder %s19, 0
    %p105 = por %p103, %p104
    %s106 = ssub.s32 %s20, %s32
    %p107 = scmp.eq.s32.totalorder %s106, 0
    %s109 = sadd.s32 %s108, 1
    %s110 = scalar_select %p107, %s108, %s109
    %p113 = pneg %p107
    %p114 = scmp.eq.s32.totalorder %s13, 3
    %p115 = por %p113, %p114
    %p116 = scmp.ne.s32.totalorder %s108, %s111
    %p117 = scmp.eq.s32.totalorder %s13, 0
    %p118 = por %p116, %p117
    %p119 = scmp.ne.s32.totalorder %s108, %s111
    %p120 = scmp.eq.s32.totalorder %s18, 3
    %p121 = por %p119, %p120
    %p122 = scmp.ne.s32.totalorder %s111, %s112
    %p123 = scmp.eq.s32.totalorder %s18, 0
    %p124 = por %p122, %p123
    %p125 = scmp.ne.s32.totalorder %s111, %s112
    %p126 = scmp.eq.s32.totalorder %s19, 3
    %p127 = por %p125, %p126
    %p129 = scmp.ne.s32.totalorder %s112, %s128
    %p130 = scmp.eq.s32.totalorder %s19, 0
    %p131 = por %p129, %p130
    %s132 = ssub.s32 %s20, %s32
    %p133 = scmp.eq.s32.totalorder %s132, 0
    %s135 = sadd.s32 %s134, 1
    %s136 = scalar_select %p133, %s134, %s135
    %p139 = pneg %p133
    %p140 = scmp.eq.s32.totalorder %s13, 3
    %p141 = por %p139, %p140
    %p142 = scmp.ne.s32.totalorder %s134, %s137
    %p143 = scmp.eq.s32.totalorder %s13, 0
    %p144 = por %p142, %p143
    %p145 = scmp.ne.s32.totalorder %s134, %s137
    %p146 = scmp.eq.s32.totalorder %s18, 3
    %p147 = por %p145, %p146
    %p148 = scmp.ne.s32.totalorder %s137, %s138
    %p149 = scmp.eq.s32.totalorder %s18, 0
    %p150 = por %p148, %p149
    %p151 = scmp.ne.s32.totalorder %s137, %s138
    %p152 = scmp.eq.s32.totalorder %s19, 3
    %p153 = por %p151, %p152
    %p155 = scmp.ne.s32.totalorder %s138, %s154
    %p156 = scmp.eq.s32.totalorder %s19, 0
    %p157 = por %p155, %p156
    %s159 = sadd.s32 %s158, 1
    %p162 = scmp.eq.s32.totalorder %s13, 3
    %p163 = scmp.ne.s32.totalorder %s158, %s160
    %p164 = scmp.eq.s32.totalorder %s13, 0
    %p165 = por %p163, %p164
    %p166 = scmp.ne.s32.totalorder %s158, %s160
    %p167 = scmp.eq.s32.totalorder %s18, 3
    %p168 = por %p166, %p167
    %p169 = scmp.ne.s32.totalorder %s160, %s161
    %p170 = scmp.eq.s32.totalorder %s18, 0
    %p171 = por %p169, %p170
    %p172 = scmp.ne.s32.totalorder %s160, %s161
    %p173 = scmp.eq.s32.totalorder %s19, 3
    %p174 = por %p172, %p173
    %p176 = scmp.ne.s32.totalorder %s161, %s175
    %p177 = scmp.eq.s32.totalorder %s19, 0
    %p178 = por %p176, %p177
    %s180 = sadd.s32 %s179, 1
    %p183 = scmp.eq.s32.totalorder %s13, 3
    %p184 = scmp.ne.s32.totalorder %s179, %s181
    %p185 = scmp.eq.s32.totalorder %s13, 0
    %p186 = por %p184, %p185
    %p187 = scmp.ne.s32.totalorder %s179, %s181
    %p188 = scmp.eq.s32.totalorder %s18, 3
    %p189 = por %p187, %p188
    %p190 = scmp.ne.s32.totalorder %s181, %s182
    %p191 = scmp.eq.s32.totalorder %s18, 0
    %p192 = por %p190, %p191
    %p193 = scmp.ne.s32.totalorder %s181, %s182
    %p194 = scmp.eq.s32.totalorder %s19, 3
    %p195 = por %p193, %p194
    %p197 = scmp.ne.s32.totalorder %s182, %s196
    %p198 = scmp.eq.s32.totalorder %s19, 0
    %p199 = por %p197, %p198
    %s200 = ssub.s32 %s20, %s32
    %s201 = ssub.s32 %s21, %s28
    %s202 = sor.u32 %s200, %s201
    %p203 = scmp.eq.s32.totalorder %s202, 0
    %s205 = sadd.s32 %s204, 1
    %s206 = scalar_select %p203, %s204, %s205
    %p209 = pneg %p203
    %p210 = scmp.eq.s32.totalorder %s13, 3
    %p211 = por %p209, %p210
    %p212 = scmp.ne.s32.totalorder %s204, %s207
    %p213 = scmp.eq.s32.totalorder %s13, 0
    %p214 = por %p212, %p213
    %p215 = scmp.ne.s32.totalorder %s204, %s207
    %p216 = scmp.eq.s32.totalorder %s18, 3
    %p217 = por %p215, %p216
    %p218 = scmp.ne.s32.totalorder %s207, %s208
    %p219 = scmp.eq.s32.totalorder %s18, 0
    %p220 = por %p218, %p219
    %p221 = scmp.ne.s32.totalorder %s207, %s208
    %p222 = scmp.eq.s32.totalorder %s19, 3
    %p223 = por %p221, %p222
    %p225 = scmp.ne.s32.totalorder %s208, %s224
    %p226 = scmp.eq.s32.totalorder %s19, 0
    %p227 = por %p225, %p226
    %p228 = scmp.le.s32.totalorder 1, %s13
    %p229 = scmp.lt.s32.totalorder %s13, 5
    %p230 = pnand %p228, %p229
    %p231 = pneg %p230
    // Predicated region
    $region9: #{tpu_custom_call.1} parent=5 // pred_check
      _
    $region10: #{tpu_custom_call.1} parent=5 // pred_check_branch
      %233 = sbr.rel (%p230) target = $region12
    $region11: #{tpu_custom_call.1} parent=5 // pred_region
      %s234 = ssub.s32 %s13, 1
      // Predicated region
      $region13: #{tpu_custom_call.1} parent=11 // pred_check
        %p235 = pneg %p98
      $region14: #{tpu_custom_call.1} parent=11 // pred_check_branch
        %237 = sbr.rel (%p235) target = $region16
      $region15: #{tpu_custom_call.1} parent=11 // pred_region
        _
      $region16: #{tpu_custom_call.1} parent=11 // pred_fallthru
        _
      // Predicated region
      $region17: #{tpu_custom_call.1} parent=11 // pred_check
        %p238 = pneg %p171
      $region18: #{tpu_custom_call.1} parent=11 // pred_check_branch
        %240 = sbr.rel (%p238) target = $region20
      $region19: #{tpu_custom_call.1} parent=11 // pred_region
        _
      $region20: #{tpu_custom_call.1} parent=11 // pred_fallthru
        _
      // Predicated region
      $region21: #{tpu_custom_call.1} parent=11 // pred_check
        %p241 = pneg %p192
      $region22: #{tpu_custom_call.1} parent=11 // pred_check_branch
        %243 = sbr.rel (%p241) target = $region24
      $region23: #{tpu_custom_call.1} parent=11 // pred_region
        _
      $region24: #{tpu_custom_call.1} parent=11 // pred_fallthru
        _
    $region12: #{tpu_custom_call.1} parent=5 // pred_fallthru
      _
    %p244 = scmp.lt.s32.totalorder %s13, 4
    // Predicated region
    $region25: #{tpu_custom_call.1} parent=5 // pred_check
      %p245 = pneg %p244
    $region26: #{tpu_custom_call.1} parent=5 // pred_check_branch
      %247 = sbr.rel (%p245) target = $region28
    $region27: #{tpu_custom_call.1} parent=5 // pred_region
      // Predicated region
      $region29: #{tpu_custom_call.1} parent=27 // pred_check
        %p248 = pneg %p45
      $region30: #{tpu_custom_call.1} parent=27 // pred_check_branch
        %250 = sbr.rel (%p248) target = $region32
      $region31: #{tpu_custom_call.1} parent=27 // pred_region
        %p251 = scmp.lt.s32.totalorder %s20, 1
        %s252 = scalar_select %p251, %s20, 1
        %s253 = smul.addr %s252, 3
        %s254 = smul.addr %s253, 8
        %s255 = scalar_lea.vmem %s0, %s254
      $region32: #{tpu_custom_call.1} parent=27 // pred_fallthru
        _
      // Predicated region
      $region33: #{tpu_custom_call.1} parent=27 // pred_check
        %p256 = pneg %p71
      $region34: #{tpu_custom_call.1} parent=27 // pred_check_branch
        %258 = sbr.rel (%p256) target = $region36
      $region35: #{tpu_custom_call.1} parent=27 // pred_region
        %p259 = scmp.lt.s32.totalorder %s20, 1
        %s260 = scalar_select %p259, %s20, 1
        %s261 = smul.addr %s260, 3
        %s262 = smul.addr %s261, 8
        %s263 = scalar_lea.vmem %s1, %s262
      $region36: #{tpu_custom_call.1} parent=27 // pred_fallthru
        _
      // Predicated region
      $region37: #{tpu_custom_call.1} parent=27 // pred_check
        %p264 = pneg %p118
      $region38: #{tpu_custom_call.1} parent=27 // pred_check_branch
        %266 = sbr.rel (%p264) target = $region40
      $region39: #{tpu_custom_call.1} parent=27 // pred_region
        %p267 = scmp.lt.s32.totalorder %s20, 1
        %s268 = scalar_select %p267, %s20, 1
        %s269 = scalar_lea.vmem %s3, %s268
      $region40: #{tpu_custom_call.1} parent=27 // pred_fallthru
        _
      // Predicated region
      $region41: #{tpu_custom_call.1} parent=27 // pred_check
        %p270 = pneg %p144
      $region42: #{tpu_custom_call.1} parent=27 // pred_check_branch
        %272 = sbr.rel (%p270) target = $region44
      $region43: #{tpu_custom_call.1} parent=27 // pred_region
        %p273 = scmp.lt.s32.totalorder %s20, 1
        %s274 = scalar_select %p273, %s20, 1
        %s275 = scalar_lea.vmem %s4, %s274
      $region44: #{tpu_custom_call.1} parent=27 // pred_fallthru
        _
    $region28: #{tpu_custom_call.1} parent=5 // pred_fallthru
      _
    %p276 = scmp.le.s32.totalorder 1, %s13
    %p277 = scmp.lt.s32.totalorder %s13, 5
    %p278 = pnand %p276, %p277
    %p279 = pneg %p278
    // Predicated region
    $region45: #{tpu_custom_call.1} parent=5 // pred_check
      _
    $region46: #{tpu_custom_call.1} parent=5 // pred_check_branch
      %281 = sbr.rel (%p278) target = $region48
    $region47: #{tpu_custom_call.1} parent=5 // pred_region
      %s282 = ssub.s32 %s13, 1
      %p283 = scmp.lt.s32.totalorder %s22, 1
      %s284 = scalar_select %p283, %s22, 1
      %s285 = smul.addr %s284, 3
      %s286 = smul.addr %s285, 8
      %s287 = scalar_lea.vmem %s0, %s286
      %p288 = pneg %p51
      %p289 = pneg %p48
      %p290 = scmp.lt.s32.totalorder %s22, 1
      %s291 = scalar_select %p290, %s22, 1
      %s292 = smul.addr %s291, 3
      %s293 = smul.addr %s292, 8
      %s294 = scalar_lea.vmem %s1, %s293
      %p295 = pneg %p77
      %p296 = pneg %p74
      %p297 = pneg %p98
      %p298 = pneg %p95
      %p299 = scmp.lt.s32.totalorder %s22, 1
      %s300 = scalar_select %p299, %s22, 1
      %s301 = scalar_lea.vmem %s3, %s300
      %p302 = pneg %p124
      %p303 = pneg %p121
      %p304 = scmp.lt.s32.totalorder %s22, 1
      %s305 = scalar_select %p304, %s22, 1
      %s306 = scalar_lea.vmem %s4, %s305
      %p307 = pneg %p150
      %p308 = pneg %p147
      %p309 = pneg %p171
      %p310 = pneg %p168
      %p311 = pneg %p192
      %p312 = pneg %p189
      %p313 = pneg %p220
      %p314 = pneg %p217
      %s315 = smul.u32 24, %s23
      %p316 = scmp.lt.s32.totalorder %s22, 1
      %s317 = scalar_select %p316, %s22, 1
      %p318 = scmp.lt.s32.totalorder %s315, 47
      %s319 = scalar_select %p318, %s315, 47
      %s320 = smul.addr %s317, 48
      %s321 = sadd.s32 %s319, %s320
      %s322 = smul.addr %s321, 8
      %s323 = scalar_lea.vmem %s7, %s322
      %p324 = scmp.lt.s32.totalorder %s22, 1
      %s325 = scalar_select %p324, %s22, 1
      %s326 = smul.addr %s325, 3
      %s327 = smul.addr %s326, 8
      %s328 = scalar_lea.vmem %s0, %s327
      %p329 = scmp.lt.s32.totalorder %s22, 1
      %s330 = scalar_select %p329, %s22, 1
      %s331 = smul.addr %s330, 3
      %s332 = smul.addr %s331, 8
      %s333 = scalar_lea.vmem %s1, %s332
      %p334 = scmp.lt.s32.totalorder %s22, 1
      %s335 = scalar_select %p334, %s22, 1
      %s336 = scalar_lea.vmem %s3, %s335
      %p337 = scmp.lt.s32.totalorder %s22, 1
      %s338 = scalar_select %p337, %s22, 1
      %s339 = scalar_lea.vmem %s4, %s338
      %s340 = smul.u32 24, %s23
      %p341 = scmp.lt.s32.totalorder %s22, 1
      %s342 = scalar_select %p341, %s22, 1
      %p343 = scmp.lt.s32.totalorder %s340, 47
      %s344 = scalar_select %p343, %s340, 47
      %s345 = smul.addr %s342, 48
      %s346 = sadd.s32 %s344, %s345
      %s347 = smul.addr %s346, 8
      %s348 = scalar_lea.vmem %s7, %s347
      %s349 = smul.u32 24, %s23
      %s351 = smul.u32 %s23, 8
      %s352 = scalar_lea.vmem %s328, %s351
      %v353 = vld [vmem:[%s352] sm:$0xff]
      %v354 = vld [vmem:[%s352 + $0x8] sm:$0xf]
      %v355 = vld [vmem:[%s333] sm:$0xff]
      %v356 = vld [vmem:[%s333 + $0x8] sm:$0xff]
      %v357 = vld [vmem:[%s333 + $0x10] sm:$0xff]
      %s358 = scalar_lea.vmem %s2, %s351
      %v359 = vld [vmem:[%s358] sm:$0xff]
      %v360 = vld [vmem:[%s358 + $0x8] sm:$0xf]
      %v363 = vcombine.high %v353, %v353
      %v365 = vunpack.c.l.s4 1966171168
      %v366 = vunpack.c.0.s8 %v365
      %v367 = vlaneseq
      %v368 = vshrl.u32 %v367, 7
      %v369 = vsub.s32 %v366, %v368
      %v370 = vrot.slane %v353, %v369
      %v372 = vunpack.c.l.s4 1966171168
      %v373 = vunpack.c.0.s8 %v372
      %v374 = vlaneseq
      %v375 = vshrl.u32 %v374, 7
      %v376 = vsub.s32 %v373, %v375
      %v377 = vrot.slane %v363, %v376
      %v378 = vcombine.high %v370, %v370
      %v379 = vcombine.high %v377, %v377
      %v381 = vunpack.c.l.s4 1966171168
      %v382 = vunpack.c.0.s8 %v381
      %v383 = vlaneseq
      %v384 = vshrl.u32 %v383, 7
      %v385 = vsub.s32 %v382, %v384
      %v386 = vrot.slane %v370, %v385
      %v388 = vunpack.c.l.s4 1966171168
      %v389 = vunpack.c.0.s8 %v388
      %v390 = vlaneseq
      %v391 = vshrl.u32 %v390, 7
      %v392 = vsub.s32 %v389, %v391
      %v393 = vrot.slane %v377, %v392
      %v395 = vunpack.c.l.s4 1966171168
      %v396 = vunpack.c.0.s8 %v395
      %v397 = vlaneseq
      %v398 = vshrl.u32 %v397, 7
      %v399 = vsub.s32 %v396, %v398
      %v400 = vrot.slane %v378, %v399
      %v402 = vunpack.c.l.s4 1966171168
      %v403 = vunpack.c.0.s8 %v402
      %v404 = vlaneseq
      %v405 = vshrl.u32 %v404, 7
      %v406 = vsub.s32 %v403, %v405
      %v407 = vrot.slane %v379, %v406
      %v408 = vcombine.high %v386, %v386
      %v409 = vcombine.high %v393, %v393
      %v410 = vcombine.high %v400, %v400
      %v411 = vcombine.high %v407, %v407
      %v413 = vunpack.c.l.s4 1966171168
      %v414 = vunpack.c.0.s8 %v413
      %v415 = vlaneseq
      %v416 = vshrl.u32 %v415, 7
      %v417 = vsub.s32 %v414, %v416
      %v418 = vrot.slane %v354, %v417
      %v419 = vcombine.high %v418, %v418
      %v421 = vunpack.c.l.s4 1966171168
      %v422 = vunpack.c.0.s8 %v421
      %v423 = vlaneseq
      %v424 = vshrl.u32 %v423, 7
      %v425 = vsub.s32 %v422, %v424
      %v426 = vrot.slane %v418, %v425
      %v428 = vunpack.c.l.s4 1966171168
      %v429 = vunpack.c.0.s8 %v428
      %v430 = vlaneseq
      %v431 = vshrl.u32 %v430, 7
      %v432 = vsub.s32 %v429, %v431
      %v433 = vrot.slane %v419, %v432
      %v434 = vcombine.high %v426, %v426
      %v435 = vcombine.high %v433, %v433
      %v436 = vlaneseq
      %v437 = vshrl.u32 %v436, 7
      %v438 = vsub.s32 0, %v437
      %v439 = vrot.slane %v386, %v438
      %v440 = vlaneseq
      %v441 = vshrl.u32 %v440, 7
      %v442 = vsub.s32 0, %v441
      %v443 = vrot.slane %v400, %v442
      %v444 = vlaneseq
      %v445 = vshrl.u32 %v444, 7
      %v446 = vsub.s32 0, %v445
      %v447 = vrot.slane %v408, %v446
      %v448 = vlaneseq
      %v449 = vshrl.u32 %v448, 7
      %v450 = vsub.s32 0, %v449
      %v451 = vrot.slane %v410, %v450
      %v452 = vlaneseq
      %v453 = vshrl.u32 %v452, 7
      %v454 = vsub.s32 0, %v453
      %v455 = vrot.slane %v393, %v454
      %v456 = vlaneseq
      %v457 = vshrl.u32 %v456, 7
      %v458 = vsub.s32 0, %v457
      %v459 = vrot.slane %v407, %v458
      %v460 = vlaneseq
      %v461 = vshrl.u32 %v460, 7
      %v462 = vsub.s32 0, %v461
      %v463 = vrot.slane %v409, %v462
      %v464 = vlaneseq
      %v465 = vshrl.u32 %v464, 7
      %v466 = vsub.s32 0, %v465
      %v467 = vrot.slane %v411, %v466
      %v468 = vlaneseq
      %v469 = vshrl.u32 %v468, 7
      %v470 = vsub.s32 0, %v469
      %v471 = vrot.slane %v426, %v470
      %v472 = vlaneseq
      %v473 = vshrl.u32 %v472, 7
      %v474 = vsub.s32 0, %v473
      %v475 = vrot.slane %v433, %v474
      %v476 = vlaneseq
      %v477 = vshrl.u32 %v476, 7
      %v478 = vsub.s32 0, %v477
      %v479 = vrot.slane %v434, %v478
      %v480 = vlaneseq
      %v481 = vshrl.u32 %v480, 7
      %v482 = vsub.s32 0, %v481
      %v483 = vrot.slane %v435, %v482
      %v496 = vadd.f32 %v439, %v355
      %v497 = vadd.f32 %v439, %v356
      %v498 = vadd.f32 %v439, %v357
      %v499 = vadd.f32 %v443, %v355
      %v500 = vadd.f32 %v443, %v356
      %v501 = vadd.f32 %v443, %v357
      %v502 = vadd.f32 %v447, %v355
      %v503 = vadd.f32 %v447, %v356
      %v504 = vadd.f32 %v447, %v357
      %v505 = vadd.f32 %v451, %v355
      %v506 = vadd.f32 %v451, %v356
      %v507 = vadd.f32 %v451, %v357
      %v508 = vadd.f32 %v455, %v355
      %v509 = vadd.f32 %v455, %v356
      %v510 = vadd.f32 %v455, %v357
      %v511 = vadd.f32 %v459, %v355
      %v512 = vadd.f32 %v459, %v356
      %v513 = vadd.f32 %v459, %v357
      %v514 = vadd.f32 %v463, %v355
      %v515 = vadd.f32 %v463, %v356
      %v516 = vadd.f32 %v463, %v357
      %v517 = vadd.f32 %v467, %v355
      %v518 = vadd.f32 %v467, %v356
      %v519 = vadd.f32 %v467, %v357
      %v520 = vadd.f32 %v471, %v355
      %v521 = vadd.f32 %v471, %v356
      %v522 = vadd.f32 %v471, %v357
      %v523 = vadd.f32 %v475, %v355
      %v524 = vadd.f32 %v475, %v356
      %v525 = vadd.f32 %v475, %v357
      %v526 = vadd.f32 %v479, %v355
      %v527 = vadd.f32 %v479, %v356
      %v528 = vadd.f32 %v479, %v357
      %v529 = vadd.f32 %v483, %v355
      %v530 = vadd.f32 %v483, %v356
      %v531 = vadd.f32 %v483, %v357
      %v532 = vlaneseq
      %v533 = vshrl.u32 %v532, 7
      %v534 = vadd.s32 %v533, 8
      %v535 = vstv %s351
      %v536 = vadd.s32 %v533, %v535
      %v537 = vadd.s32 %v534, %v535
      %v538 = vlaneseq
      %v539 = vand.u32 %v538, 127
      %vm540 = vcmp.gt.s32.totalorder %v539, %v536
      %vm541 = vcmp.gt.s32.totalorder %v539, %v537
      %v542 = vsel %vm540, 1.0, -1.0
      %v543 = vsel %vm541, 1.0, -1.0
      %vm544 = vcmp.ge.s32.totalorder %v536, 2
      %vm545 = vcmp.ge.s32.totalorder %v537, 2
      %vm546 = vcmp.lt.s32.totalorder %v536, 18
      %vm547 = vcmp.lt.s32.totalorder %v537, 18
      %vm548 = vmand %vm544, %vm546
      %vm549 = vmand %vm545, %vm547
      %vm550 = vcmp.ge.s32.totalorder %v539, 2
      %vm551 = vmand %vm548, %vm550
      %vm552 = vmand %vm549, %vm550
      %vm553 = vcmp.lt.s32.totalorder %v539, 18
      %vm554 = vmand %vm551, %vm553
      %vm555 = vmand %vm552, %vm553
      %v556 = vsel %vm554, 1.0, 0.0
      %v557 = vsel %vm555, 1.0, 0.0
      %v558 = vlaneseq
      %v559 = vshrl.u32 %v558, 7
      %v560 = vsub.s32 0, %v559
      %v561 = vrot.slane %v542, %v560
      %563 = vbcast.lane.b32.xlu0 %v561, 256
      %v564 = vpop.permute.xlu0 %563
      %s566 = sor.u32 256, 8
      %567 = vbcast.lane.b32.xlu0 %v561, %s566
      %v568 = vpop.permute.xlu0 %567
      %s570 = sor.u32 256, 16
      %571 = vbcast.lane.b32.xlu0 %v561, %s570
      %v572 = vpop.permute.xlu0 %571
      %v573 = vlaneseq
      %v574 = vshrl.u32 %v573, 7
      %v575 = vsub.s32 1, %v574
      %v576 = vrot.slane %v542, %v575
      %578 = vbcast.lane.b32.xlu0 %v576, 256
      %v579 = vpop.permute.xlu0 %578
      %s581 = sor.u32 256, 8
      %582 = vbcast.lane.b32.xlu0 %v576, %s581
      %v583 = vpop.permute.xlu0 %582
      %s585 = sor.u32 256, 16
      %586 = vbcast.lane.b32.xlu0 %v576, %s585
      %v587 = vpop.permute.xlu0 %586
      %v588 = vlaneseq
      %v589 = vshrl.u32 %v588, 7
      %v590 = vsub.s32 2, %v589
      %v591 = vrot.slane %v542, %v590
      %593 = vbcast.lane.b32.xlu0 %v591, 256
      %v594 = vpop.permute.xlu0 %593
      %s596 = sor.u32 256, 8
      %597 = vbcast.lane.b32.xlu0 %v591, %s596
      %v598 = vpop.permute.xlu0 %597
      %s600 = sor.u32 256, 16
      %601 = vbcast.lane.b32.xlu0 %v591, %s600
      %v602 = vpop.permute.xlu0 %601
      %v603 = vlaneseq
      %v604 = vshrl.u32 %v603, 7
      %v605 = vsub.s32 3, %v604
      %v606 = vrot.slane %v542, %v605
      %608 = vbcast.lane.b32.xlu0 %v606, 256
      %v609 = vpop.permute.xlu0 %608
      %s611 = sor.u32 256, 8
      %612 = vbcast.lane.b32.xlu0 %v606, %s611
      %v613 = vpop.permute.xlu0 %612
      %s615 = sor.u32 256, 16
      %616 = vbcast.lane.b32.xlu0 %v606, %s615
      %v617 = vpop.permute.xlu0 %616
      %v618 = vlaneseq
      %v619 = vshrl.u32 %v618, 7
      %v620 = vsub.s32 4, %v619
      %v621 = vrot.slane %v542, %v620
      %623 = vbcast.lane.b32.xlu0 %v621, 256
      %v624 = vpop.permute.xlu0 %623
      %s626 = sor.u32 256, 8
      %627 = vbcast.lane.b32.xlu0 %v621, %s626
      %v628 = vpop.permute.xlu0 %627
      %s630 = sor.u32 256, 16
      %631 = vbcast.lane.b32.xlu0 %v621, %s630
      %v632 = vpop.permute.xlu0 %631
      %v633 = vlaneseq
      %v634 = vshrl.u32 %v633, 7
      %v635 = vsub.s32 5, %v634
      %v636 = vrot.slane %v542, %v635
      %638 = vbcast.lane.b32.xlu0 %v636, 256
      %v639 = vpop.permute.xlu0 %638
      %s641 = sor.u32 256, 8
      %642 = vbcast.lane.b32.xlu0 %v636, %s641
      %v643 = vpop.permute.xlu0 %642
      %s645 = sor.u32 256, 16
      %646 = vbcast.lane.b32.xlu0 %v636, %s645
      %v647 = vpop.permute.xlu0 %646
      %v648 = vlaneseq
      %v649 = vshrl.u32 %v648, 7
      %v650 = vsub.s32 6, %v649
      %v651 = vrot.slane %v542, %v650
      %653 = vbcast.lane.b32.xlu0 %v651, 256
      %v654 = vpop.permute.xlu0 %653
      %s656 = sor.u32 256, 8
      %657 = vbcast.lane.b32.xlu0 %v651, %s656
      %v658 = vpop.permute.xlu0 %657
      %s660 = sor.u32 256, 16
      %661 = vbcast.lane.b32.xlu0 %v651, %s660
      %v662 = vpop.permute.xlu0 %661
      %v663 = vlaneseq
      %v664 = vshrl.u32 %v663, 7
      %v665 = vsub.s32 7, %v664
      %v666 = vrot.slane %v542, %v665
      %668 = vbcast.lane.b32.xlu0 %v666, 256
      %v669 = vpop.permute.xlu0 %668
      %s671 = sor.u32 256, 8
      %672 = vbcast.lane.b32.xlu0 %v666, %s671
      %v673 = vpop.permute.xlu0 %672
      %s675 = sor.u32 256, 16
      %676 = vbcast.lane.b32.xlu0 %v666, %s675
      %v677 = vpop.permute.xlu0 %676
      %v678 = vlaneseq
      %v679 = vshrl.u32 %v678, 7
      %v680 = vsub.s32 0, %v679
      %v681 = vrot.slane %v543, %v680
      %683 = vbcast.lane.b32.xlu0 %v681, 256
      %v684 = vpop.permute.xlu0 %683
      %s686 = sor.u32 256, 8
      %687 = vbcast.lane.b32.xlu0 %v681, %s686
      %v688 = vpop.permute.xlu0 %687
      %s690 = sor.u32 256, 16
      %691 = vbcast.lane.b32.xlu0 %v681, %s690
      %v692 = vpop.permute.xlu0 %691
      %v693 = vlaneseq
      %v694 = vshrl.u32 %v693, 7
      %v695 = vsub.s32 1, %v694
      %v696 = vrot.slane %v543, %v695
      %698 = vbcast.lane.b32.xlu0 %v696, 256
      %v699 = vpop.permute.xlu0 %698
      %s701 = sor.u32 256, 8
      %702 = vbcast.lane.b32.xlu0 %v696, %s701
      %v703 = vpop.permute.xlu0 %702
      %s705 = sor.u32 256, 16
      %706 = vbcast.lane.b32.xlu0 %v696, %s705
      %v707 = vpop.permute.xlu0 %706
      %v708 = vlaneseq
      %v709 = vshrl.u32 %v708, 7
      %v710 = vsub.s32 2, %v709
      %v711 = vrot.slane %v543, %v710
      %713 = vbcast.lane.b32.xlu0 %v711, 256
      %v714 = vpop.permute.xlu0 %713
      %s716 = sor.u32 256, 8
      %717 = vbcast.lane.b32.xlu0 %v711, %s716
      %v718 = vpop.permute.xlu0 %717
      %s720 = sor.u32 256, 16
      %721 = vbcast.lane.b32.xlu0 %v711, %s720
      %v722 = vpop.permute.xlu0 %721
      %v723 = vlaneseq
      %v724 = vshrl.u32 %v723, 7
      %v725 = vsub.s32 3, %v724
      %v726 = vrot.slane %v543, %v725
      %728 = vbcast.lane.b32.xlu0 %v726, 256
      %v729 = vpop.permute.xlu0 %728
      %s731 = sor.u32 256, 8
      %732 = vbcast.lane.b32.xlu0 %v726, %s731
      %v733 = vpop.permute.xlu0 %732
      %s735 = sor.u32 256, 16
      %736 = vbcast.lane.b32.xlu0 %v726, %s735
      %v737 = vpop.permute.xlu0 %736
      %v738 = vlaneseq
      %v739 = vshrl.u32 %v738, 7
      %v740 = vsub.s32 0, %v739
      %v741 = vrot.slane %v359, %v740
      %743 = vbcast.lane.b32.xlu0 %v741, 256
      %v744 = vpop.permute.xlu0 %743
      %s746 = sor.u32 256, 8
      %747 = vbcast.lane.b32.xlu0 %v741, %s746
      %v748 = vpop.permute.xlu0 %747
      %s750 = sor.u32 256, 16
      %751 = vbcast.lane.b32.xlu0 %v741, %s750
      %v752 = vpop.permute.xlu0 %751
      %v753 = vlaneseq
      %v754 = vshrl.u32 %v753, 7
      %v755 = vsub.s32 1, %v754
      %v756 = vrot.slane %v359, %v755
      %758 = vbcast.lane.b32.xlu0 %v756, 256
      %v759 = vpop.permute.xlu0 %758
      %s761 = sor.u32 256, 8
      %762 = vbcast.lane.b32.xlu0 %v756, %s761
      %v763 = vpop.permute.xlu0 %762
      %s765 = sor.u32 256, 16
      %766 = vbcast.lane.b32.xlu0 %v756, %s765
      %v767 = vpop.permute.xlu0 %766
      %v768 = vlaneseq
      %v769 = vshrl.u32 %v768, 7
      %v770 = vsub.s32 2, %v769
      %v771 = vrot.slane %v359, %v770
      %773 = vbcast.lane.b32.xlu0 %v771, 256
      %v774 = vpop.permute.xlu0 %773
      %s776 = sor.u32 256, 8
      %777 = vbcast.lane.b32.xlu0 %v771, %s776
      %v778 = vpop.permute.xlu0 %777
      %s780 = sor.u32 256, 16
      %781 = vbcast.lane.b32.xlu0 %v771, %s780
      %v782 = vpop.permute.xlu0 %781
      %v783 = vlaneseq
      %v784 = vshrl.u32 %v783, 7
      %v785 = vsub.s32 3, %v784
      %v786 = vrot.slane %v359, %v785
      %788 = vbcast.lane.b32.xlu0 %v786, 256
      %v789 = vpop.permute.xlu0 %788
      %s791 = sor.u32 256, 8
      %792 = vbcast.lane.b32.xlu0 %v786, %s791
      %v793 = vpop.permute.xlu0 %792
      %s795 = sor.u32 256, 16
      %796 = vbcast.lane.b32.xlu0 %v786, %s795
      %v797 = vpop.permute.xlu0 %796
      %v798 = vlaneseq
      %v799 = vshrl.u32 %v798, 7
      %v800 = vsub.s32 4, %v799
      %v801 = vrot.slane %v359, %v800
      %803 = vbcast.lane.b32.xlu0 %v801, 256
      %v804 = vpop.permute.xlu0 %803
      %s806 = sor.u32 256, 8
      %807 = vbcast.lane.b32.xlu0 %v801, %s806
      %v808 = vpop.permute.xlu0 %807
      %s810 = sor.u32 256, 16
      %811 = vbcast.lane.b32.xlu0 %v801, %s810
      %v812 = vpop.permute.xlu0 %811
      %v813 = vlaneseq
      %v814 = vshrl.u32 %v813, 7
      %v815 = vsub.s32 5, %v814
      %v816 = vrot.slane %v359, %v815
      %818 = vbcast.lane.b32.xlu0 %v816, 256
      %v819 = vpop.permute.xlu0 %818
      %s821 = sor.u32 256, 8
      %822 = vbcast.lane.b32.xlu0 %v816, %s821
      %v823 = vpop.permute.xlu0 %822
      %s825 = sor.u32 256, 16
      %826 = vbcast.lane.b32.xlu0 %v816, %s825
      %v827 = vpop.permute.xlu0 %826
      %v828 = vlaneseq
      %v829 = vshrl.u32 %v828, 7
      %v830 = vsub.s32 6, %v829
      %v831 = vrot.slane %v359, %v830
      %833 = vbcast.lane.b32.xlu0 %v831, 256
      %v834 = vpop.permute.xlu0 %833
      %s836 = sor.u32 256, 8
      %837 = vbcast.lane.b32.xlu0 %v831, %s836
      %v838 = vpop.permute.xlu0 %837
      %s840 = sor.u32 256, 16
      %841 = vbcast.lane.b32.xlu0 %v831, %s840
      %v842 = vpop.permute.xlu0 %841
      %v843 = vlaneseq
      %v844 = vshrl.u32 %v843, 7
      %v845 = vsub.s32 7, %v844
      %v846 = vrot.slane %v359, %v845
      %848 = vbcast.lane.b32.xlu0 %v846, 256
      %v849 = vpop.permute.xlu0 %848
      %s851 = sor.u32 256, 8
      %852 = vbcast.lane.b32.xlu0 %v846, %s851
      %v853 = vpop.permute.xlu0 %852
      %s855 = sor.u32 256, 16
      %856 = vbcast.lane.b32.xlu0 %v846, %s855
      %v857 = vpop.permute.xlu0 %856
      %v858 = vlaneseq
      %v859 = vshrl.u32 %v858, 7
      %v860 = vsub.s32 0, %v859
      %v861 = vrot.slane %v360, %v860
      %863 = vbcast.lane.b32.xlu0 %v861, 256
      %v864 = vpop.permute.xlu0 %863
      %s866 = sor.u32 256, 8
      %867 = vbcast.lane.b32.xlu0 %v861, %s866
      %v868 = vpop.permute.xlu0 %867
      %s870 = sor.u32 256, 16
      %871 = vbcast.lane.b32.xlu0 %v861, %s870
      %v872 = vpop.permute.xlu0 %871
      %v873 = vlaneseq
      %v874 = vshrl.u32 %v873, 7
      %v875 = vsub.s32 1, %v874
      %v876 = vrot.slane %v360, %v875
      %878 = vbcast.lane.b32.xlu0 %v876, 256
      %v879 = vpop.permute.xlu0 %878
      %s881 = sor.u32 256, 8
      %882 = vbcast.lane.b32.xlu0 %v876, %s881
      %v883 = vpop.permute.xlu0 %882
      %s885 = sor.u32 256, 16
      %886 = vbcast.lane.b32.xlu0 %v876, %s885
      %v887 = vpop.permute.xlu0 %886
      %v888 = vlaneseq
      %v889 = vshrl.u32 %v888, 7
      %v890 = vsub.s32 2, %v889
      %v891 = vrot.slane %v360, %v890
      %893 = vbcast.lane.b32.xlu0 %v891, 256
      %v894 = vpop.permute.xlu0 %893
      %s896 = sor.u32 256, 8
      %897 = vbcast.lane.b32.xlu0 %v891, %s896
      %v898 = vpop.permute.xlu0 %897
      %s900 = sor.u32 256, 16
      %901 = vbcast.lane.b32.xlu0 %v891, %s900
      %v902 = vpop.permute.xlu0 %901
      %v903 = vlaneseq
      %v904 = vshrl.u32 %v903, 7
      %v905 = vsub.s32 3, %v904
      %v906 = vrot.slane %v360, %v905
      %908 = vbcast.lane.b32.xlu0 %v906, 256
      %v909 = vpop.permute.xlu0 %908
      %s911 = sor.u32 256, 8
      %912 = vbcast.lane.b32.xlu0 %v906, %s911
      %v913 = vpop.permute.xlu0 %912
      %s915 = sor.u32 256, 16
      %916 = vbcast.lane.b32.xlu0 %v906, %s915
      %v917 = vpop.permute.xlu0 %916
      %v918 = vlaneseq
      %v919 = vshrl.u32 %v918, 7
      %v920 = vsub.s32 0, %v919
      %v921 = vrot.slane %v556, %v920
      %923 = vbcast.lane.b32.xlu0 %v921, 256
      %v924 = vpop.permute.xlu0 %923
      %s926 = sor.u32 256, 8
      %927 = vbcast.lane.b32.xlu0 %v921, %s926
      %v928 = vpop.permute.xlu0 %927
      %s930 = sor.u32 256, 16
      %931 = vbcast.lane.b32.xlu0 %v921, %s930
      %v932 = vpop.permute.xlu0 %931
      %v933 = vlaneseq
      %v934 = vshrl.u32 %v933, 7
      %v935 = vsub.s32 1, %v934
      %v936 = vrot.slane %v556, %v935
      %938 = vbcast.lane.b32.xlu0 %v936, 256
      %v939 = vpop.permute.xlu0 %938
      %s941 = sor.u32 256, 8
      %942 = vbcast.lane.b32.xlu0 %v936, %s941
      %v943 = vpop.permute.xlu0 %942
      %s945 = sor.u32 256, 16
      %946 = vbcast.lane.b32.xlu0 %v936, %s945
      %v947 = vpop.permute.xlu0 %946
      %v948 = vlaneseq
      %v949 = vshrl.u32 %v948, 7
      %v950 = vsub.s32 2, %v949
      %v951 = vrot.slane %v556, %v950
      %953 = vbcast.lane.b32.xlu0 %v951, 256
      %v954 = vpop.permute.xlu0 %953
      %s956 = sor.u32 256, 8
      %957 = vbcast.lane.b32.xlu0 %v951, %s956
      %v958 = vpop.permute.xlu0 %957
      %s960 = sor.u32 256, 16
      %961 = vbcast.lane.b32.xlu0 %v951, %s960
      %v962 = vpop.permute.xlu0 %961
      %v963 = vlaneseq
      %v964 = vshrl.u32 %v963, 7
      %v965 = vsub.s32 3, %v964
      %v966 = vrot.slane %v556, %v965
      %968 = vbcast.lane.b32.xlu0 %v966, 256
      %v969 = vpop.permute.xlu0 %968
      %s971 = sor.u32 256, 8
      %972 = vbcast.lane.b32.xlu0 %v966, %s971
      %v973 = vpop.permute.xlu0 %972
      %s975 = sor.u32 256, 16
      %976 = vbcast.lane.b32.xlu0 %v966, %s975
      %v977 = vpop.permute.xlu0 %976
      %v978 = vlaneseq
      %v979 = vshrl.u32 %v978, 7
      %v980 = vsub.s32 4, %v979
      %v981 = vrot.slane %v556, %v980
      %983 = vbcast.lane.b32.xlu0 %v981, 256
      %v984 = vpop.permute.xlu0 %983
      %s986 = sor.u32 256, 8
      %987 = vbcast.lane.b32.xlu0 %v981, %s986
      %v988 = vpop.permute.xlu0 %987
      %s990 = sor.u32 256, 16
      %991 = vbcast.lane.b32.xlu0 %v981, %s990
      %v992 = vpop.permute.xlu0 %991
      %v993 = vlaneseq
      %v994 = vshrl.u32 %v993, 7
      %v995 = vsub.s32 5, %v994
      %v996 = vrot.slane %v556, %v995
      %998 = vbcast.lane.b32.xlu0 %v996, 256
      %v999 = vpop.permute.xlu0 %998
      %s1001 = sor.u32 256, 8
      %1002 = vbcast.lane.b32.xlu0 %v996, %s1001
      %v1003 = vpop.permute.xlu0 %1002
      %s1005 = sor.u32 256, 16
      %1006 = vbcast.lane.b32.xlu0 %v996, %s1005
      %v1007 = vpop.permute.xlu0 %1006
      %v1008 = vlaneseq
      %v1009 = vshrl.u32 %v1008, 7
      %v1010 = vsub.s32 6, %v1009
      %v1011 = vrot.slane %v556, %v1010
      %1013 = vbcast.lane.b32.xlu0 %v1011, 256
      %v1014 = vpop.permute.xlu0 %1013
      %s1016 = sor.u32 256, 8
      %1017 = vbcast.lane.b32.xlu0 %v1011, %s1016
      %v1018 = vpop.permute.xlu0 %1017
      %s1020 = sor.u32 256, 16
      %1021 = vbcast.lane.b32.xlu0 %v1011, %s1020
      %v1022 = vpop.permute.xlu0 %1021
      %v1023 = vlaneseq
      %v1024 = vshrl.u32 %v1023, 7
      %v1025 = vsub.s32 7, %v1024
      %v1026 = vrot.slane %v556, %v1025
      %1028 = vbcast.lane.b32.xlu0 %v1026, 256
      %v1029 = vpop.permute.xlu0 %1028
      %s1031 = sor.u32 256, 8
      %1032 = vbcast.lane.b32.xlu0 %v1026, %s1031
      %v1033 = vpop.permute.xlu0 %1032
      %s1035 = sor.u32 256, 16
      %1036 = vbcast.lane.b32.xlu0 %v1026, %s1035
      %v1037 = vpop.permute.xlu0 %1036
      %v1038 = vlaneseq
      %v1039 = vshrl.u32 %v1038, 7
      %v1040 = vsub.s32 0, %v1039
      %v1041 = vrot.slane %v557, %v1040
      %1043 = vbcast.lane.b32.xlu0 %v1041, 256
      %v1044 = vpop.permute.xlu0 %1043
      %s1046 = sor.u32 256, 8
      %1047 = vbcast.lane.b32.xlu0 %v1041, %s1046
      %v1048 = vpop.permute.xlu0 %1047
      %s1050 = sor.u32 256, 16
      %1051 = vbcast.lane.b32.xlu0 %v1041, %s1050
      %v1052 = vpop.permute.xlu0 %1051
      %v1053 = vlaneseq
      %v1054 = vshrl.u32 %v1053, 7
      %v1055 = vsub.s32 1, %v1054
      %v1056 = vrot.slane %v557, %v1055
      %1058 = vbcast.lane.b32.xlu0 %v1056, 256
      %v1059 = vpop.permute.xlu0 %1058
      %s1061 = sor.u32 256, 8
      %1062 = vbcast.lane.b32.xlu0 %v1056, %s1061
      %v1063 = vpop.permute.xlu0 %1062
      %s1065 = sor.u32 256, 16
      %1066 = vbcast.lane.b32.xlu0 %v1056, %s1065
      %v1067 = vpop.permute.xlu0 %1066
      %v1068 = vlaneseq
      %v1069 = vshrl.u32 %v1068, 7
      %v1070 = vsub.s32 2, %v1069
      %v1071 = vrot.slane %v557, %v1070
      %1073 = vbcast.lane.b32.xlu0 %v1071, 256
      %v1074 = vpop.permute.xlu0 %1073
      %s1076 = sor.u32 256, 8
      %1077 = vbcast.lane.b32.xlu0 %v1071, %s1076
      %v1078 = vpop.permute.xlu0 %1077
      %s1080 = sor.u32 256, 16
      %1081 = vbcast.lane.b32.xlu0 %v1071, %s1080
      %v1082 = vpop.permute.xlu0 %1081
      %v1083 = vlaneseq
      %v1084 = vshrl.u32 %v1083, 7
      %v1085 = vsub.s32 3, %v1084
      %v1086 = vrot.slane %v557, %v1085
      %1088 = vbcast.lane.b32.xlu0 %v1086, 256
      %v1089 = vpop.permute.xlu0 %1088
      %s1091 = sor.u32 256, 8
      %1092 = vbcast.lane.b32.xlu0 %v1086, %s1091
      %v1093 = vpop.permute.xlu0 %1092
      %s1095 = sor.u32 256, 16
      %1096 = vbcast.lane.b32.xlu0 %v1086, %s1095
      %v1097 = vpop.permute.xlu0 %1096
      %v1098 = vmul.f32 %v744, %v744
      %v1099 = vmul.f32 %v748, %v748
      %v1100 = vmul.f32 %v752, %v752
      %v1101 = vmul.f32 %v759, %v759
      %v1102 = vmul.f32 %v763, %v763
      %v1103 = vmul.f32 %v767, %v767
      %v1104 = vmul.f32 %v774, %v774
      %v1105 = vmul.f32 %v778, %v778
      %v1106 = vmul.f32 %v782, %v782
      %v1107 = vmul.f32 %v789, %v789
      %v1108 = vmul.f32 %v793, %v793
      %v1109 = vmul.f32 %v797, %v797
      %v1110 = vmul.f32 %v804, %v804
      %v1111 = vmul.f32 %v808, %v808
      %v1112 = vmul.f32 %v812, %v812
      %v1113 = vmul.f32 %v819, %v819
      %v1114 = vmul.f32 %v823, %v823
      %v1115 = vmul.f32 %v827, %v827
      %v1116 = vmul.f32 %v834, %v834
      %v1117 = vmul.f32 %v838, %v838
      %v1118 = vmul.f32 %v842, %v842
      %v1119 = vmul.f32 %v849, %v849
      %v1120 = vmul.f32 %v853, %v853
      %v1121 = vmul.f32 %v857, %v857
      %v1122 = vmul.f32 %v864, %v864
      %v1123 = vmul.f32 %v868, %v868
      %v1124 = vmul.f32 %v872, %v872
      %v1125 = vmul.f32 %v879, %v879
      %v1126 = vmul.f32 %v883, %v883
      %v1127 = vmul.f32 %v887, %v887
      %v1128 = vmul.f32 %v894, %v894
      %v1129 = vmul.f32 %v898, %v898
      %v1130 = vmul.f32 %v902, %v902
      %v1131 = vmul.f32 %v909, %v909
      %v1132 = vmul.f32 %v913, %v913
      %v1133 = vmul.f32 %v917, %v917
      %v1134 = vmul.f32 %v744, %v564
      %v1135 = vmul.f32 %v748, %v568
      %v1136 = vmul.f32 %v752, %v572
      %v1137 = vmul.f32 %v759, %v579
      %v1138 = vmul.f32 %v763, %v583
      %v1139 = vmul.f32 %v767, %v587
      %v1140 = vmul.f32 %v774, %v594
      %v1141 = vmul.f32 %v778, %v598
      %v1142 = vmul.f32 %v782, %v602
      %v1143 = vmul.f32 %v789, %v609
      %v1144 = vmul.f32 %v793, %v613
      %v1145 = vmul.f32 %v797, %v617
      %v1146 = vmul.f32 %v804, %v624
      %v1147 = vmul.f32 %v808, %v628
      %v1148 = vmul.f32 %v812, %v632
      %v1149 = vmul.f32 %v819, %v639
      %v1150 = vmul.f32 %v823, %v643
      %v1151 = vmul.f32 %v827, %v647
      %v1152 = vmul.f32 %v834, %v654
      %v1153 = vmul.f32 %v838, %v658
      %v1154 = vmul.f32 %v842, %v662
      %v1155 = vmul.f32 %v849, %v669
      %v1156 = vmul.f32 %v853, %v673
      %v1157 = vmul.f32 %v857, %v677
      %v1158 = vmul.f32 %v864, %v684
      %v1159 = vmul.f32 %v868, %v688
      %v1160 = vmul.f32 %v872, %v692
      %v1161 = vmul.f32 %v879, %v699
      %v1162 = vmul.f32 %v883, %v703
      %v1163 = vmul.f32 %v887, %v707
      %v1164 = vmul.f32 %v894, %v714
      %v1165 = vmul.f32 %v898, %v718
      %v1166 = vmul.f32 %v902, %v722
      %v1167 = vmul.f32 %v909, %v729
      %v1168 = vmul.f32 %v913, %v733
      %v1169 = vmul.f32 %v917, %v737
      %vm1170 = vcmask 97280
      %v1171 = vsel %vm1170, %v496, %v564
      %v1172 = vsel %vm1170, %v497, %v568
      %v1173 = vsel %vm1170, %v498, %v572
      %v1174 = vsel %vm1170, %v499, %v579
      %v1175 = vsel %vm1170, %v500, %v583
      %v1176 = vsel %vm1170, %v501, %v587
      %v1177 = vsel %vm1170, %v502, %v594
      %v1178 = vsel %vm1170, %v503, %v598
      %v1179 = vsel %vm1170, %v504, %v602
      %v1180 = vsel %vm1170, %v505, %v609
      %v1181 = vsel %vm1170, %v506, %v613
      %v1182 = vsel %vm1170, %v507, %v617
      %v1183 = vsel %vm1170, %v508, %v624
      %v1184 = vsel %vm1170, %v509, %v628
      %v1185 = vsel %vm1170, %v510, %v632
      %v1186 = vsel %vm1170, %v511, %v639
      %v1187 = vsel %vm1170, %v512, %v643
      %v1188 = vsel %vm1170, %v513, %v647
      %v1189 = vsel %vm1170, %v514, %v654
      %v1190 = vsel %vm1170, %v515, %v658
      %v1191 = vsel %vm1170, %v516, %v662
      %v1192 = vsel %vm1170, %v517, %v669
      %v1193 = vsel %vm1170, %v518, %v673
      %v1194 = vsel %vm1170, %v519, %v677
      %v1195 = vsel %vm1170, %v520, %v684
      %v1196 = vsel %vm1170, %v521, %v688
      %v1197 = vsel %vm1170, %v522, %v692
      %v1198 = vsel %vm1170, %v523, %v699
      %v1199 = vsel %vm1170, %v524, %v703
      %v1200 = vsel %vm1170, %v525, %v707
      %v1201 = vsel %vm1170, %v526, %v714
      %v1202 = vsel %vm1170, %v527, %v718
      %v1203 = vsel %vm1170, %v528, %v722
      %v1204 = vsel %vm1170, %v529, %v729
      %v1205 = vsel %vm1170, %v530, %v733
      %v1206 = vsel %vm1170, %v531, %v737
      %vm1207 = vcmask 105472
      %v1208 = vsel %vm1207, %v1171, %v744
      %v1209 = vsel %vm1207, %v1172, %v748
      %v1210 = vsel %vm1207, %v1173, %v752
      %v1211 = vsel %vm1207, %v1174, %v759
      %v1212 = vsel %vm1207, %v1175, %v763
      %v1213 = vsel %vm1207, %v1176, %v767
      %v1214 = vsel %vm1207, %v1177, %v774
      %v1215 = vsel %vm1207, %v1178, %v778
      %v1216 = vsel %vm1207, %v1179, %v782
      %v1217 = vsel %vm1207, %v1180, %v789
      %v1218 = vsel %vm1207, %v1181, %v793
      %v1219 = vsel %vm1207, %v1182, %v797
      %v1220 = vsel %vm1207, %v1183, %v804
      %v1221 = vsel %vm1207, %v1184, %v808
      %v1222 = vsel %vm1207, %v1185, %v812
      %v1223 = vsel %vm1207, %v1186, %v819
      %v1224 = vsel %vm1207, %v1187, %v823
      %v1225 = vsel %vm1207, %v1188, %v827
      %v1226 = vsel %vm1207, %v1189, %v834
      %v1227 = vsel %vm1207, %v1190, %v838
      %v1228 = vsel %vm1207, %v1191, %v842
      %v1229 = vsel %vm1207, %v1192, %v849
      %v1230 = vsel %vm1207, %v1193, %v853
      %v1231 = vsel %vm1207, %v1194, %v857
      %v1232 = vsel %vm1207, %v1195, %v864
      %v1233 = vsel %vm1207, %v1196, %v868
      %v1234 = vsel %vm1207, %v1197, %v872
      %v1235 = vsel %vm1207, %v1198, %v879
      %v1236 = vsel %vm1207, %v1199, %v883
      %v1237 = vsel %vm1207, %v1200, %v887
      %v1238 = vsel %vm1207, %v1201, %v894
      %v1239 = vsel %vm1207, %v1202, %v898
      %v1240 = vsel %vm1207, %v1203, %v902
      %v1241 = vsel %vm1207, %v1204, %v909
      %v1242 = vsel %vm1207, %v1205, %v913
      %v1243 = vsel %vm1207, %v1206, %v917
      %vm1244 = vcmask 113664
      %v1245 = vsel %vm1244, %v1208, %v1098
      %v1246 = vsel %vm1244, %v1209, %v1099
      %v1247 = vsel %vm1244, %v1210, %v1100
      %v1248 = vsel %vm1244, %v1211, %v1101
      %v1249 = vsel %vm1244, %v1212, %v1102
      %v1250 = vsel %vm1244, %v1213, %v1103
      %v1251 = vsel %vm1244, %v1214, %v1104
      %v1252 = vsel %vm1244, %v1215, %v1105
      %v1253 = vsel %vm1244, %v1216, %v1106
      %v1254 = vsel %vm1244, %v1217, %v1107
      %v1255 = vsel %vm1244, %v1218, %v1108
      %v1256 = vsel %vm1244, %v1219, %v1109
      %v1257 = vsel %vm1244, %v1220, %v1110
      %v1258 = vsel %vm1244, %v1221, %v1111
      %v1259 = vsel %vm1244, %v1222, %v1112
      %v1260 = vsel %vm1244, %v1223, %v1113
      %v1261 = vsel %vm1244, %v1224, %v1114
      %v1262 = vsel %vm1244, %v1225, %v1115
      %v1263 = vsel %vm1244, %v1226, %v1116
      %v1264 = vsel %vm1244, %v1227, %v1117
      %v1265 = vsel %vm1244, %v1228, %v1118
      %v1266 = vsel %vm1244, %v1229, %v1119
      %v1267 = vsel %vm1244, %v1230, %v1120
      %v1268 = vsel %vm1244, %v1231, %v1121
      %v1269 = vsel %vm1244, %v1232, %v1122
      %v1270 = vsel %vm1244, %v1233, %v1123
      %v1271 = vsel %vm1244, %v1234, %v1124
      %v1272 = vsel %vm1244, %v1235, %v1125
      %v1273 = vsel %vm1244, %v1236, %v1126
      %v1274 = vsel %vm1244, %v1237, %v1127
      %v1275 = vsel %vm1244, %v1238, %v1128
      %v1276 = vsel %vm1244, %v1239, %v1129
      %v1277 = vsel %vm1244, %v1240, %v1130
      %v1278 = vsel %vm1244, %v1241, %v1131
      %v1279 = vsel %vm1244, %v1242, %v1132
      %v1280 = vsel %vm1244, %v1243, %v1133
      %vm1281 = vcmask 121856
      %v1282 = vsel %vm1281, %v1245, %v1134
      %v1283 = vsel %vm1281, %v1246, %v1135
      %v1284 = vsel %vm1281, %v1247, %v1136
      %v1285 = vsel %vm1281, %v1248, %v1137
      %v1286 = vsel %vm1281, %v1249, %v1138
      %v1287 = vsel %vm1281, %v1250, %v1139
      %v1288 = vsel %vm1281, %v1251, %v1140
      %v1289 = vsel %vm1281, %v1252, %v1141
      %v1290 = vsel %vm1281, %v1253, %v1142
      %v1291 = vsel %vm1281, %v1254, %v1143
      %v1292 = vsel %vm1281, %v1255, %v1144
      %v1293 = vsel %vm1281, %v1256, %v1145
      %v1294 = vsel %vm1281, %v1257, %v1146
      %v1295 = vsel %vm1281, %v1258, %v1147
      %v1296 = vsel %vm1281, %v1259, %v1148
      %v1297 = vsel %vm1281, %v1260, %v1149
      %v1298 = vsel %vm1281, %v1261, %v1150
      %v1299 = vsel %vm1281, %v1262, %v1151
      %v1300 = vsel %vm1281, %v1263, %v1152
      %v1301 = vsel %vm1281, %v1264, %v1153
      %v1302 = vsel %vm1281, %v1265, %v1154
      %v1303 = vsel %vm1281, %v1266, %v1155
      %v1304 = vsel %vm1281, %v1267, %v1156
      %v1305 = vsel %vm1281, %v1268, %v1157
      %v1306 = vsel %vm1281, %v1269, %v1158
      %v1307 = vsel %vm1281, %v1270, %v1159
      %v1308 = vsel %vm1281, %v1271, %v1160
      %v1309 = vsel %vm1281, %v1272, %v1161
      %v1310 = vsel %vm1281, %v1273, %v1162
      %v1311 = vsel %vm1281, %v1274, %v1163
      %v1312 = vsel %vm1281, %v1275, %v1164
      %v1313 = vsel %vm1281, %v1276, %v1165
      %v1314 = vsel %vm1281, %v1277, %v1166
      %v1315 = vsel %vm1281, %v1278, %v1167
      %v1316 = vsel %vm1281, %v1279, %v1168
      %v1317 = vsel %vm1281, %v1280, %v1169
      %v1318 = vld [vmem:[%s336] sm:$0x1]
      %v1320 = vlaneseq
      %v1321 = vshrl.u32 %v1320, 7
      %v1322 = vsub.s32 0, %v1321
      %v1323 = vrot.slane %v1318, %v1322
      %v1325 = vmul.f32 %v1282, %v1323
      %v1326 = vmul.f32 %v1283, %v1323
      %v1327 = vmul.f32 %v1284, %v1323
      %v1328 = vmul.f32 %v1285, %v1323
      %v1329 = vmul.f32 %v1286, %v1323
      %v1330 = vmul.f32 %v1287, %v1323
      %v1331 = vmul.f32 %v1288, %v1323
      %v1332 = vmul.f32 %v1289, %v1323
      %v1333 = vmul.f32 %v1290, %v1323
      %v1334 = vmul.f32 %v1291, %v1323
      %v1335 = vmul.f32 %v1292, %v1323
      %v1336 = vmul.f32 %v1293, %v1323
      %v1337 = vmul.f32 %v1294, %v1323
      %v1338 = vmul.f32 %v1295, %v1323
      %v1339 = vmul.f32 %v1296, %v1323
      %v1340 = vmul.f32 %v1297, %v1323
      %v1341 = vmul.f32 %v1298, %v1323
      %v1342 = vmul.f32 %v1299, %v1323
      %v1343 = vmul.f32 %v1300, %v1323
      %v1344 = vmul.f32 %v1301, %v1323
      %v1345 = vmul.f32 %v1302, %v1323
      %v1346 = vmul.f32 %v1303, %v1323
      %v1347 = vmul.f32 %v1304, %v1323
      %v1348 = vmul.f32 %v1305, %v1323
      %v1349 = vmul.f32 %v1306, %v1323
      %v1350 = vmul.f32 %v1307, %v1323
      %v1351 = vmul.f32 %v1308, %v1323
      %v1352 = vmul.f32 %v1309, %v1323
      %v1353 = vmul.f32 %v1310, %v1323
      %v1354 = vmul.f32 %v1311, %v1323
      %v1355 = vmul.f32 %v1312, %v1323
      %v1356 = vmul.f32 %v1313, %v1323
      %v1357 = vmul.f32 %v1314, %v1323
      %v1358 = vmul.f32 %v1315, %v1323
      %v1359 = vmul.f32 %v1316, %v1323
      %v1360 = vmul.f32 %v1317, %v1323
      %v1361 = vld [vmem:[%s339] sm:$0x1]
      %v1363 = vlaneseq
      %v1364 = vshrl.u32 %v1363, 7
      %v1365 = vsub.s32 0, %v1364
      %v1366 = vrot.slane %v1361, %v1365
      %v1368 = vadd.f32 %v1325, %v1366
      %v1369 = vadd.f32 %v1326, %v1366
      %v1370 = vadd.f32 %v1327, %v1366
      %v1371 = vadd.f32 %v1328, %v1366
      %v1372 = vadd.f32 %v1329, %v1366
      %v1373 = vadd.f32 %v1330, %v1366
      %v1374 = vadd.f32 %v1331, %v1366
      %v1375 = vadd.f32 %v1332, %v1366
      %v1376 = vadd.f32 %v1333, %v1366
      %v1377 = vadd.f32 %v1334, %v1366
      %v1378 = vadd.f32 %v1335, %v1366
      %v1379 = vadd.f32 %v1336, %v1366
      %v1380 = vadd.f32 %v1337, %v1366
      %v1381 = vadd.f32 %v1338, %v1366
      %v1382 = vadd.f32 %v1339, %v1366
      %v1383 = vadd.f32 %v1340, %v1366
      %v1384 = vadd.f32 %v1341, %v1366
      %v1385 = vadd.f32 %v1342, %v1366
      %v1386 = vadd.f32 %v1343, %v1366
      %v1387 = vadd.f32 %v1344, %v1366
      %v1388 = vadd.f32 %v1345, %v1366
      %v1389 = vadd.f32 %v1346, %v1366
      %v1390 = vadd.f32 %v1347, %v1366
      %v1391 = vadd.f32 %v1348, %v1366
      %v1392 = vadd.f32 %v1349, %v1366
      %v1393 = vadd.f32 %v1350, %v1366
      %v1394 = vadd.f32 %v1351, %v1366
      %v1395 = vadd.f32 %v1352, %v1366
      %v1396 = vadd.f32 %v1353, %v1366
      %v1397 = vadd.f32 %v1354, %v1366
      %v1398 = vadd.f32 %v1355, %v1366
      %v1399 = vadd.f32 %v1356, %v1366
      %v1400 = vadd.f32 %v1357, %v1366
      %v1401 = vadd.f32 %v1358, %v1366
      %v1402 = vadd.f32 %v1359, %v1366
      %v1403 = vadd.f32 %v1360, %v1366
      %v1404 = vmul.f32 %v1368, 0.5
      %v1405 = vmul.f32 %v1369, 0.5
      %v1406 = vmul.f32 %v1370, 0.5
      %v1407 = vmul.f32 %v1371, 0.5
      %v1408 = vmul.f32 %v1372, 0.5
      %v1409 = vmul.f32 %v1373, 0.5
      %v1410 = vmul.f32 %v1374, 0.5
      %v1411 = vmul.f32 %v1375, 0.5
      %v1412 = vmul.f32 %v1376, 0.5
      %v1413 = vmul.f32 %v1377, 0.5
      %v1414 = vmul.f32 %v1378, 0.5
      %v1415 = vmul.f32 %v1379, 0.5
      %v1416 = vmul.f32 %v1380, 0.5
      %v1417 = vmul.f32 %v1381, 0.5
      %v1418 = vmul.f32 %v1382, 0.5
      %v1419 = vmul.f32 %v1383, 0.5
      %v1420 = vmul.f32 %v1384, 0.5
      %v1421 = vmul.f32 %v1385, 0.5
      %v1422 = vmul.f32 %v1386, 0.5
      %v1423 = vmul.f32 %v1387, 0.5
      %v1424 = vmul.f32 %v1388, 0.5
      %v1425 = vmul.f32 %v1389, 0.5
      %v1426 = vmul.f32 %v1390, 0.5
      %v1427 = vmul.f32 %v1391, 0.5
      %v1428 = vmul.f32 %v1392, 0.5
      %v1429 = vmul.f32 %v1393, 0.5
      %v1430 = vmul.f32 %v1394, 0.5
      %v1431 = vmul.f32 %v1395, 0.5
      %v1432 = vmul.f32 %v1396, 0.5
      %v1433 = vmul.f32 %v1397, 0.5
      %v1434 = vmul.f32 %v1398, 0.5
      %v1435 = vmul.f32 %v1399, 0.5
      %v1436 = vmul.f32 %v1400, 0.5
      %v1437 = vmul.f32 %v1401, 0.5
      %v1438 = vmul.f32 %v1402, 0.5
      %v1439 = vmul.f32 %v1403, 0.5
      %v1440 = vmul.f32 %v1368, 0.70710677
      %v1441 = vmul.f32 %v1369, 0.70710677
      %v1442 = vmul.f32 %v1370, 0.70710677
      %v1443 = vmul.f32 %v1371, 0.70710677
      %v1444 = vmul.f32 %v1372, 0.70710677
      %v1445 = vmul.f32 %v1373, 0.70710677
      %v1446 = vmul.f32 %v1374, 0.70710677
      %v1447 = vmul.f32 %v1375, 0.70710677
      %v1448 = vmul.f32 %v1376, 0.70710677
      %v1449 = vmul.f32 %v1377, 0.70710677
      %v1450 = vmul.f32 %v1378, 0.70710677
      %v1451 = vmul.f32 %v1379, 0.70710677
      %v1452 = vmul.f32 %v1380, 0.70710677
      %v1453 = vmul.f32 %v1381, 0.70710677
      %v1454 = vmul.f32 %v1382, 0.70710677
      %v1455 = vmul.f32 %v1383, 0.70710677
      %v1456 = vmul.f32 %v1384, 0.70710677
      %v1457 = vmul.f32 %v1385, 0.70710677
      %v1458 = vmul.f32 %v1386, 0.70710677
      %v1459 = vmul.f32 %v1387, 0.70710677
      %v1460 = vmul.f32 %v1388, 0.70710677
      %v1461 = vmul.f32 %v1389, 0.70710677
      %v1462 = vmul.f32 %v1390, 0.70710677
      %v1463 = vmul.f32 %v1391, 0.70710677
      %v1464 = vmul.f32 %v1392, 0.70710677
      %v1465 = vmul.f32 %v1393, 0.70710677
      %v1466 = vmul.f32 %v1394, 0.70710677
      %v1467 = vmul.f32 %v1395, 0.70710677
      %v1468 = vmul.f32 %v1396, 0.70710677
      %v1469 = vmul.f32 %v1397, 0.70710677
      %v1470 = vmul.f32 %v1398, 0.70710677
      %v1471 = vmul.f32 %v1399, 0.70710677
      %v1472 = vmul.f32 %v1400, 0.70710677
      %v1473 = vmul.f32 %v1401, 0.70710677
      %v1474 = vmul.f32 %v1402, 0.70710677
      %v1475 = vmul.f32 %v1403, 0.70710677
      %v1476 = vand.u32 2147483647, %v1440
      %v1477 = vand.u32 2147483647, %v1441
      %v1478 = vand.u32 2147483647, %v1442
      %v1479 = vand.u32 2147483647, %v1443
      %v1480 = vand.u32 2147483647, %v1444
      %v1481 = vand.u32 2147483647, %v1445
      %v1482 = vand.u32 2147483647, %v1446
      %v1483 = vand.u32 2147483647, %v1447
      %v1484 = vand.u32 2147483647, %v1448
      %v1485 = vand.u32 2147483647, %v1449
      %v1486 = vand.u32 2147483647, %v1450
      %v1487 = vand.u32 2147483647, %v1451
      %v1488 = vand.u32 2147483647, %v1452
      %v1489 = vand.u32 2147483647, %v1453
      %v1490 = vand.u32 2147483647, %v1454
      %v1491 = vand.u32 2147483647, %v1455
      %v1492 = vand.u32 2147483647, %v1456
      %v1493 = vand.u32 2147483647, %v1457
      %v1494 = vand.u32 2147483647, %v1458
      %v1495 = vand.u32 2147483647, %v1459
      %v1496 = vand.u32 2147483647, %v1460
      %v1497 = vand.u32 2147483647, %v1461
      %v1498 = vand.u32 2147483647, %v1462
      %v1499 = vand.u32 2147483647, %v1463
      %v1500 = vand.u32 2147483647, %v1464
      %v1501 = vand.u32 2147483647, %v1465
      %v1502 = vand.u32 2147483647, %v1466
      %v1503 = vand.u32 2147483647, %v1467
      %v1504 = vand.u32 2147483647, %v1468
      %v1505 = vand.u32 2147483647, %v1469
      %v1506 = vand.u32 2147483647, %v1470
      %v1507 = vand.u32 2147483647, %v1471
      %v1508 = vand.u32 2147483647, %v1472
      %v1509 = vand.u32 2147483647, %v1473
      %v1510 = vand.u32 2147483647, %v1474
      %v1511 = vand.u32 2147483647, %v1475
      %v1512 = vmul.f32 %v1476, 0.3275911
      %v1513 = vmul.f32 %v1477, 0.3275911
      %v1514 = vmul.f32 %v1478, 0.3275911
      %v1515 = vmul.f32 %v1479, 0.3275911
      %v1516 = vmul.f32 %v1480, 0.3275911
      %v1517 = vmul.f32 %v1481, 0.3275911
      %v1518 = vmul.f32 %v1482, 0.3275911
      %v1519 = vmul.f32 %v1483, 0.3275911
      %v1520 = vmul.f32 %v1484, 0.3275911
      %v1521 = vmul.f32 %v1485, 0.3275911
      %v1522 = vmul.f32 %v1486, 0.3275911
      %v1523 = vmul.f32 %v1487, 0.3275911
      %v1524 = vmul.f32 %v1488, 0.3275911
      %v1525 = vmul.f32 %v1489, 0.3275911
      %v1526 = vmul.f32 %v1490, 0.3275911
      %v1527 = vmul.f32 %v1491, 0.3275911
      %v1528 = vmul.f32 %v1492, 0.3275911
      %v1529 = vmul.f32 %v1493, 0.3275911
      %v1530 = vmul.f32 %v1494, 0.3275911
      %v1531 = vmul.f32 %v1495, 0.3275911
      %v1532 = vmul.f32 %v1496, 0.3275911
      %v1533 = vmul.f32 %v1497, 0.3275911
      %v1534 = vmul.f32 %v1498, 0.3275911
      %v1535 = vmul.f32 %v1499, 0.3275911
      %v1536 = vmul.f32 %v1500, 0.3275911
      %v1537 = vmul.f32 %v1501, 0.3275911
      %v1538 = vmul.f32 %v1502, 0.3275911
      %v1539 = vmul.f32 %v1503, 0.3275911
      %v1540 = vmul.f32 %v1504, 0.3275911
      %v1541 = vmul.f32 %v1505, 0.3275911
      %v1542 = vmul.f32 %v1506, 0.3275911
      %v1543 = vmul.f32 %v1507, 0.3275911
      %v1544 = vmul.f32 %v1508, 0.3275911
      %v1545 = vmul.f32 %v1509, 0.3275911
      %v1546 = vmul.f32 %v1510, 0.3275911
      %v1547 = vmul.f32 %v1511, 0.3275911
      %v1548 = vadd.f32 %v1512, 1.0
      %v1549 = vadd.f32 %v1513, 1.0
      %v1550 = vadd.f32 %v1514, 1.0
      %v1551 = vadd.f32 %v1515, 1.0
      %v1552 = vadd.f32 %v1516, 1.0
      %v1553 = vadd.f32 %v1517, 1.0
      %v1554 = vadd.f32 %v1518, 1.0
      %v1555 = vadd.f32 %v1519, 1.0
      %v1556 = vadd.f32 %v1520, 1.0
      %v1557 = vadd.f32 %v1521, 1.0
      %v1558 = vadd.f32 %v1522, 1.0
      %v1559 = vadd.f32 %v1523, 1.0
      %v1560 = vadd.f32 %v1524, 1.0
      %v1561 = vadd.f32 %v1525, 1.0
      %v1562 = vadd.f32 %v1526, 1.0
      %v1563 = vadd.f32 %v1527, 1.0
      %v1564 = vadd.f32 %v1528, 1.0
      %v1565 = vadd.f32 %v1529, 1.0
      %v1566 = vadd.f32 %v1530, 1.0
      %v1567 = vadd.f32 %v1531, 1.0
      %v1568 = vadd.f32 %v1532, 1.0
      %v1569 = vadd.f32 %v1533, 1.0
      %v1570 = vadd.f32 %v1534, 1.0
      %v1571 = vadd.f32 %v1535, 1.0
      %v1572 = vadd.f32 %v1536, 1.0
      %v1573 = vadd.f32 %v1537, 1.0
      %v1574 = vadd.f32 %v1538, 1.0
      %v1575 = vadd.f32 %v1539, 1.0
      %v1576 = vadd.f32 %v1540, 1.0
      %v1577 = vadd.f32 %v1541, 1.0
      %v1578 = vadd.f32 %v1542, 1.0
      %v1579 = vadd.f32 %v1543, 1.0
      %v1580 = vadd.f32 %v1544, 1.0
      %v1581 = vadd.f32 %v1545, 1.0
      %v1582 = vadd.f32 %v1546, 1.0
      %v1583 = vadd.f32 %v1547, 1.0
      %v1584 = vrcp.pop %v1548
      %v1585 = vrcp.pop %v1549
      %v1586 = vrcp.pop %v1550
      %v1587 = vrcp.pop %v1551
      %v1588 = vrcp.pop %v1552
      %v1589 = vrcp.pop %v1553
      %v1590 = vrcp.pop %v1554
      %v1591 = vrcp.pop %v1555
      %v1592 = vrcp.pop %v1556
      %v1593 = vrcp.pop %v1557
      %v1594 = vrcp.pop %v1558
      %v1595 = vrcp.pop %v1559
      %v1596 = vrcp.pop %v1560
      %v1597 = vrcp.pop %v1561
      %v1598 = vrcp.pop %v1562
      %v1599 = vrcp.pop %v1563
      %v1600 = vrcp.pop %v1564
      %v1601 = vrcp.pop %v1565
      %v1602 = vrcp.pop %v1566
      %v1603 = vrcp.pop %v1567
      %v1604 = vrcp.pop %v1568
      %v1605 = vrcp.pop %v1569
      %v1606 = vrcp.pop %v1570
      %v1607 = vrcp.pop %v1571
      %v1608 = vrcp.pop %v1572
      %v1609 = vrcp.pop %v1573
      %v1610 = vrcp.pop %v1574
      %v1611 = vrcp.pop %v1575
      %v1612 = vrcp.pop %v1576
      %v1613 = vrcp.pop %v1577
      %v1614 = vrcp.pop %v1578
      %v1615 = vrcp.pop %v1579
      %v1616 = vrcp.pop %v1580
      %v1617 = vrcp.pop %v1581
      %v1618 = vrcp.pop %v1582
      %v1619 = vrcp.pop %v1583
      %v1620 = vmul.f32 %v1584, 1.0614054
      %v1621 = vmul.f32 %v1585, 1.0614054
      %v1622 = vmul.f32 %v1586, 1.0614054
      %v1623 = vmul.f32 %v1587, 1.0614054
      %v1624 = vmul.f32 %v1588, 1.0614054
      %v1625 = vmul.f32 %v1589, 1.0614054
      %v1626 = vmul.f32 %v1590, 1.0614054
      %v1627 = vmul.f32 %v1591, 1.0614054
      %v1628 = vmul.f32 %v1592, 1.0614054
      %v1629 = vmul.f32 %v1593, 1.0614054
      %v1630 = vmul.f32 %v1594, 1.0614054
      %v1631 = vmul.f32 %v1595, 1.0614054
      %v1632 = vmul.f32 %v1596, 1.0614054
      %v1633 = vmul.f32 %v1597, 1.0614054
      %v1634 = vmul.f32 %v1598, 1.0614054
      %v1635 = vmul.f32 %v1599, 1.0614054
      %v1636 = vmul.f32 %v1600, 1.0614054
      %v1637 = vmul.f32 %v1601, 1.0614054
      %v1638 = vmul.f32 %v1602, 1.0614054
      %v1639 = vmul.f32 %v1603, 1.0614054
      %v1640 = vmul.f32 %v1604, 1.0614054
      %v1641 = vmul.f32 %v1605, 1.0614054
      %v1642 = vmul.f32 %v1606, 1.0614054
      %v1643 = vmul.f32 %v1607, 1.0614054
      %v1644 = vmul.f32 %v1608, 1.0614054
      %v1645 = vmul.f32 %v1609, 1.0614054
      %v1646 = vmul.f32 %v1610, 1.0614054
      %v1647 = vmul.f32 %v1611, 1.0614054
      %v1648 = vmul.f32 %v1612, 1.0614054
      %v1649 = vmul.f32 %v1613, 1.0614054
      %v1650 = vmul.f32 %v1614, 1.0614054
      %v1651 = vmul.f32 %v1615, 1.0614054
      %v1652 = vmul.f32 %v1616, 1.0614054
      %v1653 = vmul.f32 %v1617, 1.0614054
      %v1654 = vmul.f32 %v1618, 1.0614054
      %v1655 = vmul.f32 %v1619, 1.0614054
      %v1656 = vadd.f32 %v1620, -1.4531521
      %v1657 = vadd.f32 %v1621, -1.4531521
      %v1658 = vadd.f32 %v1622, -1.4531521
      %v1659 = vadd.f32 %v1623, -1.4531521
      %v1660 = vadd.f32 %v1624, -1.4531521
      %v1661 = vadd.f32 %v1625, -1.4531521
      %v1662 = vadd.f32 %v1626, -1.4531521
      %v1663 = vadd.f32 %v1627, -1.4531521
      %v1664 = vadd.f32 %v1628, -1.4531521
      %v1665 = vadd.f32 %v1629, -1.4531521
      %v1666 = vadd.f32 %v1630, -1.4531521
      %v1667 = vadd.f32 %v1631, -1.4531521
      %v1668 = vadd.f32 %v1632, -1.4531521
      %v1669 = vadd.f32 %v1633, -1.4531521
      %v1670 = vadd.f32 %v1634, -1.4531521
      %v1671 = vadd.f32 %v1635, -1.4531521
      %v1672 = vadd.f32 %v1636, -1.4531521
      %v1673 = vadd.f32 %v1637, -1.4531521
      %v1674 = vadd.f32 %v1638, -1.4531521
      %v1675 = vadd.f32 %v1639, -1.4531521
      %v1676 = vadd.f32 %v1640, -1.4531521
      %v1677 = vadd.f32 %v1641, -1.4531521
      %v1678 = vadd.f32 %v1642, -1.4531521
      %v1679 = vadd.f32 %v1643, -1.4531521
      %v1680 = vadd.f32 %v1644, -1.4531521
      %v1681 = vadd.f32 %v1645, -1.4531521
      %v1682 = vadd.f32 %v1646, -1.4531521
      %v1683 = vadd.f32 %v1647, -1.4531521
      %v1684 = vadd.f32 %v1648, -1.4531521
      %v1685 = vadd.f32 %v1649, -1.4531521
      %v1686 = vadd.f32 %v1650, -1.4531521
      %v1687 = vadd.f32 %v1651, -1.4531521
      %v1688 = vadd.f32 %v1652, -1.4531521
      %v1689 = vadd.f32 %v1653, -1.4531521
      %v1690 = vadd.f32 %v1654, -1.4531521
      %v1691 = vadd.f32 %v1655, -1.4531521
      %v1692 = vmul.f32 %v1656, %v1584
      %v1693 = vmul.f32 %v1657, %v1585
      %v1694 = vmul.f32 %v1658, %v1586
      %v1695 = vmul.f32 %v1659, %v1587
      %v1696 = vmul.f32 %v1660, %v1588
      %v1697 = vmul.f32 %v1661, %v1589
      %v1698 = vmul.f32 %v1662, %v1590
      %v1699 = vmul.f32 %v1663, %v1591
      %v1700 = vmul.f32 %v1664, %v1592
      %v1701 = vmul.f32 %v1665, %v1593
      %v1702 = vmul.f32 %v1666, %v1594
      %v1703 = vmul.f32 %v1667, %v1595
      %v1704 = vmul.f32 %v1668, %v1596
      %v1705 = vmul.f32 %v1669, %v1597
      %v1706 = vmul.f32 %v1670, %v1598
      %v1707 = vmul.f32 %v1671, %v1599
      %v1708 = vmul.f32 %v1672, %v1600
      %v1709 = vmul.f32 %v1673, %v1601
      %v1710 = vmul.f32 %v1674, %v1602
      %v1711 = vmul.f32 %v1675, %v1603
      %v1712 = vmul.f32 %v1676, %v1604
      %v1713 = vmul.f32 %v1677, %v1605
      %v1714 = vmul.f32 %v1678, %v1606
      %v1715 = vmul.f32 %v1679, %v1607
      %v1716 = vmul.f32 %v1680, %v1608
      %v1717 = vmul.f32 %v1681, %v1609
      %v1718 = vmul.f32 %v1682, %v1610
      %v1719 = vmul.f32 %v1683, %v1611
      %v1720 = vmul.f32 %v1684, %v1612
      %v1721 = vmul.f32 %v1685, %v1613
      %v1722 = vmul.f32 %v1686, %v1614
      %v1723 = vmul.f32 %v1687, %v1615
      %v1724 = vmul.f32 %v1688, %v1616
      %v1725 = vmul.f32 %v1689, %v1617
      %v1726 = vmul.f32 %v1690, %v1618
      %v1727 = vmul.f32 %v1691, %v1619
      %v1728 = vadd.f32 %v1692, 1.4214138
      %v1729 = vadd.f32 %v1693, 1.4214138
      %v1730 = vadd.f32 %v1694, 1.4214138
      %v1731 = vadd.f32 %v1695, 1.4214138
      %v1732 = vadd.f32 %v1696, 1.4214138
      %v1733 = vadd.f32 %v1697, 1.4214138
      %v1734 = vadd.f32 %v1698, 1.4214138
      %v1735 = vadd.f32 %v1699, 1.4214138
      %v1736 = vadd.f32 %v1700, 1.4214138
      %v1737 = vadd.f32 %v1701, 1.4214138
      %v1738 = vadd.f32 %v1702, 1.4214138
      %v1739 = vadd.f32 %v1703, 1.4214138
      %v1740 = vadd.f32 %v1704, 1.4214138
      %v1741 = vadd.f32 %v1705, 1.4214138
      %v1742 = vadd.f32 %v1706, 1.4214138
      %v1743 = vadd.f32 %v1707, 1.4214138
      %v1744 = vadd.f32 %v1708, 1.4214138
      %v1745 = vadd.f32 %v1709, 1.4214138
      %v1746 = vadd.f32 %v1710, 1.4214138
      %v1747 = vadd.f32 %v1711, 1.4214138
      %v1748 = vadd.f32 %v1712, 1.4214138
      %v1749 = vadd.f32 %v1713, 1.4214138
      %v1750 = vadd.f32 %v1714, 1.4214138
      %v1751 = vadd.f32 %v1715, 1.4214138
      %v1752 = vadd.f32 %v1716, 1.4214138
      %v1753 = vadd.f32 %v1717, 1.4214138
      %v1754 = vadd.f32 %v1718, 1.4214138
      %v1755 = vadd.f32 %v1719, 1.4214138
      %v1756 = vadd.f32 %v1720, 1.4214138
      %v1757 = vadd.f32 %v1721, 1.4214138
      %v1758 = vadd.f32 %v1722, 1.4214138
      %v1759 = vadd.f32 %v1723, 1.4214138
      %v1760 = vadd.f32 %v1724, 1.4214138
      %v1761 = vadd.f32 %v1725, 1.4214138
      %v1762 = vadd.f32 %v1726, 1.4214138
      %v1763 = vadd.f32 %v1727, 1.4214138
      %v1764 = vmul.f32 %v1728, %v1584
      %v1765 = vmul.f32 %v1729, %v1585
      %v1766 = vmul.f32 %v1730, %v1586
      %v1767 = vmul.f32 %v1731, %v1587
      %v1768 = vmul.f32 %v1732, %v1588
      %v1769 = vmul.f32 %v1733, %v1589
      %v1770 = vmul.f32 %v1734, %v1590
      %v1771 = vmul.f32 %v1735, %v1591
      %v1772 = vmul.f32 %v1736, %v1592
      %v1773 = vmul.f32 %v1737, %v1593
      %v1774 = vmul.f32 %v1738, %v1594
      %v1775 = vmul.f32 %v1739, %v1595
      %v1776 = vmul.f32 %v1740, %v1596
      %v1777 = vmul.f32 %v1741, %v1597
      %v1778 = vmul.f32 %v1742, %v1598
      %v1779 = vmul.f32 %v1743, %v1599
      %v1780 = vmul.f32 %v1744, %v1600
      %v1781 = vmul.f32 %v1745, %v1601
      %v1782 = vmul.f32 %v1746, %v1602
      %v1783 = vmul.f32 %v1747, %v1603
      %v1784 = vmul.f32 %v1748, %v1604
      %v1785 = vmul.f32 %v1749, %v1605
      %v1786 = vmul.f32 %v1750, %v1606
      %v1787 = vmul.f32 %v1751, %v1607
      %v1788 = vmul.f32 %v1752, %v1608
      %v1789 = vmul.f32 %v1753, %v1609
      %v1790 = vmul.f32 %v1754, %v1610
      %v1791 = vmul.f32 %v1755, %v1611
      %v1792 = vmul.f32 %v1756, %v1612
      %v1793 = vmul.f32 %v1757, %v1613
      %v1794 = vmul.f32 %v1758, %v1614
      %v1795 = vmul.f32 %v1759, %v1615
      %v1796 = vmul.f32 %v1760, %v1616
      %v1797 = vmul.f32 %v1761, %v1617
      %v1798 = vmul.f32 %v1762, %v1618
      %v1799 = vmul.f32 %v1763, %v1619
      %v1800 = vadd.f32 %v1764, -0.28449672
      %v1801 = vadd.f32 %v1765, -0.28449672
      %v1802 = vadd.f32 %v1766, -0.28449672
      %v1803 = vadd.f32 %v1767, -0.28449672
      %v1804 = vadd.f32 %v1768, -0.28449672
      %v1805 = vadd.f32 %v1769, -0.28449672
      %v1806 = vadd.f32 %v1770, -0.28449672
      %v1807 = vadd.f32 %v1771, -0.28449672
      %v1808 = vadd.f32 %v1772, -0.28449672
      %v1809 = vadd.f32 %v1773, -0.28449672
      %v1810 = vadd.f32 %v1774, -0.28449672
      %v1811 = vadd.f32 %v1775, -0.28449672
      %v1812 = vadd.f32 %v1776, -0.28449672
      %v1813 = vadd.f32 %v1777, -0.28449672
      %v1814 = vadd.f32 %v1778, -0.28449672
      %v1815 = vadd.f32 %v1779, -0.28449672
      %v1816 = vadd.f32 %v1780, -0.28449672
      %v1817 = vadd.f32 %v1781, -0.28449672
      %v1818 = vadd.f32 %v1782, -0.28449672
      %v1819 = vadd.f32 %v1783, -0.28449672
      %v1820 = vadd.f32 %v1784, -0.28449672
      %v1821 = vadd.f32 %v1785, -0.28449672
      %v1822 = vadd.f32 %v1786, -0.28449672
      %v1823 = vadd.f32 %v1787, -0.28449672
      %v1824 = vadd.f32 %v1788, -0.28449672
      %v1825 = vadd.f32 %v1789, -0.28449672
      %v1826 = vadd.f32 %v1790, -0.28449672
      %v1827 = vadd.f32 %v1791, -0.28449672
      %v1828 = vadd.f32 %v1792, -0.28449672
      %v1829 = vadd.f32 %v1793, -0.28449672
      %v1830 = vadd.f32 %v1794, -0.28449672
      %v1831 = vadd.f32 %v1795, -0.28449672
      %v1832 = vadd.f32 %v1796, -0.28449672
      %v1833 = vadd.f32 %v1797, -0.28449672
      %v1834 = vadd.f32 %v1798, -0.28449672
      %v1835 = vadd.f32 %v1799, -0.28449672
      %v1836 = vmul.f32 %v1800, %v1584
      %v1837 = vmul.f32 %v1801, %v1585
      %v1838 = vmul.f32 %v1802, %v1586
      %v1839 = vmul.f32 %v1803, %v1587
      %v1840 = vmul.f32 %v1804, %v1588
      %v1841 = vmul.f32 %v1805, %v1589
      %v1842 = vmul.f32 %v1806, %v1590
      %v1843 = vmul.f32 %v1807, %v1591
      %v1844 = vmul.f32 %v1808, %v1592
      %v1845 = vmul.f32 %v1809, %v1593
      %v1846 = vmul.f32 %v1810, %v1594
      %v1847 = vmul.f32 %v1811, %v1595
      %v1848 = vmul.f32 %v1812, %v1596
      %v1849 = vmul.f32 %v1813, %v1597
      %v1850 = vmul.f32 %v1814, %v1598
      %v1851 = vmul.f32 %v1815, %v1599
      %v1852 = vmul.f32 %v1816, %v1600
      %v1853 = vmul.f32 %v1817, %v1601
      %v1854 = vmul.f32 %v1818, %v1602
      %v1855 = vmul.f32 %v1819, %v1603
      %v1856 = vmul.f32 %v1820, %v1604
      %v1857 = vmul.f32 %v1821, %v1605
      %v1858 = vmul.f32 %v1822, %v1606
      %v1859 = vmul.f32 %v1823, %v1607
      %v1860 = vmul.f32 %v1824, %v1608
      %v1861 = vmul.f32 %v1825, %v1609
      %v1862 = vmul.f32 %v1826, %v1610
      %v1863 = vmul.f32 %v1827, %v1611
      %v1864 = vmul.f32 %v1828, %v1612
      %v1865 = vmul.f32 %v1829, %v1613
      %v1866 = vmul.f32 %v1830, %v1614
      %v1867 = vmul.f32 %v1831, %v1615
      %v1868 = vmul.f32 %v1832, %v1616
      %v1869 = vmul.f32 %v1833, %v1617
      %v1870 = vmul.f32 %v1834, %v1618
      %v1871 = vmul.f32 %v1835, %v1619
      %v1872 = vadd.f32 %v1836, 0.2548296
      %v1873 = vadd.f32 %v1837, 0.2548296
      %v1874 = vadd.f32 %v1838, 0.2548296
      %v1875 = vadd.f32 %v1839, 0.2548296
      %v1876 = vadd.f32 %v1840, 0.2548296
      %v1877 = vadd.f32 %v1841, 0.2548296
      %v1878 = vadd.f32 %v1842, 0.2548296
      %v1879 = vadd.f32 %v1843, 0.2548296
      %v1880 = vadd.f32 %v1844, 0.2548296
      %v1881 = vadd.f32 %v1845, 0.2548296
      %v1882 = vadd.f32 %v1846, 0.2548296
      %v1883 = vadd.f32 %v1847, 0.2548296
      %v1884 = vadd.f32 %v1848, 0.2548296
      %v1885 = vadd.f32 %v1849, 0.2548296
      %v1886 = vadd.f32 %v1850, 0.2548296
      %v1887 = vadd.f32 %v1851, 0.2548296
      %v1888 = vadd.f32 %v1852, 0.2548296
      %v1889 = vadd.f32 %v1853, 0.2548296
      %v1890 = vadd.f32 %v1854, 0.2548296
      %v1891 = vadd.f32 %v1855, 0.2548296
      %v1892 = vadd.f32 %v1856, 0.2548296
      %v1893 = vadd.f32 %v1857, 0.2548296
      %v1894 = vadd.f32 %v1858, 0.2548296
      %v1895 = vadd.f32 %v1859, 0.2548296
      %v1896 = vadd.f32 %v1860, 0.2548296
      %v1897 = vadd.f32 %v1861, 0.2548296
      %v1898 = vadd.f32 %v1862, 0.2548296
      %v1899 = vadd.f32 %v1863, 0.2548296
      %v1900 = vadd.f32 %v1864, 0.2548296
      %v1901 = vadd.f32 %v1865, 0.2548296
      %v1902 = vadd.f32 %v1866, 0.2548296
      %v1903 = vadd.f32 %v1867, 0.2548296
      %v1904 = vadd.f32 %v1868, 0.2548296
      %v1905 = vadd.f32 %v1869, 0.2548296
      %v1906 = vadd.f32 %v1870, 0.2548296
      %v1907 = vadd.f32 %v1871, 0.2548296
      %v1908 = vmul.f32 %v1872, %v1584
      %v1909 = vmul.f32 %v1873, %v1585
      %v1910 = vmul.f32 %v1874, %v1586
      %v1911 = vmul.f32 %v1875, %v1587
      %v1912 = vmul.f32 %v1876, %v1588
      %v1913 = vmul.f32 %v1877, %v1589
      %v1914 = vmul.f32 %v1878, %v1590
      %v1915 = vmul.f32 %v1879, %v1591
      %v1916 = vmul.f32 %v1880, %v1592
      %v1917 = vmul.f32 %v1881, %v1593
      %v1918 = vmul.f32 %v1882, %v1594
      %v1919 = vmul.f32 %v1883, %v1595
      %v1920 = vmul.f32 %v1884, %v1596
      %v1921 = vmul.f32 %v1885, %v1597
      %v1922 = vmul.f32 %v1886, %v1598
      %v1923 = vmul.f32 %v1887, %v1599
      %v1924 = vmul.f32 %v1888, %v1600
      %v1925 = vmul.f32 %v1889, %v1601
      %v1926 = vmul.f32 %v1890, %v1602
      %v1927 = vmul.f32 %v1891, %v1603
      %v1928 = vmul.f32 %v1892, %v1604
      %v1929 = vmul.f32 %v1893, %v1605
      %v1930 = vmul.f32 %v1894, %v1606
      %v1931 = vmul.f32 %v1895, %v1607
      %v1932 = vmul.f32 %v1896, %v1608
      %v1933 = vmul.f32 %v1897, %v1609
      %v1934 = vmul.f32 %v1898, %v1610
      %v1935 = vmul.f32 %v1899, %v1611
      %v1936 = vmul.f32 %v1900, %v1612
      %v1937 = vmul.f32 %v1901, %v1613
      %v1938 = vmul.f32 %v1902, %v1614
      %v1939 = vmul.f32 %v1903, %v1615
      %v1940 = vmul.f32 %v1904, %v1616
      %v1941 = vmul.f32 %v1905, %v1617
      %v1942 = vmul.f32 %v1906, %v1618
      %v1943 = vmul.f32 %v1907, %v1619
      %v1944 = vsub.f32 0.0, %v1476
      %v1945 = vsub.f32 0.0, %v1477
      %v1946 = vsub.f32 0.0, %v1478
      %v1947 = vsub.f32 0.0, %v1479
      %v1948 = vsub.f32 0.0, %v1480
      %v1949 = vsub.f32 0.0, %v1481
      %v1950 = vsub.f32 0.0, %v1482
      %v1951 = vsub.f32 0.0, %v1483
      %v1952 = vsub.f32 0.0, %v1484
      %v1953 = vsub.f32 0.0, %v1485
      %v1954 = vsub.f32 0.0, %v1486
      %v1955 = vsub.f32 0.0, %v1487
      %v1956 = vsub.f32 0.0, %v1488
      %v1957 = vsub.f32 0.0, %v1489
      %v1958 = vsub.f32 0.0, %v1490
      %v1959 = vsub.f32 0.0, %v1491
      %v1960 = vsub.f32 0.0, %v1492
      %v1961 = vsub.f32 0.0, %v1493
      %v1962 = vsub.f32 0.0, %v1494
      %v1963 = vsub.f32 0.0, %v1495
      %v1964 = vsub.f32 0.0, %v1496
      %v1965 = vsub.f32 0.0, %v1497
      %v1966 = vsub.f32 0.0, %v1498
      %v1967 = vsub.f32 0.0, %v1499
      %v1968 = vsub.f32 0.0, %v1500
      %v1969 = vsub.f32 0.0, %v1501
      %v1970 = vsub.f32 0.0, %v1502
      %v1971 = vsub.f32 0.0, %v1503
      %v1972 = vsub.f32 0.0, %v1504
      %v1973 = vsub.f32 0.0, %v1505
      %v1974 = vsub.f32 0.0, %v1506
      %v1975 = vsub.f32 0.0, %v1507
      %v1976 = vsub.f32 0.0, %v1508
      %v1977 = vsub.f32 0.0, %v1509
      %v1978 = vsub.f32 0.0, %v1510
      %v1979 = vsub.f32 0.0, %v1511
      %v1980 = vmul.f32 %v1944, %v1476
      %v1981 = vmul.f32 %v1945, %v1477
      %v1982 = vmul.f32 %v1946, %v1478
      %v1983 = vmul.f32 %v1947, %v1479
      %v1984 = vmul.f32 %v1948, %v1480
      %v1985 = vmul.f32 %v1949, %v1481
      %v1986 = vmul.f32 %v1950, %v1482
      %v1987 = vmul.f32 %v1951, %v1483
      %v1988 = vmul.f32 %v1952, %v1484
      %v1989 = vmul.f32 %v1953, %v1485
      %v1990 = vmul.f32 %v1954, %v1486
      %v1991 = vmul.f32 %v1955, %v1487
      %v1992 = vmul.f32 %v1956, %v1488
      %v1993 = vmul.f32 %v1957, %v1489
      %v1994 = vmul.f32 %v1958, %v1490
      %v1995 = vmul.f32 %v1959, %v1491
      %v1996 = vmul.f32 %v1960, %v1492
      %v1997 = vmul.f32 %v1961, %v1493
      %v1998 = vmul.f32 %v1962, %v1494
      %v1999 = vmul.f32 %v1963, %v1495
      %v2000 = vmul.f32 %v1964, %v1496
      %v2001 = vmul.f32 %v1965, %v1497
      %v2002 = vmul.f32 %v1966, %v1498
      %v2003 = vmul.f32 %v1967, %v1499
      %v2004 = vmul.f32 %v1968, %v1500
      %v2005 = vmul.f32 %v1969, %v1501
      %v2006 = vmul.f32 %v1970, %v1502
      %v2007 = vmul.f32 %v1971, %v1503
      %v2008 = vmul.f32 %v1972, %v1504
      %v2009 = vmul.f32 %v1973, %v1505
      %v2010 = vmul.f32 %v1974, %v1506
      %v2011 = vmul.f32 %v1975, %v1507
      %v2012 = vmul.f32 %v1976, %v1508
      %v2013 = vmul.f32 %v1977, %v1509
      %v2014 = vmul.f32 %v1978, %v1510
      %v2015 = vmul.f32 %v1979, %v1511
      %v2016 = vmul.f32 %v1980, 1.442695
      %v2017 = vpow.pop %v2016
      %v2018 = vmul.f32 %v1981, 1.442695
      %v2019 = vpow.pop %v2018
      %v2020 = vmul.f32 %v1982, 1.442695
      %v2021 = vpow.pop %v2020
      %v2022 = vmul.f32 %v1983, 1.442695
      %v2023 = vpow.pop %v2022
      %v2024 = vmul.f32 %v1984, 1.442695
      %v2025 = vpow.pop %v2024
      %v2026 = vmul.f32 %v1985, 1.442695
      %v2027 = vpow.pop %v2026
      %v2028 = vmul.f32 %v1986, 1.442695
      %v2029 = vpow.pop %v2028
      %v2030 = vmul.f32 %v1987, 1.442695
      %v2031 = vpow.pop %v2030
      %v2032 = vmul.f32 %v1988, 1.442695
      %v2033 = vpow.pop %v2032
      %v2034 = vmul.f32 %v1989, 1.442695
      %v2035 = vpow.pop %v2034
      %v2036 = vmul.f32 %v1990, 1.442695
      %v2037 = vpow.pop %v2036
      %v2038 = vmul.f32 %v1991, 1.442695
      %v2039 = vpow.pop %v2038
      %v2040 = vmul.f32 %v1992, 1.442695
      %v2041 = vpow.pop %v2040
      %v2042 = vmul.f32 %v1993, 1.442695
      %v2043 = vpow.pop %v2042
      %v2044 = vmul.f32 %v1994, 1.442695
      %v2045 = vpow.pop %v2044
      %v2046 = vmul.f32 %v1995, 1.442695
      %v2047 = vpow.pop %v2046
      %v2048 = vmul.f32 %v1996, 1.442695
      %v2049 = vpow.pop %v2048
      %v2050 = vmul.f32 %v1997, 1.442695
      %v2051 = vpow.pop %v2050
      %v2052 = vmul.f32 %v1998, 1.442695
      %v2053 = vpow.pop %v2052
      %v2054 = vmul.f32 %v1999, 1.442695
      %v2055 = vpow.pop %v2054
      %v2056 = vmul.f32 %v2000, 1.442695
      %v2057 = vpow.pop %v2056
      %v2058 = vmul.f32 %v2001, 1.442695
      %v2059 = vpow.pop %v2058
      %v2060 = vmul.f32 %v2002, 1.442695
      %v2061 = vpow.pop %v2060
      %v2062 = vmul.f32 %v2003, 1.442695
      %v2063 = vpow.pop %v2062
      %v2064 = vmul.f32 %v2004, 1.442695
      %v2065 = vpow.pop %v2064
      %v2066 = vmul.f32 %v2005, 1.442695
      %v2067 = vpow.pop %v2066
      %v2068 = vmul.f32 %v2006, 1.442695
      %v2069 = vpow.pop %v2068
      %v2070 = vmul.f32 %v2007, 1.442695
      %v2071 = vpow.pop %v2070
      %v2072 = vmul.f32 %v2008, 1.442695
      %v2073 = vpow.pop %v2072
      %v2074 = vmul.f32 %v2009, 1.442695
      %v2075 = vpow.pop %v2074
      %v2076 = vmul.f32 %v2010, 1.442695
      %v2077 = vpow.pop %v2076
      %v2078 = vmul.f32 %v2011, 1.442695
      %v2079 = vpow.pop %v2078
      %v2080 = vmul.f32 %v2012, 1.442695
      %v2081 = vpow.pop %v2080
      %v2082 = vmul.f32 %v2013, 1.442695
      %v2083 = vpow.pop %v2082
      %v2084 = vmul.f32 %v2014, 1.442695
      %v2085 = vpow.pop %v2084
      %v2086 = vmul.f32 %v2015, 1.442695
      %v2087 = vpow.pop %v2086
      %v2088 = vmul.f32 %v1908, %v2017
      %v2089 = vmul.f32 %v1909, %v2019
      %v2090 = vmul.f32 %v1910, %v2021
      %v2091 = vmul.f32 %v1911, %v2023
      %v2092 = vmul.f32 %v1912, %v2025
      %v2093 = vmul.f32 %v1913, %v2027
      %v2094 = vmul.f32 %v1914, %v2029
      %v2095 = vmul.f32 %v1915, %v2031
      %v2096 = vmul.f32 %v1916, %v2033
      %v2097 = vmul.f32 %v1917, %v2035
      %v2098 = vmul.f32 %v1918, %v2037
      %v2099 = vmul.f32 %v1919, %v2039
      %v2100 = vmul.f32 %v1920, %v2041
      %v2101 = vmul.f32 %v1921, %v2043
      %v2102 = vmul.f32 %v1922, %v2045
      %v2103 = vmul.f32 %v1923, %v2047
      %v2104 = vmul.f32 %v1924, %v2049
      %v2105 = vmul.f32 %v1925, %v2051
      %v2106 = vmul.f32 %v1926, %v2053
      %v2107 = vmul.f32 %v1927, %v2055
      %v2108 = vmul.f32 %v1928, %v2057
      %v2109 = vmul.f32 %v1929, %v2059
      %v2110 = vmul.f32 %v1930, %v2061
      %v2111 = vmul.f32 %v1931, %v2063
      %v2112 = vmul.f32 %v1932, %v2065
      %v2113 = vmul.f32 %v1933, %v2067
      %v2114 = vmul.f32 %v1934, %v2069
      %v2115 = vmul.f32 %v1935, %v2071
      %v2116 = vmul.f32 %v1936, %v2073
      %v2117 = vmul.f32 %v1937, %v2075
      %v2118 = vmul.f32 %v1938, %v2077
      %v2119 = vmul.f32 %v1939, %v2079
      %v2120 = vmul.f32 %v1940, %v2081
      %v2121 = vmul.f32 %v1941, %v2083
      %v2122 = vmul.f32 %v1942, %v2085
      %v2123 = vmul.f32 %v1943, %v2087
      %v2124 = vsub.f32 1.0, %v2088
      %v2125 = vsub.f32 1.0, %v2089
      %v2126 = vsub.f32 1.0, %v2090
      %v2127 = vsub.f32 1.0, %v2091
      %v2128 = vsub.f32 1.0, %v2092
      %v2129 = vsub.f32 1.0, %v2093
      %v2130 = vsub.f32 1.0, %v2094
      %v2131 = vsub.f32 1.0, %v2095
      %v2132 = vsub.f32 1.0, %v2096
      %v2133 = vsub.f32 1.0, %v2097
      %v2134 = vsub.f32 1.0, %v2098
      %v2135 = vsub.f32 1.0, %v2099
      %v2136 = vsub.f32 1.0, %v2100
      %v2137 = vsub.f32 1.0, %v2101
      %v2138 = vsub.f32 1.0, %v2102
      %v2139 = vsub.f32 1.0, %v2103
      %v2140 = vsub.f32 1.0, %v2104
      %v2141 = vsub.f32 1.0, %v2105
      %v2142 = vsub.f32 1.0, %v2106
      %v2143 = vsub.f32 1.0, %v2107
      %v2144 = vsub.f32 1.0, %v2108
      %v2145 = vsub.f32 1.0, %v2109
      %v2146 = vsub.f32 1.0, %v2110
      %v2147 = vsub.f32 1.0, %v2111
      %v2148 = vsub.f32 1.0, %v2112
      %v2149 = vsub.f32 1.0, %v2113
      %v2150 = vsub.f32 1.0, %v2114
      %v2151 = vsub.f32 1.0, %v2115
      %v2152 = vsub.f32 1.0, %v2116
      %v2153 = vsub.f32 1.0, %v2117
      %v2154 = vsub.f32 1.0, %v2118
      %v2155 = vsub.f32 1.0, %v2119
      %v2156 = vsub.f32 1.0, %v2120
      %v2157 = vsub.f32 1.0, %v2121
      %v2158 = vsub.f32 1.0, %v2122
      %v2159 = vsub.f32 1.0, %v2123
      %vm2160 = vcmp.ge.f32.partialorder %v1440, 0.0
      %vm2161 = vcmp.ge.f32.partialorder %v1441, 0.0
      %vm2162 = vcmp.ge.f32.partialorder %v1442, 0.0
      %vm2163 = vcmp.ge.f32.partialorder %v1443, 0.0
      %vm2164 = vcmp.ge.f32.partialorder %v1444, 0.0
      %vm2165 = vcmp.ge.f32.partialorder %v1445, 0.0
      %vm2166 = vcmp.ge.f32.partialorder %v1446, 0.0
      %vm2167 = vcmp.ge.f32.partialorder %v1447, 0.0
      %vm2168 = vcmp.ge.f32.partialorder %v1448, 0.0
      %vm2169 = vcmp.ge.f32.partialorder %v1449, 0.0
      %vm2170 = vcmp.ge.f32.partialorder %v1450, 0.0
      %vm2171 = vcmp.ge.f32.partialorder %v1451, 0.0
      %vm2172 = vcmp.ge.f32.partialorder %v1452, 0.0
      %vm2173 = vcmp.ge.f32.partialorder %v1453, 0.0
      %vm2174 = vcmp.ge.f32.partialorder %v1454, 0.0
      %vm2175 = vcmp.ge.f32.partialorder %v1455, 0.0
      %vm2176 = vcmp.ge.f32.partialorder %v1456, 0.0
      %vm2177 = vcmp.ge.f32.partialorder %v1457, 0.0
      %vm2178 = vcmp.ge.f32.partialorder %v1458, 0.0
      %vm2179 = vcmp.ge.f32.partialorder %v1459, 0.0
      %vm2180 = vcmp.ge.f32.partialorder %v1460, 0.0
      %vm2181 = vcmp.ge.f32.partialorder %v1461, 0.0
      %vm2182 = vcmp.ge.f32.partialorder %v1462, 0.0
      %vm2183 = vcmp.ge.f32.partialorder %v1463, 0.0
      %vm2184 = vcmp.ge.f32.partialorder %v1464, 0.0
      %vm2185 = vcmp.ge.f32.partialorder %v1465, 0.0
      %vm2186 = vcmp.ge.f32.partialorder %v1466, 0.0
      %vm2187 = vcmp.ge.f32.partialorder %v1467, 0.0
      %vm2188 = vcmp.ge.f32.partialorder %v1468, 0.0
      %vm2189 = vcmp.ge.f32.partialorder %v1469, 0.0
      %vm2190 = vcmp.ge.f32.partialorder %v1470, 0.0
      %vm2191 = vcmp.ge.f32.partialorder %v1471, 0.0
      %vm2192 = vcmp.ge.f32.partialorder %v1472, 0.0
      %vm2193 = vcmp.ge.f32.partialorder %v1473, 0.0
      %vm2194 = vcmp.ge.f32.partialorder %v1474, 0.0
      %vm2195 = vcmp.ge.f32.partialorder %v1475, 0.0
      %v2196 = vsub.f32 0.0, %v2124
      %v2197 = vsub.f32 0.0, %v2125
      %v2198 = vsub.f32 0.0, %v2126
      %v2199 = vsub.f32 0.0, %v2127
      %v2200 = vsub.f32 0.0, %v2128
      %v2201 = vsub.f32 0.0, %v2129
      %v2202 = vsub.f32 0.0, %v2130
      %v2203 = vsub.f32 0.0, %v2131
      %v2204 = vsub.f32 0.0, %v2132
      %v2205 = vsub.f32 0.0, %v2133
      %v2206 = vsub.f32 0.0, %v2134
      %v2207 = vsub.f32 0.0, %v2135
      %v2208 = vsub.f32 0.0, %v2136
      %v2209 = vsub.f32 0.0, %v2137
      %v2210 = vsub.f32 0.0, %v2138
      %v2211 = vsub.f32 0.0, %v2139
      %v2212 = vsub.f32 0.0, %v2140
      %v2213 = vsub.f32 0.0, %v2141
      %v2214 = vsub.f32 0.0, %v2142
      %v2215 = vsub.f32 0.0, %v2143
      %v2216 = vsub.f32 0.0, %v2144
      %v2217 = vsub.f32 0.0, %v2145
      %v2218 = vsub.f32 0.0, %v2146
      %v2219 = vsub.f32 0.0, %v2147
      %v2220 = vsub.f32 0.0, %v2148
      %v2221 = vsub.f32 0.0, %v2149
      %v2222 = vsub.f32 0.0, %v2150
      %v2223 = vsub.f32 0.0, %v2151
      %v2224 = vsub.f32 0.0, %v2152
      %v2225 = vsub.f32 0.0, %v2153
      %v2226 = vsub.f32 0.0, %v2154
      %v2227 = vsub.f32 0.0, %v2155
      %v2228 = vsub.f32 0.0, %v2156
      %v2229 = vsub.f32 0.0, %v2157
      %v2230 = vsub.f32 0.0, %v2158
      %v2231 = vsub.f32 0.0, %v2159
      %v2232 = vsel %vm2160, %v2124, %v2196
      %v2233 = vsel %vm2161, %v2125, %v2197
      %v2234 = vsel %vm2162, %v2126, %v2198
      %v2235 = vsel %vm2163, %v2127, %v2199
      %v2236 = vsel %vm2164, %v2128, %v2200
      %v2237 = vsel %vm2165, %v2129, %v2201
      %v2238 = vsel %vm2166, %v2130, %v2202
      %v2239 = vsel %vm2167, %v2131, %v2203
      %v2240 = vsel %vm2168, %v2132, %v2204
      %v2241 = vsel %vm2169, %v2133, %v2205
      %v2242 = vsel %vm2170, %v2134, %v2206
      %v2243 = vsel %vm2171, %v2135, %v2207
      %v2244 = vsel %vm2172, %v2136, %v2208
      %v2245 = vsel %vm2173, %v2137, %v2209
      %v2246 = vsel %vm2174, %v2138, %v2210
      %v2247 = vsel %vm2175, %v2139, %v2211
      %v2248 = vsel %vm2176, %v2140, %v2212
      %v2249 = vsel %vm2177, %v2141, %v2213
      %v2250 = vsel %vm2178, %v2142, %v2214
      %v2251 = vsel %vm2179, %v2143, %v2215
      %v2252 = vsel %vm2180, %v2144, %v2216
      %v2253 = vsel %vm2181, %v2145, %v2217
      %v2254 = vsel %vm2182, %v2146, %v2218
      %v2255 = vsel %vm2183, %v2147, %v2219
      %v2256 = vsel %vm2184, %v2148, %v2220
      %v2257 = vsel %vm2185, %v2149, %v2221
      %v2258 = vsel %vm2186, %v2150, %v2222
      %v2259 = vsel %vm2187, %v2151, %v2223
      %v2260 = vsel %vm2188, %v2152, %v2224
      %v2261 = vsel %vm2189, %v2153, %v2225
      %v2262 = vsel %vm2190, %v2154, %v2226
      %v2263 = vsel %vm2191, %v2155, %v2227
      %v2264 = vsel %vm2192, %v2156, %v2228
      %v2265 = vsel %vm2193, %v2157, %v2229
      %v2266 = vsel %vm2194, %v2158, %v2230
      %v2267 = vsel %vm2195, %v2159, %v2231
      %v2268 = vadd.f32 %v2232, 1.0
      %v2269 = vadd.f32 %v2233, 1.0
      %v2270 = vadd.f32 %v2234, 1.0
      %v2271 = vadd.f32 %v2235, 1.0
      %v2272 = vadd.f32 %v2236, 1.0
      %v2273 = vadd.f32 %v2237, 1.0
      %v2274 = vadd.f32 %v2238, 1.0
      %v2275 = vadd.f32 %v2239, 1.0
      %v2276 = vadd.f32 %v2240, 1.0
      %v2277 = vadd.f32 %v2241, 1.0
      %v2278 = vadd.f32 %v2242, 1.0
      %v2279 = vadd.f32 %v2243, 1.0
      %v2280 = vadd.f32 %v2244, 1.0
      %v2281 = vadd.f32 %v2245, 1.0
      %v2282 = vadd.f32 %v2246, 1.0
      %v2283 = vadd.f32 %v2247, 1.0
      %v2284 = vadd.f32 %v2248, 1.0
      %v2285 = vadd.f32 %v2249, 1.0
      %v2286 = vadd.f32 %v2250, 1.0
      %v2287 = vadd.f32 %v2251, 1.0
      %v2288 = vadd.f32 %v2252, 1.0
      %v2289 = vadd.f32 %v2253, 1.0
      %v2290 = vadd.f32 %v2254, 1.0
      %v2291 = vadd.f32 %v2255, 1.0
      %v2292 = vadd.f32 %v2256, 1.0
      %v2293 = vadd.f32 %v2257, 1.0
      %v2294 = vadd.f32 %v2258, 1.0
      %v2295 = vadd.f32 %v2259, 1.0
      %v2296 = vadd.f32 %v2260, 1.0
      %v2297 = vadd.f32 %v2261, 1.0
      %v2298 = vadd.f32 %v2262, 1.0
      %v2299 = vadd.f32 %v2263, 1.0
      %v2300 = vadd.f32 %v2264, 1.0
      %v2301 = vadd.f32 %v2265, 1.0
      %v2302 = vadd.f32 %v2266, 1.0
      %v2303 = vadd.f32 %v2267, 1.0
      %v2304 = vmul.f32 %v1404, %v2268
      %v2305 = vmul.f32 %v1405, %v2269
      %v2306 = vmul.f32 %v1406, %v2270
      %v2307 = vmul.f32 %v1407, %v2271
      %v2308 = vmul.f32 %v1408, %v2272
      %v2309 = vmul.f32 %v1409, %v2273
      %v2310 = vmul.f32 %v1410, %v2274
      %v2311 = vmul.f32 %v1411, %v2275
      %v2312 = vmul.f32 %v1412, %v2276
      %v2313 = vmul.f32 %v1413, %v2277
      %v2314 = vmul.f32 %v1414, %v2278
      %v2315 = vmul.f32 %v1415, %v2279
      %v2316 = vmul.f32 %v1416, %v2280
      %v2317 = vmul.f32 %v1417, %v2281
      %v2318 = vmul.f32 %v1418, %v2282
      %v2319 = vmul.f32 %v1419, %v2283
      %v2320 = vmul.f32 %v1420, %v2284
      %v2321 = vmul.f32 %v1421, %v2285
      %v2322 = vmul.f32 %v1422, %v2286
      %v2323 = vmul.f32 %v1423, %v2287
      %v2324 = vmul.f32 %v1424, %v2288
      %v2325 = vmul.f32 %v1425, %v2289
      %v2326 = vmul.f32 %v1426, %v2290
      %v2327 = vmul.f32 %v1427, %v2291
      %v2328 = vmul.f32 %v1428, %v2292
      %v2329 = vmul.f32 %v1429, %v2293
      %v2330 = vmul.f32 %v1430, %v2294
      %v2331 = vmul.f32 %v1431, %v2295
      %v2332 = vmul.f32 %v1432, %v2296
      %v2333 = vmul.f32 %v1433, %v2297
      %v2334 = vmul.f32 %v1434, %v2298
      %v2335 = vmul.f32 %v1435, %v2299
      %v2336 = vmul.f32 %v1436, %v2300
      %v2337 = vmul.f32 %v1437, %v2301
      %v2338 = vmul.f32 %v1438, %v2302
      %v2339 = vmul.f32 %v1439, %v2303
      %v2340 = vmul.f32 %v2304, %v924
      %v2341 = vmul.f32 %v2305, %v928
      %v2342 = vmul.f32 %v2306, %v932
      %v2343 = vmul.f32 %v2307, %v939
      %v2344 = vmul.f32 %v2308, %v943
      %v2345 = vmul.f32 %v2309, %v947
      %v2346 = vmul.f32 %v2310, %v954
      %v2347 = vmul.f32 %v2311, %v958
      %v2348 = vmul.f32 %v2312, %v962
      %v2349 = vmul.f32 %v2313, %v969
      %v2350 = vmul.f32 %v2314, %v973
      %v2351 = vmul.f32 %v2315, %v977
      %v2352 = vmul.f32 %v2316, %v984
      %v2353 = vmul.f32 %v2317, %v988
      %v2354 = vmul.f32 %v2318, %v992
      %v2355 = vmul.f32 %v2319, %v999
      %v2356 = vmul.f32 %v2320, %v1003
      %v2357 = vmul.f32 %v2321, %v1007
      %v2358 = vmul.f32 %v2322, %v1014
      %v2359 = vmul.f32 %v2323, %v1018
      %v2360 = vmul.f32 %v2324, %v1022
      %v2361 = vmul.f32 %v2325, %v1029
      %v2362 = vmul.f32 %v2326, %v1033
      %v2363 = vmul.f32 %v2327, %v1037
      %v2364 = vmul.f32 %v2328, %v1044
      %v2365 = vmul.f32 %v2329, %v1048
      %v2366 = vmul.f32 %v2330, %v1052
      %v2367 = vmul.f32 %v2331, %v1059
      %v2368 = vmul.f32 %v2332, %v1063
      %v2369 = vmul.f32 %v2333, %v1067
      %v2370 = vmul.f32 %v2334, %v1074
      %v2371 = vmul.f32 %v2335, %v1078
      %v2372 = vmul.f32 %v2336, %v1082
      %v2373 = vmul.f32 %v2337, %v1089
      %v2374 = vmul.f32 %v2338, %v1093
      %v2375 = vmul.f32 %v2339, %v1097
      %v2376 = vpack.c.bf16 %v2341, %v2340
      %v2377 = vpack.c.bf16 %v2343, %v2342
      %v2378 = vpack.c.bf16 %v2345, %v2344
      %v2379 = vpack.c.bf16 %v2347, %v2346
      %v2380 = vpack.c.bf16 %v2349, %v2348
      %v2381 = vpack.c.bf16 %v2351, %v2350
      %v2382 = vpack.c.bf16 %v2353, %v2352
      %v2383 = vpack.c.bf16 %v2355, %v2354
      %v2384 = vpack.c.bf16 %v2357, %v2356
      %v2385 = vpack.c.bf16 %v2359, %v2358
      %v2386 = vpack.c.bf16 %v2361, %v2360
      %v2387 = vpack.c.bf16 %v2363, %v2362
      %v2388 = vpack.c.bf16 %v2365, %v2364
      %v2389 = vpack.c.bf16 %v2367, %v2366
      %v2390 = vpack.c.bf16 %v2369, %v2368
      %v2391 = vpack.c.bf16 %v2371, %v2370
      %v2392 = vpack.c.bf16 %v2373, %v2372
      %v2393 = vpack.c.bf16 %v2375, %v2374
      %v2412 = vunpack.c.l.b16 %v2376
      %v2413 = vunpack.c.h.b16 %v2376
      %v2414 = vunpack.c.l.b16 %v2377
      %v2415 = vunpack.c.h.b16 %v2377
      %v2416 = vunpack.c.l.b16 %v2378
      %v2417 = vunpack.c.h.b16 %v2378
      %v2418 = vunpack.c.l.b16 %v2379
      %v2419 = vunpack.c.h.b16 %v2379
      %v2420 = vunpack.c.l.b16 %v2380
      %v2421 = vunpack.c.h.b16 %v2380
      %v2422 = vunpack.c.l.b16 %v2381
      %v2423 = vunpack.c.h.b16 %v2381
      %v2424 = vunpack.c.l.b16 %v2382
      %v2425 = vunpack.c.h.b16 %v2382
      %v2426 = vunpack.c.l.b16 %v2383
      %v2427 = vunpack.c.h.b16 %v2383
      %v2428 = vunpack.c.l.b16 %v2384
      %v2429 = vunpack.c.h.b16 %v2384
      %v2430 = vunpack.c.l.b16 %v2385
      %v2431 = vunpack.c.h.b16 %v2385
      %v2432 = vunpack.c.l.b16 %v2386
      %v2433 = vunpack.c.h.b16 %v2386
      %v2434 = vunpack.c.l.b16 %v2387
      %v2435 = vunpack.c.h.b16 %v2387
      %v2436 = vunpack.c.l.b16 %v2388
      %v2437 = vunpack.c.h.b16 %v2388
      %v2438 = vunpack.c.l.b16 %v2389
      %v2439 = vunpack.c.h.b16 %v2389
      %v2440 = vunpack.c.l.b16 %v2390
      %v2441 = vunpack.c.h.b16 %v2390
      %v2442 = vunpack.c.l.b16 %v2391
      %v2443 = vunpack.c.h.b16 %v2391
      %v2444 = vunpack.c.l.b16 %v2392
      %v2445 = vunpack.c.h.b16 %v2392
      %v2446 = vunpack.c.l.b16 %v2393
      %v2447 = vunpack.c.h.b16 %v2393
      %v2448 = vpack.c.b16 %v2412, %v2412
      %v2449 = vpack.c.b16 %v2413, %v2413
      %v2450 = vpack.c.b16 %v2414, %v2414
      %v2451 = vpack.c.b16 %v2415, %v2415
      %v2452 = vpack.c.b16 %v2416, %v2416
      %v2453 = vpack.c.b16 %v2417, %v2417
      %v2454 = vpack.c.b16 %v2418, %v2418
      %v2455 = vpack.c.b16 %v2419, %v2419
      %v2456 = vpack.c.b16 %v2420, %v2420
      %v2457 = vpack.c.b16 %v2421, %v2421
      %v2458 = vpack.c.b16 %v2422, %v2422
      %v2459 = vpack.c.b16 %v2423, %v2423
      %v2460 = vpack.c.b16 %v2424, %v2424
      %v2461 = vpack.c.b16 %v2425, %v2425
      %v2462 = vpack.c.b16 %v2426, %v2426
      %v2463 = vpack.c.b16 %v2427, %v2427
      %v2464 = vpack.c.b16 %v2428, %v2428
      %v2465 = vpack.c.b16 %v2429, %v2429
      %v2466 = vpack.c.b16 %v2430, %v2430
      %v2467 = vpack.c.b16 %v2431, %v2431
      %v2468 = vpack.c.b16 %v2432, %v2432
      %v2469 = vpack.c.b16 %v2433, %v2433
      %v2470 = vpack.c.b16 %v2434, %v2434
      %v2471 = vpack.c.b16 %v2435, %v2435
      %v2472 = vpack.c.b16 %v2436, %v2436
      %v2473 = vpack.c.b16 %v2437, %v2437
      %v2474 = vpack.c.b16 %v2438, %v2438
      %v2475 = vpack.c.b16 %v2439, %v2439
      %v2476 = vpack.c.b16 %v2440, %v2440
      %v2477 = vpack.c.b16 %v2441, %v2441
      %v2478 = vpack.c.b16 %v2442, %v2442
      %v2479 = vpack.c.b16 %v2443, %v2443
      %v2480 = vpack.c.b16 %v2444, %v2444
      %v2481 = vpack.c.b16 %v2445, %v2445
      %v2482 = vpack.c.b16 %v2446, %v2446
      %v2483 = vpack.c.b16 %v2447, %v2447
      %vm2520 = vcmask 125952
      %2521 = vst.msk [vmem:[#allocation2] sm:$0xf] %vm2520, %v2448
      %2522 = vst.msk [vmem:[#allocation2 + $0x4] sm:$0xf] %vm2520, %v2449
      %2523 = vst.msk [vmem:[#allocation2 + $0x8] sm:$0xf] %vm2520, %v2450
      %2524 = vst.msk [vmem:[#allocation2 + $0xc] sm:$0xf] %vm2520, %v2451
      %2525 = vst.msk [vmem:[#allocation2 + $0x10] sm:$0xf] %vm2520, %v2452
      %2526 = vst.msk [vmem:[#allocation2 + $0x14] sm:$0xf] %vm2520, %v2453
      %2527 = vst.msk [vmem:[#allocation2 + $0x18] sm:$0xf] %vm2520, %v2454
      %2528 = vst.msk [vmem:[#allocation2 + $0x1c] sm:$0xf] %vm2520, %v2455
      %2529 = vst.msk [vmem:[#allocation2 + $0x20] sm:$0xf] %vm2520, %v2456
      %2530 = vst.msk [vmem:[#allocation2 + $0x24] sm:$0xf] %vm2520, %v2457
      %2531 = vst.msk [vmem:[#allocation2 + $0x28] sm:$0xf] %vm2520, %v2458
      %2532 = vst.msk [vmem:[#allocation2 + $0x2c] sm:$0xf] %vm2520, %v2459
      %2533 = vst.msk [vmem:[#allocation2 + $0x30] sm:$0xf] %vm2520, %v2460
      %2534 = vst.msk [vmem:[#allocation2 + $0x34] sm:$0xf] %vm2520, %v2461
      %2535 = vst.msk [vmem:[#allocation2 + $0x38] sm:$0xf] %vm2520, %v2462
      %2536 = vst.msk [vmem:[#allocation2 + $0x3c] sm:$0xf] %vm2520, %v2463
      %2537 = vst.msk [vmem:[#allocation2 + $0x40] sm:$0xf] %vm2520, %v2464
      %2538 = vst.msk [vmem:[#allocation2 + $0x44] sm:$0xf] %vm2520, %v2465
      %2539 = vst.msk [vmem:[#allocation2 + $0x48] sm:$0xf] %vm2520, %v2466
      %2540 = vst.msk [vmem:[#allocation2 + $0x4c] sm:$0xf] %vm2520, %v2467
      %2541 = vst.msk [vmem:[#allocation2 + $0x50] sm:$0xf] %vm2520, %v2468
      %2542 = vst.msk [vmem:[#allocation2 + $0x54] sm:$0xf] %vm2520, %v2469
      %2543 = vst.msk [vmem:[#allocation2 + $0x58] sm:$0xf] %vm2520, %v2470
      %2544 = vst.msk [vmem:[#allocation2 + $0x5c] sm:$0xf] %vm2520, %v2471
      %2545 = vst.msk [vmem:[#allocation2 + $0x60] sm:$0xf] %vm2520, %v2472
      %2546 = vst.msk [vmem:[#allocation2 + $0x64] sm:$0xf] %vm2520, %v2473
      %2547 = vst.msk [vmem:[#allocation2 + $0x68] sm:$0xf] %vm2520, %v2474
      %2548 = vst.msk [vmem:[#allocation2 + $0x6c] sm:$0xf] %vm2520, %v2475
      %2549 = vst.msk [vmem:[#allocation2 + $0x70] sm:$0xf] %vm2520, %v2476
      %2550 = vst.msk [vmem:[#allocation2 + $0x74] sm:$0xf] %vm2520, %v2477
      %2551 = vst.msk [vmem:[#allocation2 + $0x78] sm:$0xf] %vm2520, %v2478
      %2552 = vst.msk [vmem:[#allocation2 + $0x7c] sm:$0xf] %vm2520, %v2479
      %2553 = vst.msk [vmem:[#allocation2 + $0x80] sm:$0xf] %vm2520, %v2480
      %2554 = vst.msk [vmem:[#allocation2 + $0x84] sm:$0xf] %vm2520, %v2481
      %2555 = vst.msk [vmem:[#allocation2 + $0x88] sm:$0xf] %vm2520, %v2482
      %2556 = vst.msk [vmem:[#allocation2 + $0x8c] sm:$0xf] %vm2520, %v2483
      %2557 = vst.msk [vmem:[#allocation2 + $0x90] sm:$0xf] %vm2520, 0
      %v2558 = vld [vmem:[#allocation2] sm:$0xf]
      %v2559 = vld [vmem:[#allocation2 + $0x4] sm:$0xf]
      %v2560 = vld [vmem:[#allocation2 + $0x8] sm:$0xf]
      %v2561 = vld [vmem:[#allocation2 + $0xc] sm:$0xf]
      %v2562 = vld [vmem:[#allocation2 + $0x10] sm:$0xf]
      %v2563 = vld [vmem:[#allocation2 + $0x14] sm:$0xf]
      %v2564 = vld [vmem:[#allocation2 + $0x18] sm:$0xf]
      %v2565 = vld [vmem:[#allocation2 + $0x1c] sm:$0xf]
      %v2566 = vld [vmem:[#allocation2 + $0x20] sm:$0xf]
      %v2567 = vld [vmem:[#allocation2 + $0x24] sm:$0xf]
      %v2568 = vld [vmem:[#allocation2 + $0x28] sm:$0xf]
      %v2569 = vld [vmem:[#allocation2 + $0x2c] sm:$0xf]
      %v2570 = vld [vmem:[#allocation2 + $0x30] sm:$0xf]
      %v2571 = vld [vmem:[#allocation2 + $0x34] sm:$0xf]
      %v2572 = vld [vmem:[#allocation2 + $0x38] sm:$0xf]
      %v2573 = vld [vmem:[#allocation2 + $0x3c] sm:$0xf]
      %v2574 = vld [vmem:[#allocation2 + $0x40] sm:$0xf]
      %v2575 = vld [vmem:[#allocation2 + $0x44] sm:$0xf]
      %v2576 = vld [vmem:[#allocation2 + $0x48] sm:$0xf]
      %v2577 = vld [vmem:[#allocation2 + $0x4c] sm:$0xf]
      %v2578 = vld [vmem:[#allocation2 + $0x50] sm:$0xf]
      %v2579 = vld [vmem:[#allocation2 + $0x54] sm:$0xf]
      %v2580 = vld [vmem:[#allocation2 + $0x58] sm:$0xf]
      %v2581 = vld [vmem:[#allocation2 + $0x5c] sm:$0xf]
      %v2582 = vld [vmem:[#allocation2 + $0x60] sm:$0x1]
      %v2583 = vld [vmem:[#allocation2] sm:$0xe]
      %v2584 = vld [vmem:[#allocation2 + $0x60] sm:$0x3]
      %v2585 = vld [vmem:[#allocation2] sm:$0xc]
      %v2610 = vunpack.c.l.b16 %v2558
      %v2611 = vunpack.c.l.b16 %v2559
      %v2612 = vunpack.c.l.b16 %v2560
      %v2613 = vunpack.c.l.b16 %v2561
      %v2614 = vunpack.c.l.b16 %v2562
      %v2615 = vunpack.c.l.b16 %v2563
      %v2616 = vunpack.c.l.b16 %v2564
      %v2617 = vunpack.c.l.b16 %v2565
      %v2618 = vunpack.c.l.b16 %v2566
      %v2619 = vunpack.c.l.b16 %v2567
      %v2620 = vunpack.c.l.b16 %v2568
      %v2621 = vunpack.c.l.b16 %v2569
      %v2622 = vunpack.c.l.b16 %v2570
      %v2623 = vunpack.c.l.b16 %v2571
      %v2624 = vunpack.c.l.b16 %v2572
      %v2625 = vunpack.c.l.b16 %v2573
      %v2626 = vunpack.c.l.b16 %v2574
      %v2627 = vunpack.c.l.b16 %v2575
      %v2628 = vunpack.c.l.b16 %v2576
      %v2629 = vunpack.c.l.b16 %v2577
      %v2630 = vunpack.c.l.b16 %v2578
      %v2631 = vunpack.c.l.b16 %v2579
      %v2632 = vunpack.c.l.b16 %v2580
      %v2633 = vunpack.c.l.b16 %v2581
      %v2634 = vpack.c.b16 %v2611, %v2610
      %v2635 = vpack.c.b16 %v2613, %v2612
      %v2636 = vpack.c.b16 %v2615, %v2614
      %v2637 = vpack.c.b16 %v2617, %v2616
      %v2638 = vpack.c.b16 %v2619, %v2618
      %v2639 = vpack.c.b16 %v2621, %v2620
      %v2640 = vpack.c.b16 %v2623, %v2622
      %v2641 = vpack.c.b16 %v2625, %v2624
      %v2642 = vpack.c.b16 %v2627, %v2626
      %v2643 = vpack.c.b16 %v2629, %v2628
      %v2644 = vpack.c.b16 %v2631, %v2630
      %v2645 = vpack.c.b16 %v2633, %v2632
      %v2647 = vunpack.c.l.b16 %v2582
      %v2648 = vpack.c.b16 %v2647, %v2647
      %vm2649 = vsmask.f32 7424
      %v2651 = vshrl.u32 %v2634, 16
      %v2653 = vshll.u32 %v2634, 16
      %v2655 = vrot.slane %v2653, 1
      %v2656 = vor.u32 %v2651, %v2655
      %v2658 = vshll.u32 %v2635, 16
      %v2660 = vrot.slane %v2658, 1
      %v2661 = vsel %vm2649, %v2656, %v2660
      %v2662 = vshrl.u32 %v2635, 16
      %v2664 = vor.u32 %v2662, %v2660
      %v2666 = vshll.u32 %v2636, 16
      %v2668 = vrot.slane %v2666, 1
      %v2669 = vsel %vm2649, %v2664, %v2668
      %v2670 = vshrl.u32 %v2636, 16
      %v2672 = vor.u32 %v2670, %v2668
      %v2674 = vshll.u32 %v2637, 16
      %v2676 = vrot.slane %v2674, 1
      %v2677 = vsel %vm2649, %v2672, %v2676
      %v2678 = vshrl.u32 %v2637, 16
      %v2680 = vor.u32 %v2678, %v2676
      %v2682 = vshll.u32 %v2638, 16
      %v2684 = vrot.slane %v2682, 1
      %v2685 = vsel %vm2649, %v2680, %v2684
      %v2686 = vshrl.u32 %v2638, 16
      %v2688 = vor.u32 %v2686, %v2684
      %v2690 = vshll.u32 %v2639, 16
      %v2692 = vrot.slane %v2690, 1
      %v2693 = vsel %vm2649, %v2688, %v2692
      %v2694 = vshrl.u32 %v2639, 16
      %v2696 = vor.u32 %v2694, %v2692
      %v2698 = vshll.u32 %v2640, 16
      %v2700 = vrot.slane %v2698, 1
      %v2701 = vsel %vm2649, %v2696, %v2700
      %v2702 = vshrl.u32 %v2640, 16
      %v2704 = vor.u32 %v2702, %v2700
      %v2706 = vshll.u32 %v2641, 16
      %v2708 = vrot.slane %v2706, 1
      %v2709 = vsel %vm2649, %v2704, %v2708
      %v2710 = vshrl.u32 %v2641, 16
      %v2712 = vor.u32 %v2710, %v2708
      %v2714 = vshll.u32 %v2642, 16
      %v2716 = vrot.slane %v2714, 1
      %v2717 = vsel %vm2649, %v2712, %v2716
      %v2718 = vshrl.u32 %v2642, 16
      %v2720 = vor.u32 %v2718, %v2716
      %v2722 = vshll.u32 %v2643, 16
      %v2724 = vrot.slane %v2722, 1
      %v2725 = vsel %vm2649, %v2720, %v2724
      %v2726 = vshrl.u32 %v2643, 16
      %v2728 = vor.u32 %v2726, %v2724
      %v2730 = vshll.u32 %v2644, 16
      %v2732 = vrot.slane %v2730, 1
      %v2733 = vsel %vm2649, %v2728, %v2732
      %v2734 = vshrl.u32 %v2644, 16
      %v2736 = vor.u32 %v2734, %v2732
      %v2738 = vshll.u32 %v2645, 16
      %v2740 = vrot.slane %v2738, 1
      %v2741 = vsel %vm2649, %v2736, %v2740
      %v2742 = vshrl.u32 %v2645, 16
      %v2744 = vor.u32 %v2742, %v2740
      %v2746 = vshll.u32 %v2648, 16
      %v2748 = vrot.slane %v2746, 1
      %v2749 = vsel %vm2649, %v2744, %v2748
      %2750 = vrot.lane.b32.xlu0 %v2661, 16
      %v2751 = vpop.permute.xlu0 %2750
      %2752 = vrot.lane.b32.xlu0 %v2669, 16
      %v2753 = vpop.permute.xlu0 %2752
      %2754 = vrot.lane.b32.xlu0 %v2677, 16
      %v2755 = vpop.permute.xlu0 %2754
      %2756 = vrot.lane.b32.xlu0 %v2685, 16
      %v2757 = vpop.permute.xlu0 %2756
      %2758 = vrot.lane.b32.xlu0 %v2693, 16
      %v2759 = vpop.permute.xlu0 %2758
      %2760 = vrot.lane.b32.xlu0 %v2701, 16
      %v2761 = vpop.permute.xlu0 %2760
      %2762 = vrot.lane.b32.xlu0 %v2709, 16
      %v2763 = vpop.permute.xlu0 %2762
      %2764 = vrot.lane.b32.xlu0 %v2717, 16
      %v2765 = vpop.permute.xlu0 %2764
      %2766 = vrot.lane.b32.xlu0 %v2725, 16
      %v2767 = vpop.permute.xlu0 %2766
      %2768 = vrot.lane.b32.xlu0 %v2733, 16
      %v2769 = vpop.permute.xlu0 %2768
      %2770 = vrot.lane.b32.xlu0 %v2741, 16
      %v2771 = vpop.permute.xlu0 %2770
      %2772 = vrot.lane.b32.xlu0 %v2749, 16
      %v2773 = vpop.permute.xlu0 %2772
      %v2775 = vunpack.c.l.b16 %v2583
      %v2776 = vpack.c.b16 %v2611, %v2775
      %vm2777 = vcmask 1046528
      %v2778 = vrot.slane %v2776, 1
      %v2779 = vrot.slane %v2635, 1
      %v2780 = vsel %vm2777, %v2778, %v2779
      %v2781 = vrot.slane %v2636, 1
      %v2782 = vsel %vm2777, %v2779, %v2781
      %v2783 = vrot.slane %v2637, 1
      %v2784 = vsel %vm2777, %v2781, %v2783
      %v2785 = vrot.slane %v2638, 1
      %v2786 = vsel %vm2777, %v2783, %v2785
      %v2787 = vrot.slane %v2639, 1
      %v2788 = vsel %vm2777, %v2785, %v2787
      %v2789 = vrot.slane %v2640, 1
      %v2790 = vsel %vm2777, %v2787, %v2789
      %v2791 = vrot.slane %v2641, 1
      %v2792 = vsel %vm2777, %v2789, %v2791
      %v2793 = vrot.slane %v2642, 1
      %v2794 = vsel %vm2777, %v2791, %v2793
      %v2795 = vrot.slane %v2643, 1
      %v2796 = vsel %vm2777, %v2793, %v2795
      %v2797 = vrot.slane %v2644, 1
      %v2798 = vsel %vm2777, %v2795, %v2797
      %v2799 = vrot.slane %v2645, 1
      %v2800 = vsel %vm2777, %v2797, %v2799
      %v2801 = vrot.slane %v2648, 1
      %v2802 = vsel %vm2777, %v2799, %v2801
      %2803 = vrot.lane.b32.xlu0 %v2780, 32
      %v2804 = vpop.permute.xlu0 %2803
      %2805 = vrot.lane.b32.xlu0 %v2782, 32
      %v2806 = vpop.permute.xlu0 %2805
      %2807 = vrot.lane.b32.xlu0 %v2784, 32
      %v2808 = vpop.permute.xlu0 %2807
      %2809 = vrot.lane.b32.xlu0 %v2786, 32
      %v2810 = vpop.permute.xlu0 %2809
      %2811 = vrot.lane.b32.xlu0 %v2788, 32
      %v2812 = vpop.permute.xlu0 %2811
      %2813 = vrot.lane.b32.xlu0 %v2790, 32
      %v2814 = vpop.permute.xlu0 %2813
      %2815 = vrot.lane.b32.xlu0 %v2792, 32
      %v2816 = vpop.permute.xlu0 %2815
      %2817 = vrot.lane.b32.xlu0 %v2794, 32
      %v2818 = vpop.permute.xlu0 %2817
      %2819 = vrot.lane.b32.xlu0 %v2796, 32
      %v2820 = vpop.permute.xlu0 %2819
      %2821 = vrot.lane.b32.xlu0 %v2798, 32
      %v2822 = vpop.permute.xlu0 %2821
      %2823 = vrot.lane.b32.xlu0 %v2800, 32
      %v2824 = vpop.permute.xlu0 %2823
      %2825 = vrot.lane.b32.xlu0 %v2802, 32
      %v2826 = vpop.permute.xlu0 %2825
      %v2828 = vunpack.c.l.b16 %v2584
      %v2829 = vpack.c.b16 %v2828, %v2828
      %vm2830 = vsmask.f32 6400
      %v2832 = vshrl.u32 %v2776, 16
      %v2834 = vrot.slane %v2832, 1
      %v2835 = vshll.u32 %v2776, 16
      %v2837 = vrot.slane %v2835, 2
      %v2838 = vor.u32 %v2834, %v2837
      %v2839 = vrot.slane %v2662, 1
      %v2840 = vrot.slane %v2658, 2
      %v2841 = vor.u32 %v2839, %v2840
      %v2842 = vsel %vm2830, %v2838, %v2841
      %v2843 = vrot.slane %v2670, 1
      %v2844 = vrot.slane %v2666, 2
      %v2845 = vor.u32 %v2843, %v2844
      %v2846 = vsel %vm2830, %v2841, %v2845
      %v2847 = vrot.slane %v2678, 1
      %v2848 = vrot.slane %v2674, 2
      %v2849 = vor.u32 %v2847, %v2848
      %v2850 = vsel %vm2830, %v2845, %v2849
      %v2851 = vrot.slane %v2686, 1
      %v2852 = vrot.slane %v2682, 2
      %v2853 = vor.u32 %v2851, %v2852
      %v2854 = vsel %vm2830, %v2849, %v2853
      %v2855 = vrot.slane %v2694, 1
      %v2856 = vrot.slane %v2690, 2
      %v2857 = vor.u32 %v2855, %v2856
      %v2858 = vsel %vm2830, %v2853, %v2857
      %v2859 = vrot.slane %v2702, 1
      %v2860 = vrot.slane %v2698, 2
      %v2861 = vor.u32 %v2859, %v2860
      %v2862 = vsel %vm2830, %v2857, %v2861
      %v2863 = vrot.slane %v2710, 1
      %v2864 = vrot.slane %v2706, 2
      %v2865 = vor.u32 %v2863, %v2864
      %v2866 = vsel %vm2830, %v2861, %v2865
      %v2867 = vrot.slane %v2718, 1
      %v2868 = vrot.slane %v2714, 2
      %v2869 = vor.u32 %v2867, %v2868
      %v2870 = vsel %vm2830, %v2865, %v2869
      %v2871 = vrot.slane %v2726, 1
      %v2872 = vrot.slane %v2722, 2
      %v2873 = vor.u32 %v2871, %v2872
      %v2874 = vsel %vm2830, %v2869, %v2873
      %v2875 = vrot.slane %v2734, 1
      %v2876 = vrot.slane %v2730, 2
      %v2877 = vor.u32 %v2875, %v2876
      %v2878 = vsel %vm2830, %v2873, %v2877
      %v2879 = vrot.slane %v2742, 1
      %v2880 = vrot.slane %v2738, 2
      %v2881 = vor.u32 %v2879, %v2880
      %v2882 = vsel %vm2830, %v2877, %v2881
      %v2884 = vshrl.u32 %v2829, 16
      %v2886 = vrot.slane %v2884, 1
      %v2887 = vshll.u32 %v2829, 16
      %v2889 = vrot.slane %v2887, 2
      %v2890 = vor.u32 %v2886, %v2889
      %v2891 = vsel %vm2830, %v2881, %v2890
      %2892 = vrot.lane.b32.xlu0 %v2842, 48
      %v2893 = vpop.permute.xlu0 %2892
      %2894 = vrot.lane.b32.xlu0 %v2846, 48
      %v2895 = vpop.permute.xlu0 %2894
      %2896 = vrot.lane.b32.xlu0 %v2850, 48
      %v2897 = vpop.permute.xlu0 %2896
      %2898 = vrot.lane.b32.xlu0 %v2854, 48
      %v2899 = vpop.permute.xlu0 %2898
      %2900 = vrot.lane.b32.xlu0 %v2858, 48
      %v2901 = vpop.permute.xlu0 %2900
      %2902 = vrot.lane.b32.xlu0 %v2862, 48
      %v2903 = vpop.permute.xlu0 %2902
      %2904 = vrot.lane.b32.xlu0 %v2866, 48
      %v2905 = vpop.permute.xlu0 %2904
      %2906 = vrot.lane.b32.xlu0 %v2870, 48
      %v2907 = vpop.permute.xlu0 %2906
      %2908 = vrot.lane.b32.xlu0 %v2874, 48
      %v2909 = vpop.permute.xlu0 %2908
      %2910 = vrot.lane.b32.xlu0 %v2878, 48
      %v2911 = vpop.permute.xlu0 %2910
      %2912 = vrot.lane.b32.xlu0 %v2882, 48
      %v2913 = vpop.permute.xlu0 %2912
      %2914 = vrot.lane.b32.xlu0 %v2891, 48
      %v2915 = vpop.permute.xlu0 %2914
      %v2917 = vunpack.c.l.b16 %v2585
      %v2918 = vpack.c.b16 %v2611, %v2917
      %vm2919 = vcmask 1045504
      %v2920 = vrot.slane %v2918, 2
      %v2921 = vrot.slane %v2635, 2
      %v2922 = vsel %vm2919, %v2920, %v2921
      %v2923 = vrot.slane %v2636, 2
      %v2924 = vsel %vm2919, %v2921, %v2923
      %v2925 = vrot.slane %v2637, 2
      %v2926 = vsel %vm2919, %v2923, %v2925
      %v2927 = vrot.slane %v2638, 2
      %v2928 = vsel %vm2919, %v2925, %v2927
      %v2929 = vrot.slane %v2639, 2
      %v2930 = vsel %vm2919, %v2927, %v2929
      %v2931 = vrot.slane %v2640, 2
      %v2932 = vsel %vm2919, %v2929, %v2931
      %v2933 = vrot.slane %v2641, 2
      %v2934 = vsel %vm2919, %v2931, %v2933
      %v2935 = vrot.slane %v2642, 2
      %v2936 = vsel %vm2919, %v2933, %v2935
      %v2937 = vrot.slane %v2643, 2
      %v2938 = vsel %vm2919, %v2935, %v2937
      %v2939 = vrot.slane %v2644, 2
      %v2940 = vsel %vm2919, %v2937, %v2939
      %v2941 = vrot.slane %v2645, 2
      %v2942 = vsel %vm2919, %v2939, %v2941
      %v2943 = vrot.slane %v2829, 2
      %v2944 = vsel %vm2919, %v2941, %v2943
      %2945 = vrot.lane.b32.xlu0 %v2922, 64
      %v2946 = vpop.permute.xlu0 %2945
      %2947 = vrot.lane.b32.xlu0 %v2924, 64
      %v2948 = vpop.permute.xlu0 %2947
      %2949 = vrot.lane.b32.xlu0 %v2926, 64
      %v2950 = vpop.permute.xlu0 %2949
      %2951 = vrot.lane.b32.xlu0 %v2928, 64
      %v2952 = vpop.permute.xlu0 %2951
      %2953 = vrot.lane.b32.xlu0 %v2930, 64
      %v2954 = vpop.permute.xlu0 %2953
      %2955 = vrot.lane.b32.xlu0 %v2932, 64
      %v2956 = vpop.permute.xlu0 %2955
      %2957 = vrot.lane.b32.xlu0 %v2934, 64
      %v2958 = vpop.permute.xlu0 %2957
      %2959 = vrot.lane.b32.xlu0 %v2936, 64
      %v2960 = vpop.permute.xlu0 %2959
      %2961 = vrot.lane.b32.xlu0 %v2938, 64
      %v2962 = vpop.permute.xlu0 %2961
      %2963 = vrot.lane.b32.xlu0 %v2940, 64
      %v2964 = vpop.permute.xlu0 %2963
      %2965 = vrot.lane.b32.xlu0 %v2942, 64
      %v2966 = vpop.permute.xlu0 %2965
      %2967 = vrot.lane.b32.xlu0 %v2944, 64
      %v2968 = vpop.permute.xlu0 %2967
      %vm2969 = vcmask 130048
      %v2971 = vsel %vm2969, %v2634, %v2751
      %v2973 = vsel %vm2969, %v2635, %v2753
      %v2975 = vsel %vm2969, %v2636, %v2755
      %v2977 = vsel %vm2969, %v2637, %v2757
      %v2979 = vsel %vm2969, %v2638, %v2759
      %v2981 = vsel %vm2969, %v2639, %v2761
      %v2983 = vsel %vm2969, %v2640, %v2763
      %v2985 = vsel %vm2969, %v2641, %v2765
      %v2987 = vsel %vm2969, %v2642, %v2767
      %v2989 = vsel %vm2969, %v2643, %v2769
      %v2991 = vsel %vm2969, %v2644, %v2771
      %v2993 = vsel %vm2969, %v2645, %v2773
      %vm2994 = vcmask 261120
      %v2996 = vsel %vm2994, %v2971, %v2804
      %v2998 = vsel %vm2994, %v2973, %v2806
      %v3000 = vsel %vm2994, %v2975, %v2808
      %v3002 = vsel %vm2994, %v2977, %v2810
      %v3004 = vsel %vm2994, %v2979, %v2812
      %v3006 = vsel %vm2994, %v2981, %v2814
      %v3008 = vsel %vm2994, %v2983, %v2816
      %v3010 = vsel %vm2994, %v2985, %v2818
      %v3012 = vsel %vm2994, %v2987, %v2820
      %v3014 = vsel %vm2994, %v2989, %v2822
      %v3016 = vsel %vm2994, %v2991, %v2824
      %v3018 = vsel %vm2994, %v2993, %v2826
      %vm3019 = vcmask 392192
      %v3021 = vsel %vm3019, %v2996, %v2893
      %v3023 = vsel %vm3019, %v2998, %v2895
      %v3025 = vsel %vm3019, %v3000, %v2897
      %v3027 = vsel %vm3019, %v3002, %v2899
      %v3029 = vsel %vm3019, %v3004, %v2901
      %v3031 = vsel %vm3019, %v3006, %v2903
      %v3033 = vsel %vm3019, %v3008, %v2905
      %v3035 = vsel %vm3019, %v3010, %v2907
      %v3037 = vsel %vm3019, %v3012, %v2909
      %v3039 = vsel %vm3019, %v3014, %v2911
      %v3041 = vsel %vm3019, %v3016, %v2913
      %v3043 = vsel %vm3019, %v3018, %v2915
      %vm3044 = vcmask 523264
      %v3046 = vsel %vm3044, %v3021, %v2946
      %v3048 = vsel %vm3044, %v3023, %v2948
      %v3050 = vsel %vm3044, %v3025, %v2950
      %v3052 = vsel %vm3044, %v3027, %v2952
      %v3054 = vsel %vm3044, %v3029, %v2954
      %v3056 = vsel %vm3044, %v3031, %v2956
      %v3058 = vsel %vm3044, %v3033, %v2958
      %v3060 = vsel %vm3044, %v3035, %v2960
      %v3062 = vsel %vm3044, %v3037, %v2962
      %v3064 = vsel %vm3044, %v3039, %v2964
      %v3066 = vsel %vm3044, %v3041, %v2966
      %v3068 = vsel %vm3044, %v3043, %v2968
      %v3069 = vld [vmem:[%s5] sm:$0xf]
      %v3070 = vld [vmem:[%s5 + $0x4] sm:$0xf]
      %v3071 = vld [vmem:[%s5 + $0x8] sm:$0xf]
      %v3072 = vld [vmem:[%s5 + $0xc] sm:$0xf]
      %v3073 = vld [vmem:[%s5 + $0x10] sm:$0xf]
      %v3074 = vld [vmem:[%s5 + $0x14] sm:$0xf]
      %v3075 = vld [vmem:[%s5 + $0x18] sm:$0xf]
      %v3076 = vld [vmem:[%s5 + $0x1c] sm:$0xf]
      %v3077 = vld [vmem:[%s5 + $0x20] sm:$0xf]
      %v3078 = vld [vmem:[%s5 + $0x24] sm:$0xf]
      %v3079 = vld [vmem:[#allocation2 + $0x60] sm:$0xf]
      %v3080 = vld [vmem:[#allocation2 + $0x64] sm:$0xf]
      %v3081 = vld [vmem:[#allocation2 + $0x68] sm:$0xf]
      %v3082 = vld [vmem:[#allocation2 + $0x6c] sm:$0x1]
      %v3083 = vld [vmem:[#allocation2 + $0xc] sm:$0xe]
      %v3084 = vld [vmem:[#allocation2 + $0x6c] sm:$0x3]
      %v3085 = vld [vmem:[#allocation2 + $0xc] sm:$0xc]
      %v3089 = vunpack.c.l.b16 %v3079
      %v3090 = vunpack.c.l.b16 %v3080
      %v3091 = vunpack.c.l.b16 %v3081
      %v3092 = vpack.c.b16 %v2614, %v2613
      %v3093 = vpack.c.b16 %v2616, %v2615
      %v3094 = vpack.c.b16 %v2618, %v2617
      %v3095 = vpack.c.b16 %v2620, %v2619
      %v3096 = vpack.c.b16 %v2622, %v2621
      %v3097 = vpack.c.b16 %v2624, %v2623
      %v3098 = vpack.c.b16 %v2626, %v2625
      %v3099 = vpack.c.b16 %v2628, %v2627
      %v3100 = vpack.c.b16 %v2630, %v2629
      %v3101 = vpack.c.b16 %v2632, %v2631
      %v3102 = vpack.c.b16 %v3089, %v2633
      %v3103 = vpack.c.b16 %v3091, %v3090
      %v3105 = vunpack.c.l.b16 %v3082
      %v3106 = vpack.c.b16 %v3105, %v3105
      %v3108 = vshrl.u32 %v3092, 16
      %v3110 = vshll.u32 %v3092, 16
      %v3112 = vrot.slane %v3110, 1
      %v3113 = vor.u32 %v3108, %v3112
      %v3115 = vshll.u32 %v3093, 16
      %v3117 = vrot.slane %v3115, 1
      %v3118 = vsel %vm2649, %v3113, %v3117
      %v3119 = vshrl.u32 %v3093, 16
      %v3121 = vor.u32 %v3119, %v3117
      %v3123 = vshll.u32 %v3094, 16
      %v3125 = vrot.slane %v3123, 1
      %v3126 = vsel %vm2649, %v3121, %v3125
      %v3127 = vshrl.u32 %v3094, 16
      %v3129 = vor.u32 %v3127, %v3125
      %v3131 = vshll.u32 %v3095, 16
      %v3133 = vrot.slane %v3131, 1
      %v3134 = vsel %vm2649, %v3129, %v3133
      %v3135 = vshrl.u32 %v3095, 16
      %v3137 = vor.u32 %v3135, %v3133
      %v3139 = vshll.u32 %v3096, 16
      %v3141 = vrot.slane %v3139, 1
      %v3142 = vsel %vm2649, %v3137, %v3141
      %v3143 = vshrl.u32 %v3096, 16
      %v3145 = vor.u32 %v3143, %v3141
      %v3147 = vshll.u32 %v3097, 16
      %v3149 = vrot.slane %v3147, 1
      %v3150 = vsel %vm2649, %v3145, %v3149
      %v3151 = vshrl.u32 %v3097, 16
      %v3153 = vor.u32 %v3151, %v3149
      %v3155 = vshll.u32 %v3098, 16
      %v3157 = vrot.slane %v3155, 1
      %v3158 = vsel %vm2649, %v3153, %v3157
      %v3159 = vshrl.u32 %v3098, 16
      %v3161 = vor.u32 %v3159, %v3157
      %v3163 = vshll.u32 %v3099, 16
      %v3165 = vrot.slane %v3163, 1
      %v3166 = vsel %vm2649, %v3161, %v3165
      %v3167 = vshrl.u32 %v3099, 16
      %v3169 = vor.u32 %v3167, %v3165
      %v3171 = vshll.u32 %v3100, 16
      %v3173 = vrot.slane %v3171, 1
      %v3174 = vsel %vm2649, %v3169, %v3173
      %v3175 = vshrl.u32 %v3100, 16
      %v3177 = vor.u32 %v3175, %v3173
      %v3179 = vshll.u32 %v3101, 16
      %v3181 = vrot.slane %v3179, 1
      %v3182 = vsel %vm2649, %v3177, %v3181
      %v3183 = vshrl.u32 %v3101, 16
      %v3185 = vor.u32 %v3183, %v3181
      %v3187 = vshll.u32 %v3102, 16
      %v3189 = vrot.slane %v3187, 1
      %v3190 = vsel %vm2649, %v3185, %v3189
      %v3191 = vshrl.u32 %v3102, 16
      %v3193 = vor.u32 %v3191, %v3189
      %v3195 = vshll.u32 %v3103, 16
      %v3197 = vrot.slane %v3195, 1
      %v3198 = vsel %vm2649, %v3193, %v3197
      %v3199 = vshrl.u32 %v3103, 16
      %v3201 = vor.u32 %v3199, %v3197
      %v3203 = vshll.u32 %v3106, 16
      %v3205 = vrot.slane %v3203, 1
      %v3206 = vsel %vm2649, %v3201, %v3205
      %3207 = vrot.lane.b32.xlu0 %v3118, 16
      %v3208 = vpop.permute.xlu0 %3207
      %3209 = vrot.lane.b32.xlu0 %v3126, 16
      %v3210 = vpop.permute.xlu0 %3209
      %3211 = vrot.lane.b32.xlu0 %v3134, 16
      %v3212 = vpop.permute.xlu0 %3211
      %3213 = vrot.lane.b32.xlu0 %v3142, 16
      %v3214 = vpop.permute.xlu0 %3213
      %3215 = vrot.lane.b32.xlu0 %v3150, 16
      %v3216 = vpop.permute.xlu0 %3215
      %3217 = vrot.lane.b32.xlu0 %v3158, 16
      %v3218 = vpop.permute.xlu0 %3217
      %3219 = vrot.lane.b32.xlu0 %v3166, 16
      %v3220 = vpop.permute.xlu0 %3219
      %3221 = vrot.lane.b32.xlu0 %v3174, 16
      %v3222 = vpop.permute.xlu0 %3221
      %3223 = vrot.lane.b32.xlu0 %v3182, 16
      %v3224 = vpop.permute.xlu0 %3223
      %3225 = vrot.lane.b32.xlu0 %v3190, 16
      %v3226 = vpop.permute.xlu0 %3225
      %3227 = vrot.lane.b32.xlu0 %v3198, 16
      %v3228 = vpop.permute.xlu0 %3227
      %3229 = vrot.lane.b32.xlu0 %v3206, 16
      %v3230 = vpop.permute.xlu0 %3229
      %v3232 = vunpack.c.l.b16 %v3083
      %v3233 = vpack.c.b16 %v2614, %v3232
      %v3234 = vrot.slane %v3233, 1
      %v3235 = vrot.slane %v3093, 1
      %v3236 = vsel %vm2777, %v3234, %v3235
      %v3237 = vrot.slane %v3094, 1
      %v3238 = vsel %vm2777, %v3235, %v3237
      %v3239 = vrot.slane %v3095, 1
      %v3240 = vsel %vm2777, %v3237, %v3239
      %v3241 = vrot.slane %v3096, 1
      %v3242 = vsel %vm2777, %v3239, %v3241
      %v3243 = vrot.slane %v3097, 1
      %v3244 = vsel %vm2777, %v3241, %v3243
      %v3245 = vrot.slane %v3098, 1
      %v3246 = vsel %vm2777, %v3243, %v3245
      %v3247 = vrot.slane %v3099, 1
      %v3248 = vsel %vm2777, %v3245, %v3247
      %v3249 = vrot.slane %v3100, 1
      %v3250 = vsel %vm2777, %v3247, %v3249
      %v3251 = vrot.slane %v3101, 1
      %v3252 = vsel %vm2777, %v3249, %v3251
      %v3253 = vrot.slane %v3102, 1
      %v3254 = vsel %vm2777, %v3251, %v3253
      %v3255 = vrot.slane %v3103, 1
      %v3256 = vsel %vm2777, %v3253, %v3255
      %v3257 = vrot.slane %v3106, 1
      %v3258 = vsel %vm2777, %v3255, %v3257
      %3259 = vrot.lane.b32.xlu0 %v3236, 32
      %v3260 = vpop.permute.xlu0 %3259
      %3261 = vrot.lane.b32.xlu0 %v3238, 32
      %v3262 = vpop.permute.xlu0 %3261
      %3263 = vrot.lane.b32.xlu0 %v3240, 32
      %v3264 = vpop.permute.xlu0 %3263
      %3265 = vrot.lane.b32.xlu0 %v3242, 32
      %v3266 = vpop.permute.xlu0 %3265
      %3267 = vrot.lane.b32.xlu0 %v3244, 32
      %v3268 = vpop.permute.xlu0 %3267
      %3269 = vrot.lane.b32.xlu0 %v3246, 32
      %v3270 = vpop.permute.xlu0 %3269
      %3271 = vrot.lane.b32.xlu0 %v3248, 32
      %v3272 = vpop.permute.xlu0 %3271
      %3273 = vrot.lane.b32.xlu0 %v3250, 32
      %v3274 = vpop.permute.xlu0 %3273
      %3275 = vrot.lane.b32.xlu0 %v3252, 32
      %v3276 = vpop.permute.xlu0 %3275
      %3277 = vrot.lane.b32.xlu0 %v3254, 32
      %v3278 = vpop.permute.xlu0 %3277
      %3279 = vrot.lane.b32.xlu0 %v3256, 32
      %v3280 = vpop.permute.xlu0 %3279
      %3281 = vrot.lane.b32.xlu0 %v3258, 32
      %v3282 = vpop.permute.xlu0 %3281
      %v3284 = vunpack.c.l.b16 %v3084
      %v3285 = vpack.c.b16 %v3284, %v3284
      %v3287 = vshrl.u32 %v3233, 16
      %v3289 = vrot.slane %v3287, 1
      %v3290 = vshll.u32 %v3233, 16
      %v3292 = vrot.slane %v3290, 2
      %v3293 = vor.u32 %v3289, %v3292
      %v3294 = vrot.slane %v3119, 1
      %v3295 = vrot.slane %v3115, 2
      %v3296 = vor.u32 %v3294, %v3295
      %v3297 = vsel %vm2830, %v3293, %v3296
      %v3298 = vrot.slane %v3127, 1
      %v3299 = vrot.slane %v3123, 2
      %v3300 = vor.u32 %v3298, %v3299
      %v3301 = vsel %vm2830, %v3296, %v3300
      %v3302 = vrot.slane %v3135, 1
      %v3303 = vrot.slane %v3131, 2
      %v3304 = vor.u32 %v3302, %v3303
      %v3305 = vsel %vm2830, %v3300, %v3304
      %v3306 = vrot.slane %v3143, 1
      %v3307 = vrot.slane %v3139, 2
      %v3308 = vor.u32 %v3306, %v3307
      %v3309 = vsel %vm2830, %v3304, %v3308
      %v3310 = vrot.slane %v3151, 1
      %v3311 = vrot.slane %v3147, 2
      %v3312 = vor.u32 %v3310, %v3311
      %v3313 = vsel %vm2830, %v3308, %v3312
      %v3314 = vrot.slane %v3159, 1
      %v3315 = vrot.slane %v3155, 2
      %v3316 = vor.u32 %v3314, %v3315
      %v3317 = vsel %vm2830, %v3312, %v3316
      %v3318 = vrot.slane %v3167, 1
      %v3319 = vrot.slane %v3163, 2
      %v3320 = vor.u32 %v3318, %v3319
      %v3321 = vsel %vm2830, %v3316, %v3320
      %v3322 = vrot.slane %v3175, 1
      %v3323 = vrot.slane %v3171, 2
      %v3324 = vor.u32 %v3322, %v3323
      %v3325 = vsel %vm2830, %v3320, %v3324
      %v3326 = vrot.slane %v3183, 1
      %v3327 = vrot.slane %v3179, 2
      %v3328 = vor.u32 %v3326, %v3327
      %v3329 = vsel %vm2830, %v3324, %v3328
      %v3330 = vrot.slane %v3191, 1
      %v3331 = vrot.slane %v3187, 2
      %v3332 = vor.u32 %v3330, %v3331
      %v3333 = vsel %vm2830, %v3328, %v3332
      %v3334 = vrot.slane %v3199, 1
      %v3335 = vrot.slane %v3195, 2
      %v3336 = vor.u32 %v3334, %v3335
      %v3337 = vsel %vm2830, %v3332, %v3336
      %v3339 = vshrl.u32 %v3285, 16
      %v3341 = vrot.slane %v3339, 1
      %v3342 = vshll.u32 %v3285, 16
      %v3344 = vrot.slane %v3342, 2
      %v3345 = vor.u32 %v3341, %v3344
      %v3346 = vsel %vm2830, %v3336, %v3345
      %3347 = vrot.lane.b32.xlu0 %v3297, 48
      %v3348 = vpop.permute.xlu0 %3347
      %3349 = vrot.lane.b32.xlu0 %v3301, 48
      %v3350 = vpop.permute.xlu0 %3349
      %3351 = vrot.lane.b32.xlu0 %v3305, 48
      %v3352 = vpop.permute.xlu0 %3351
      %3353 = vrot.lane.b32.xlu0 %v3309, 48
      %v3354 = vpop.permute.xlu0 %3353
      %3355 = vrot.lane.b32.xlu0 %v3313, 48
      %v3356 = vpop.permute.xlu0 %3355
      %3357 = vrot.lane.b32.xlu0 %v3317, 48
      %v3358 = vpop.permute.xlu0 %3357
      %3359 = vrot.lane.b32.xlu0 %v3321, 48
      %v3360 = vpop.permute.xlu0 %3359
      %3361 = vrot.lane.b32.xlu0 %v3325, 48
      %v3362 = vpop.permute.xlu0 %3361
      %3363 = vrot.lane.b32.xlu0 %v3329, 48
      %v3364 = vpop.permute.xlu0 %3363
      %3365 = vrot.lane.b32.xlu0 %v3333, 48
      %v3366 = vpop.permute.xlu0 %3365
      %3367 = vrot.lane.b32.xlu0 %v3337, 48
      %v3368 = vpop.permute.xlu0 %3367
      %3369 = vrot.lane.b32.xlu0 %v3346, 48
      %v3370 = vpop.permute.xlu0 %3369
      %v3372 = vunpack.c.l.b16 %v3085
      %v3373 = vpack.c.b16 %v2614, %v3372
      %v3374 = vrot.slane %v3373, 2
      %v3375 = vrot.slane %v3093, 2
      %v3376 = vsel %vm2919, %v3374, %v3375
      %v3377 = vrot.slane %v3094, 2
      %v3378 = vsel %vm2919, %v3375, %v3377
      %v3379 = vrot.slane %v3095, 2
      %v3380 = vsel %vm2919, %v3377, %v3379
      %v3381 = vrot.slane %v3096, 2
      %v3382 = vsel %vm2919, %v3379, %v3381
      %v3383 = vrot.slane %v3097, 2
      %v3384 = vsel %vm2919, %v3381, %v3383
      %v3385 = vrot.slane %v3098, 2
      %v3386 = vsel %vm2919, %v3383, %v3385
      %v3387 = vrot.slane %v3099, 2
      %v3388 = vsel %vm2919, %v3385, %v3387
      %v3389 = vrot.slane %v3100, 2
      %v3390 = vsel %vm2919, %v3387, %v3389
      %v3391 = vrot.slane %v3101, 2
      %v3392 = vsel %vm2919, %v3389, %v3391
      %v3393 = vrot.slane %v3102, 2
      %v3394 = vsel %vm2919, %v3391, %v3393
      %v3395 = vrot.slane %v3103, 2
      %v3396 = vsel %vm2919, %v3393, %v3395
      %v3397 = vrot.slane %v3285, 2
      %v3398 = vsel %vm2919, %v3395, %v3397
      %3399 = vrot.lane.b32.xlu0 %v3376, 64
      %v3400 = vpop.permute.xlu0 %3399
      %3401 = vrot.lane.b32.xlu0 %v3378, 64
      %v3402 = vpop.permute.xlu0 %3401
      %3403 = vrot.lane.b32.xlu0 %v3380, 64
      %v3404 = vpop.permute.xlu0 %3403
      %3405 = vrot.lane.b32.xlu0 %v3382, 64
      %v3406 = vpop.permute.xlu0 %3405
      %3407 = vrot.lane.b32.xlu0 %v3384, 64
      %v3408 = vpop.permute.xlu0 %3407
      %3409 = vrot.lane.b32.xlu0 %v3386, 64
      %v3410 = vpop.permute.xlu0 %3409
      %3411 = vrot.lane.b32.xlu0 %v3388, 64
      %v3412 = vpop.permute.xlu0 %3411
      %3413 = vrot.lane.b32.xlu0 %v3390, 64
      %v3414 = vpop.permute.xlu0 %3413
      %3415 = vrot.lane.b32.xlu0 %v3392, 64
      %v3416 = vpop.permute.xlu0 %3415
      %3417 = vrot.lane.b32.xlu0 %v3394, 64
      %v3418 = vpop.permute.xlu0 %3417
      %3419 = vrot.lane.b32.xlu0 %v3396, 64
      %v3420 = vpop.permute.xlu0 %3419
      %3421 = vrot.lane.b32.xlu0 %v3398, 64
      %v3422 = vpop.permute.xlu0 %3421
      %v3424 = vsel %vm2969, %v3092, %v3208
      %v3426 = vsel %vm2969, %v3093, %v3210
      %v3428 = vsel %vm2969, %v3094, %v3212
      %v3430 = vsel %vm2969, %v3095, %v3214
      %v3432 = vsel %vm2969, %v3096, %v3216
      %v3434 = vsel %vm2969, %v3097, %v3218
      %v3436 = vsel %vm2969, %v3098, %v3220
      %v3438 = vsel %vm2969, %v3099, %v3222
      %v3440 = vsel %vm2969, %v3100, %v3224
      %v3442 = vsel %vm2969, %v3101, %v3226
      %v3444 = vsel %vm2969, %v3102, %v3228
      %v3446 = vsel %vm2969, %v3103, %v3230
      %v3448 = vsel %vm2994, %v3424, %v3260
      %v3450 = vsel %vm2994, %v3426, %v3262
      %v3452 = vsel %vm2994, %v3428, %v3264
      %v3454 = vsel %vm2994, %v3430, %v3266
      %v3456 = vsel %vm2994, %v3432, %v3268
      %v3458 = vsel %vm2994, %v3434, %v3270
      %v3460 = vsel %vm2994, %v3436, %v3272
      %v3462 = vsel %vm2994, %v3438, %v3274
      %v3464 = vsel %vm2994, %v3440, %v3276
      %v3466 = vsel %vm2994, %v3442, %v3278
      %v3468 = vsel %vm2994, %v3444, %v3280
      %v3470 = vsel %vm2994, %v3446, %v3282
      %v3472 = vsel %vm3019, %v3448, %v3348
      %v3474 = vsel %vm3019, %v3450, %v3350
      %v3476 = vsel %vm3019, %v3452, %v3352
      %v3478 = vsel %vm3019, %v3454, %v3354
      %v3480 = vsel %vm3019, %v3456, %v3356
      %v3482 = vsel %vm3019, %v3458, %v3358
      %v3484 = vsel %vm3019, %v3460, %v3360
      %v3486 = vsel %vm3019, %v3462, %v3362
      %v3488 = vsel %vm3019, %v3464, %v3364
      %v3490 = vsel %vm3019, %v3466, %v3366
      %v3492 = vsel %vm3019, %v3468, %v3368
      %v3494 = vsel %vm3019, %v3470, %v3370
      %v3496 = vsel %vm3044, %v3472, %v3400
      %v3498 = vsel %vm3044, %v3474, %v3402
      %v3500 = vsel %vm3044, %v3476, %v3404
      %v3502 = vsel %vm3044, %v3478, %v3406
      %v3504 = vsel %vm3044, %v3480, %v3408
      %v3506 = vsel %vm3044, %v3482, %v3410
      %v3508 = vsel %vm3044, %v3484, %v3412
      %v3510 = vsel %vm3044, %v3486, %v3414
      %v3512 = vsel %vm3044, %v3488, %v3416
      %v3514 = vsel %vm3044, %v3490, %v3418
      %v3516 = vsel %vm3044, %v3492, %v3420
      %v3518 = vsel %vm3044, %v3494, %v3422
      %s3519 = scalar_lea.vmem %s5, 40
      %v3520 = vld [vmem:[%s3519] sm:$0xf]
      %v3521 = vld [vmem:[%s3519 + $0x4] sm:$0xf]
      %v3522 = vld [vmem:[%s3519 + $0x8] sm:$0xf]
      %v3523 = vld [vmem:[%s3519 + $0xc] sm:$0xf]
      %v3524 = vld [vmem:[%s3519 + $0x10] sm:$0xf]
      %v3525 = vld [vmem:[%s3519 + $0x14] sm:$0xf]
      %v3526 = vld [vmem:[%s3519 + $0x18] sm:$0xf]
      %v3527 = vld [vmem:[%s3519 + $0x1c] sm:$0xf]
      %v3528 = vld [vmem:[%s3519 + $0x20] sm:$0xf]
      %v3529 = vld [vmem:[%s3519 + $0x24] sm:$0xf]
      %v3540 = vunpack.c.l.b16 %v3520
      %v3541 = vunpack.c.l.b16 %v3521
      %v3542 = vunpack.c.l.b16 %v3522
      %v3543 = vunpack.c.l.b16 %v3523
      %v3544 = vunpack.c.l.b16 %v3524
      %v3545 = vunpack.c.l.b16 %v3525
      %v3546 = vunpack.c.l.b16 %v3526
      %v3547 = vunpack.c.l.b16 %v3527
      %v3548 = vunpack.c.l.b16 %v3528
      %v3549 = vunpack.c.l.b16 %v3529
      %v3550 = vpack.c.b16 %v3541, %v3540
      %v3551 = vpack.c.b16 %v3543, %v3542
      %v3552 = vpack.c.b16 %v3545, %v3544
      %v3553 = vpack.c.b16 %v3547, %v3546
      %v3554 = vpack.c.b16 %v3549, %v3548
      %vm3560 = vcmask 654336
      %v3561 = vsel %vm3560, %v3496, 0
      %v3563 = vsel %vm3560, %v3498, 0
      %v3565 = vsel %vm3560, %v3500, 0
      %v3567 = vsel %vm3560, %v3502, 0
      %v3569 = vsel %vm3560, %v3504, 0
      %v3571 = vsel %vm3560, %v3506, 0
      %v3573 = vsel %vm3560, %v3508, 0
      %v3575 = vsel %vm3560, %v3510, 0
      %v3577 = vsel %vm3560, %v3512, 0
      %v3579 = vsel %vm3560, %v3514, 0
      %v3581 = vsel %vm3560, %v3516, 0
      %v3583 = vsel %vm3560, %v3518, 0
      %3585 = vmatprep.subr.bf16.mxu0 0
      %3586 = vmatpush1.bf16.msra.mxu0 %v3550
      %3587 = vmatprep.subr.bf16.mxu0 0
      %3588 = vmatpush1.bf16.msra.mxu0 %v3551
      %3589 = vmatprep.subr.bf16.mxu0 0
      %3590 = vmatpush1.bf16.msra.mxu0 %v3552
      %3591 = vmatprep.subr.bf16.mxu0 0
      %3592 = vmatpush1.bf16.msra.mxu0 %v3553
      %3593 = vmatprep.subr.bf16.mxu0 0
      %3594 = vmatpush1.bf16.msra.mxu0 %v3554
      %3595 = vmatprep.subr.bf16.mxu0 0
      %3596 = vmatpush1.bf16.msra.mxu0 0
      %3597 = vmatprep.subr.bf16.mxu0 0
      %3598 = vmatpush1.bf16.msra.mxu0 0
      %3599 = vmatprep.subr.bf16.mxu0 0
      %3600 = vmatpush1.bf16.msra.mxu0 0
      %3601 = vmatprep.subr.bf16.mxu0 0
      %3602 = vmatpush1.bf16.msra.mxu0 0
      %3603 = vmatprep.subr.bf16.mxu0 0
      %3604 = vmatpush1.bf16.msra.mxu0 0
      %3605 = vmatprep.subr.bf16.mxu0 0
      %3606 = vmatpush1.bf16.msra.mxu0 0
      %3607 = vmatprep.subr.bf16.mxu0 0
      %3608 = vmatpush1.bf16.msra.mxu0 0
      %3609 = vmatprep.subr.bf16.mxu0 0
      %3610 = vmatpush1.bf16.msra.mxu0 0
      %3611 = vmatprep.subr.bf16.mxu0 0
      %3612 = vmatpush1.bf16.msra.mxu0 0
      %3613 = vmatprep.subr.bf16.mxu0 0
      %3614 = vmatpush1.bf16.msra.mxu0 0
      %3615 = vmatprep.subr.bf16.mxu0 0
      %3616 = vmatpush1.bf16.msra.mxu0 0
      %3617 = vmatprep.mubr.bf16.mxu0 0
      %3618 = vmatmul.mubr.bf16.gmra.mrb[0].mxu0 %v3561
      %v3619 = vpop.f32.mrb[0].mxu0
      %v3620 = vadd.f32 0.0, %v3619
      %v3621 = vpop.f32.mrb[0].mxu0
      %v3622 = vpop.f32.mrb[0].mxu0
      %v3623 = vadd.f32 0.0, %v3622
      %v3624 = vpop.f32.mrb[0].mxu0
      %3625 = vmatprep.mubr.bf16.mxu0 0
      %3626 = vmatmul.mubr.bf16.gmra.mrb[0].mxu0 %v3563
      %v3627 = vpop.f32.mrb[0].mxu0
      %v3628 = vadd.f32 0.0, %v3627
      %v3629 = vpop.f32.mrb[0].mxu0
      %v3630 = vpop.f32.mrb[0].mxu0
      %v3631 = vadd.f32 0.0, %v3630
      %v3632 = vpop.f32.mrb[0].mxu0
      %3633 = vmatprep.mubr.bf16.mxu0 0
      %3634 = vmatmul.mubr.bf16.gmra.mrb[0].mxu0 %v3565
      %v3635 = vpop.f32.mrb[0].mxu0
      %v3636 = vadd.f32 0.0, %v3635
      %v3637 = vpop.f32.mrb[0].mxu0
      %v3638 = vpop.f32.mrb[0].mxu0
      %v3639 = vadd.f32 0.0, %v3638
      %v3640 = vpop.f32.mrb[0].mxu0
      %3641 = vmatprep.mubr.bf16.mxu0 0
      %3642 = vmatmul.mubr.bf16.gmra.mrb[0].mxu0 %v3567
      %v3643 = vpop.f32.mrb[0].mxu0
      %v3644 = vadd.f32 0.0, %v3643
      %v3645 = vpop.f32.mrb[0].mxu0
      %v3646 = vpop.f32.mrb[0].mxu0
      %v3647 = vadd.f32 0.0, %v3646
      %v3648 = vpop.f32.mrb[0].mxu0
      %3649 = vmatprep.mubr.bf16.mxu0 0
      %3650 = vmatmul.mubr.bf16.gmra.mrb[0].mxu0 %v3569
      %v3651 = vpop.f32.mrb[0].mxu0
      %v3652 = vadd.f32 0.0, %v3651
      %v3653 = vpop.f32.mrb[0].mxu0
      %v3654 = vpop.f32.mrb[0].mxu0
      %v3655 = vadd.f32 0.0, %v3654
      %v3656 = vpop.f32.mrb[0].mxu0
      %3657 = vmatprep.mubr.bf16.mxu0 0
      %3658 = vmatmul.mubr.bf16.gmra.mrb[0].mxu0 %v3571
      %v3659 = vpop.f32.mrb[0].mxu0
      %v3660 = vadd.f32 0.0, %v3659
      %v3661 = vpop.f32.mrb[0].mxu0
      %v3662 = vpop.f32.mrb[0].mxu0
      %v3663 = vadd.f32 0.0, %v3662
      %v3664 = vpop.f32.mrb[0].mxu0
      %3665 = vmatprep.mubr.bf16.mxu0 0
      %3666 = vmatmul.mubr.bf16.gmra.mrb[0].mxu0 %v3573
      %v3667 = vpop.f32.mrb[0].mxu0
      %v3668 = vadd.f32 0.0, %v3667
      %v3669 = vpop.f32.mrb[0].mxu0
      %v3670 = vpop.f32.mrb[0].mxu0
      %v3671 = vadd.f32 0.0, %v3670
      %v3672 = vpop.f32.mrb[0].mxu0
      %3673 = vmatprep.mubr.bf16.mxu0 0
      %3674 = vmatmul.mubr.bf16.gmra.mrb[0].mxu0 %v3575
      %v3675 = vpop.f32.mrb[0].mxu0
      %v3676 = vadd.f32 0.0, %v3675
      %v3677 = vpop.f32.mrb[0].mxu0
      %v3678 = vpop.f32.mrb[0].mxu0
      %v3679 = vadd.f32 0.0, %v3678
      %v3680 = vpop.f32.mrb[0].mxu0
      %3681 = vmatprep.mubr.bf16.mxu0 0
      %3682 = vmatmul.mubr.bf16.gmra.mrb[0].mxu0 %v3577
      %v3683 = vpop.f32.mrb[0].mxu0
      %v3684 = vadd.f32 0.0, %v3683
      %v3685 = vpop.f32.mrb[0].mxu0
      %v3686 = vpop.f32.mrb[0].mxu0
      %v3687 = vadd.f32 0.0, %v3686
      %v3688 = vpop.f32.mrb[0].mxu0
      %3689 = vmatprep.mubr.bf16.mxu0 0
      %3690 = vmatmul.mubr.bf16.gmra.mrb[0].mxu0 %v3579
      %v3691 = vpop.f32.mrb[0].mxu0
      %v3692 = vadd.f32 0.0, %v3691
      %v3693 = vpop.f32.mrb[0].mxu0
      %v3694 = vpop.f32.mrb[0].mxu0
      %v3695 = vadd.f32 0.0, %v3694
      %v3696 = vpop.f32.mrb[0].mxu0
      %3697 = vmatprep.mubr.bf16.mxu0 0
      %3698 = vmatmul.mubr.bf16.gmra.mrb[0].mxu0 %v3581
      %v3699 = vpop.f32.mrb[0].mxu0
      %v3700 = vadd.f32 0.0, %v3699
      %v3701 = vpop.f32.mrb[0].mxu0
      %v3702 = vpop.f32.mrb[0].mxu0
      %v3703 = vadd.f32 0.0, %v3702
      %v3704 = vpop.f32.mrb[0].mxu0
      %3705 = vmatprep.mubr.bf16.mxu0 0
      %3706 = vmatmul.mubr.bf16.gmra.mrb[0].mxu0 %v3583
      %v3707 = vpop.f32.mrb[0].mxu0
      %v3708 = vadd.f32 0.0, %v3707
      %v3709 = vpop.f32.mrb[0].mxu0
      %v3710 = vpop.f32.mrb[0].mxu0
      %v3711 = vadd.f32 0.0, %v3710
      %v3712 = vpop.f32.mrb[0].mxu0
      %3713 = vdwg.mxu0
      %v3724 = vunpack.c.l.b16 %v3069
      %v3725 = vunpack.c.l.b16 %v3070
      %v3726 = vunpack.c.l.b16 %v3071
      %v3727 = vunpack.c.l.b16 %v3072
      %v3728 = vunpack.c.l.b16 %v3073
      %v3729 = vunpack.c.l.b16 %v3074
      %v3730 = vunpack.c.l.b16 %v3075
      %v3731 = vunpack.c.l.b16 %v3076
      %v3732 = vunpack.c.l.b16 %v3077
      %v3733 = vunpack.c.l.b16 %v3078
      %v3734 = vpack.c.b16 %v3725, %v3724
      %v3735 = vpack.c.b16 %v3727, %v3726
      %v3736 = vpack.c.b16 %v3729, %v3728
      %v3737 = vpack.c.b16 %v3731, %v3730
      %v3738 = vpack.c.b16 %v3733, %v3732
      %v3744 = vsel %vm3560, %v3046, 0
      %v3746 = vsel %vm3560, %v3048, 0
      %v3748 = vsel %vm3560, %v3050, 0
      %v3750 = vsel %vm3560, %v3052, 0
      %v3752 = vsel %vm3560, %v3054, 0
      %v3754 = vsel %vm3560, %v3056, 0
      %v3756 = vsel %vm3560, %v3058, 0
      %v3758 = vsel %vm3560, %v3060, 0
      %v3760 = vsel %vm3560, %v3062, 0
      %v3762 = vsel %vm3560, %v3064, 0
      %v3764 = vsel %vm3560, %v3066, 0
      %v3766 = vsel %vm3560, %v3068, 0
      %3768 = vmatprep.subr.bf16.mxu0 0
      %3769 = vmatpush1.bf16.msra.mxu0 %v3734
      %3770 = vmatprep.subr.bf16.mxu0 0
      %3771 = vmatpush1.bf16.msra.mxu0 %v3735
      %3772 = vmatprep.subr.bf16.mxu0 0
      %3773 = vmatpush1.bf16.msra.mxu0 %v3736
      %3774 = vmatprep.subr.bf16.mxu0 0
      %3775 = vmatpush1.bf16.msra.mxu0 %v3737
      %3776 = vmatprep.subr.bf16.mxu0 0
      %3777 = vmatpush1.bf16.msra.mxu0 %v3738
      %3778 = vmatprep.subr.bf16.mxu0 0
      %3779 = vmatpush1.bf16.msra.mxu0 0
      %3780 = vmatprep.subr.bf16.mxu0 0
      %3781 = vmatpush1.bf16.msra.mxu0 0
      %3782 = vmatprep.subr.bf16.mxu0 0
      %3783 = vmatpush1.bf16.msra.mxu0 0
      %3784 = vmatprep.subr.bf16.mxu0 0
      %3785 = vmatpush1.bf16.msra.mxu0 0
      %3786 = vmatprep.subr.bf16.mxu0 0
      %3787 = vmatpush1.bf16.msra.mxu0 0
      %3788 = vmatprep.subr.bf16.mxu0 0
      %3789 = vmatpush1.bf16.msra.mxu0 0
      %3790 = vmatprep.subr.bf16.mxu0 0
      %3791 = vmatpush1.bf16.msra.mxu0 0
      %3792 = vmatprep.subr.bf16.mxu0 0
      %3793 = vmatpush1.bf16.msra.mxu0 0
      %3794 = vmatprep.subr.bf16.mxu0 0
      %3795 = vmatpush1.bf16.msra.mxu0 0
      %3796 = vmatprep.subr.bf16.mxu0 0
      %3797 = vmatpush1.bf16.msra.mxu0 0
      %3798 = vmatprep.subr.bf16.mxu0 0
      %3799 = vmatpush1.bf16.msra.mxu0 0
      %3800 = vmatprep.mubr.bf16.mxu0 0
      %3801 = vmatmul.mubr.bf16.gmra.mrb[0].mxu0 %v3744
      %v3802 = vpop.f32.mrb[0].mxu0
      %v3803 = vadd.f32 %v3620, %v3802
      %v3804 = vpop.f32.mrb[0].mxu0
      %v3805 = vpop.f32.mrb[0].mxu0
      %v3806 = vadd.f32 %v3623, %v3805
      %v3807 = vpop.f32.mrb[0].mxu0
      %3808 = vmatprep.mubr.bf16.mxu0 0
      %3809 = vmatmul.mubr.bf16.gmra.mrb[0].mxu0 %v3746
      %v3810 = vpop.f32.mrb[0].mxu0
      %v3811 = vadd.f32 %v3628, %v3810
      %v3812 = vpop.f32.mrb[0].mxu0
      %v3813 = vpop.f32.mrb[0].mxu0
      %v3814 = vadd.f32 %v3631, %v3813
      %v3815 = vpop.f32.mrb[0].mxu0
      %3816 = vmatprep.mubr.bf16.mxu0 0
      %3817 = vmatmul.mubr.bf16.gmra.mrb[0].mxu0 %v3748
      %v3818 = vpop.f32.mrb[0].mxu0
      %v3819 = vadd.f32 %v3636, %v3818
      %v3820 = vpop.f32.mrb[0].mxu0
      %v3821 = vpop.f32.mrb[0].mxu0
      %v3822 = vadd.f32 %v3639, %v3821
      %v3823 = vpop.f32.mrb[0].mxu0
      %3824 = vmatprep.mubr.bf16.mxu0 0
      %3825 = vmatmul.mubr.bf16.gmra.mrb[0].mxu0 %v3750
      %v3826 = vpop.f32.mrb[0].mxu0
      %v3827 = vadd.f32 %v3644, %v3826
      %v3828 = vpop.f32.mrb[0].mxu0
      %v3829 = vpop.f32.mrb[0].mxu0
      %v3830 = vadd.f32 %v3647, %v3829
      %v3831 = vpop.f32.mrb[0].mxu0
      %3832 = vmatprep.mubr.bf16.mxu0 0
      %3833 = vmatmul.mubr.bf16.gmra.mrb[0].mxu0 %v3752
      %v3834 = vpop.f32.mrb[0].mxu0
      %v3835 = vadd.f32 %v3652, %v3834
      %v3836 = vpop.f32.mrb[0].mxu0
      %v3837 = vpop.f32.mrb[0].mxu0
      %v3838 = vadd.f32 %v3655, %v3837
      %v3839 = vpop.f32.mrb[0].mxu0
      %3840 = vmatprep.mubr.bf16.mxu0 0
      %3841 = vmatmul.mubr.bf16.gmra.mrb[0].mxu0 %v3754
      %v3842 = vpop.f32.mrb[0].mxu0
      %v3843 = vadd.f32 %v3660, %v3842
      %v3844 = vpop.f32.mrb[0].mxu0
      %v3845 = vpop.f32.mrb[0].mxu0
      %v3846 = vadd.f32 %v3663, %v3845
      %v3847 = vpop.f32.mrb[0].mxu0
      %3848 = vmatprep.mubr.bf16.mxu0 0
      %3849 = vmatmul.mubr.bf16.gmra.mrb[0].mxu0 %v3756
      %v3850 = vpop.f32.mrb[0].mxu0
      %v3851 = vadd.f32 %v3668, %v3850
      %v3852 = vpop.f32.mrb[0].mxu0
      %v3853 = vpop.f32.mrb[0].mxu0
      %v3854 = vadd.f32 %v3671, %v3853
      %v3855 = vpop.f32.mrb[0].mxu0
      %3856 = vmatprep.mubr.bf16.mxu0 0
      %3857 = vmatmul.mubr.bf16.gmra.mrb[0].mxu0 %v3758
      %v3858 = vpop.f32.mrb[0].mxu0
      %v3859 = vadd.f32 %v3676, %v3858
      %v3860 = vpop.f32.mrb[0].mxu0
      %v3861 = vpop.f32.mrb[0].mxu0
      %v3862 = vadd.f32 %v3679, %v3861
      %v3863 = vpop.f32.mrb[0].mxu0
      %3864 = vmatprep.mubr.bf16.mxu0 0
      %3865 = vmatmul.mubr.bf16.gmra.mrb[0].mxu0 %v3760
      %v3866 = vpop.f32.mrb[0].mxu0
      %v3867 = vadd.f32 %v3684, %v3866
      %v3868 = vpop.f32.mrb[0].mxu0
      %v3869 = vpop.f32.mrb[0].mxu0
      %v3870 = vadd.f32 %v3687, %v3869
      %v3871 = vpop.f32.mrb[0].mxu0
      %3872 = vmatprep.mubr.bf16.mxu0 0
      %3873 = vmatmul.mubr.bf16.gmra.mrb[0].mxu0 %v3762
      %v3874 = vpop.f32.mrb[0].mxu0
      %v3875 = vadd.f32 %v3692, %v3874
      %v3876 = vpop.f32.mrb[0].mxu0
      %v3877 = vpop.f32.mrb[0].mxu0
      %v3878 = vadd.f32 %v3695, %v3877
      %v3879 = vpop.f32.mrb[0].mxu0
      %3880 = vmatprep.mubr.bf16.mxu0 0
      %3881 = vmatmul.mubr.bf16.gmra.mrb[0].mxu0 %v3764
      %v3882 = vpop.f32.mrb[0].mxu0
      %v3883 = vadd.f32 %v3700, %v3882
      %v3884 = vpop.f32.mrb[0].mxu0
      %v3885 = vpop.f32.mrb[0].mxu0
      %v3886 = vadd.f32 %v3703, %v3885
      %v3887 = vpop.f32.mrb[0].mxu0
      %3888 = vmatprep.mubr.bf16.mxu0 0
      %3889 = vmatmul.mubr.bf16.gmra.mrb[0].mxu0 %v3766
      %v3890 = vpop.f32.mrb[0].mxu0
      %v3891 = vadd.f32 %v3708, %v3890
      %v3892 = vpop.f32.mrb[0].mxu0
      %v3893 = vpop.f32.mrb[0].mxu0
      %v3894 = vadd.f32 %v3711, %v3893
      %v3895 = vpop.f32.mrb[0].mxu0
      %3896 = vdwg.mxu0
      %v3897 = vld [vmem:[#allocation2 + $0x18] sm:$0xf]
      %v3898 = vld [vmem:[#allocation2 + $0x1c] sm:$0xf]
      %v3899 = vld [vmem:[#allocation2 + $0x20] sm:$0xf]
      %v3900 = vld [vmem:[#allocation2 + $0x24] sm:$0xf]
      %v3901 = vld [vmem:[#allocation2 + $0x28] sm:$0xf]
      %v3902 = vld [vmem:[#allocation2 + $0x2c] sm:$0xf]
      %v3903 = vld [vmem:[#allocation2 + $0x30] sm:$0xf]
      %v3904 = vld [vmem:[#allocation2 + $0x34] sm:$0xf]
      %v3905 = vld [vmem:[#allocation2 + $0x38] sm:$0xf]
      %v3906 = vld [vmem:[#allocation2 + $0x3c] sm:$0xf]
      %v3907 = vld [vmem:[#allocation2 + $0x40] sm:$0xf]
      %v3908 = vld [vmem:[#allocation2 + $0x44] sm:$0xf]
      %v3909 = vld [vmem:[#allocation2 + $0x48] sm:$0xf]
      %v3910 = vld [vmem:[#allocation2 + $0x4c] sm:$0xf]
      %v3911 = vld [vmem:[#allocation2 + $0x50] sm:$0xf]
      %v3912 = vld [vmem:[#allocation2 + $0x54] sm:$0xf]
      %v3913 = vld [vmem:[#allocation2 + $0x58] sm:$0xf]
      %v3914 = vld [vmem:[#allocation2 + $0x5c] sm:$0xf]
      %v3915 = vld [vmem:[#allocation2 + $0x60] sm:$0xf]
      %v3916 = vld [vmem:[#allocation2 + $0x64] sm:$0xf]
      %v3917 = vld [vmem:[#allocation2 + $0x68] sm:$0xf]
      %v3918 = vld [vmem:[#allocation2 + $0x6c] sm:$0xf]
      %v3919 = vld [vmem:[#allocation2 + $0x70] sm:$0xf]
      %v3920 = vld [vmem:[#allocation2 + $0x74] sm:$0xf]
      %v3921 = vld [vmem:[#allocation2 + $0x78] sm:$0x1]
      %v3922 = vld [vmem:[#allocation2 + $0x18] sm:$0xe]
      %v3923 = vld [vmem:[#allocation2 + $0x78] sm:$0x3]
      %v3924 = vld [vmem:[#allocation2 + $0x18] sm:$0xc]
      %v3949 = vunpack.c.l.b16 %v3897
      %v3950 = vunpack.c.l.b16 %v3898
      %v3951 = vunpack.c.l.b16 %v3899
      %v3952 = vunpack.c.l.b16 %v3900
      %v3953 = vunpack.c.l.b16 %v3901
      %v3954 = vunpack.c.l.b16 %v3902
      %v3955 = vunpack.c.l.b16 %v3903
      %v3956 = vunpack.c.l.b16 %v3904
      %v3957 = vunpack.c.l.b16 %v3905
      %v3958 = vunpack.c.l.b16 %v3906
      %v3959 = vunpack.c.l.b16 %v3907
      %v3960 = vunpack.c.l.b16 %v3908
      %v3961 = vunpack.c.l.b16 %v3909
      %v3962 = vunpack.c.l.b16 %v3910
      %v3963 = vunpack.c.l.b16 %v3911
      %v3964 = vunpack.c.l.b16 %v3912
      %v3965 = vunpack.c.l.b16 %v3913
      %v3966 = vunpack.c.l.b16 %v3914
      %v3967 = vunpack.c.l.b16 %v3915
      %v3968 = vunpack.c.l.b16 %v3916
      %v3969 = vunpack.c.l.b16 %v3917
      %v3970 = vunpack.c.l.b16 %v3918
      %v3971 = vunpack.c.l.b16 %v3919
      %v3972 = vunpack.c.l.b16 %v3920
      %v3973 = vpack.c.b16 %v3950, %v3949
      %v3974 = vpack.c.b16 %v3952, %v3951
      %v3975 = vpack.c.b16 %v3954, %v3953
      %v3976 = vpack.c.b16 %v3956, %v3955
      %v3977 = vpack.c.b16 %v3958, %v3957
      %v3978 = vpack.c.b16 %v3960, %v3959
      %v3979 = vpack.c.b16 %v3962, %v3961
      %v3980 = vpack.c.b16 %v3964, %v3963
      %v3981 = vpack.c.b16 %v3966, %v3965
      %v3982 = vpack.c.b16 %v3968, %v3967
      %v3983 = vpack.c.b16 %v3970, %v3969
      %v3984 = vpack.c.b16 %v3972, %v3971
      %v3986 = vunpack.c.l.b16 %v3921
      %v3987 = vpack.c.b16 %v3986, %v3986
      %v3989 = vshrl.u32 %v3973, 16
      %v3991 = vshll.u32 %v3973, 16
      %v3993 = vrot.slane %v3991, 1
      %v3994 = vor.u32 %v3989, %v3993
      %v3996 = vshll.u32 %v3974, 16
      %v3998 = vrot.slane %v3996, 1
      %v3999 = vsel %vm2649, %v3994, %v3998
      %v4000 = vshrl.u32 %v3974, 16
      %v4002 = vor.u32 %v4000, %v3998
      %v4004 = vshll.u32 %v3975, 16
      %v4006 = vrot.slane %v4004, 1
      %v4007 = vsel %vm2649, %v4002, %v4006
      %v4008 = vshrl.u32 %v3975, 16
      %v4010 = vor.u32 %v4008, %v4006
      %v4012 = vshll.u32 %v3976, 16
      %v4014 = vrot.slane %v4012, 1
      %v4015 = vsel %vm2649, %v4010, %v4014
      %v4016 = vshrl.u32 %v3976, 16
      %v4018 = vor.u32 %v4016, %v4014
      %v4020 = vshll.u32 %v3977, 16
      %v4022 = vrot.slane %v4020, 1
      %v4023 = vsel %vm2649, %v4018, %v4022
      %v4024 = vshrl.u32 %v3977, 16
      %v4026 = vor.u32 %v4024, %v4022
      %v4028 = vshll.u32 %v3978, 16
      %v4030 = vrot.slane %v4028, 1
      %v4031 = vsel %vm2649, %v4026, %v4030
      %v4032 = vshrl.u32 %v3978, 16
      %v4034 = vor.u32 %v4032, %v4030
      %v4036 = vshll.u32 %v3979, 16
      %v4038 = vrot.slane %v4036, 1
      %v4039 = vsel %vm2649, %v4034, %v4038
      %v4040 = vshrl.u32 %v3979, 16
      %v4042 = vor.u32 %v4040, %v4038
      %v4044 = vshll.u32 %v3980, 16
      %v4046 = vrot.slane %v4044, 1
      %v4047 = vsel %vm2649, %v4042, %v4046
      %v4048 = vshrl.u32 %v3980, 16
      %v4050 = vor.u32 %v4048, %v4046
      %v4052 = vshll.u32 %v3981, 16
      %v4054 = vrot.slane %v4052, 1
      %v4055 = vsel %vm2649, %v4050, %v4054
      %v4056 = vshrl.u32 %v3981, 16
      %v4058 = vor.u32 %v4056, %v4054
      %v4060 = vshll.u32 %v3982, 16
      %v4062 = vrot.slane %v4060, 1
      %v4063 = vsel %vm2649, %v4058, %v4062
      %v4064 = vshrl.u32 %v3982, 16
      %v4066 = vor.u32 %v4064, %v4062
      %v4068 = vshll.u32 %v3983, 16
      %v4070 = vrot.slane %v4068, 1
      %v4071 = vsel %vm2649, %v4066, %v4070
      %v4072 = vshrl.u32 %v3983, 16
      %v4074 = vor.u32 %v4072, %v4070
      %v4076 = vshll.u32 %v3984, 16
      %v4078 = vrot.slane %v4076, 1
      %v4079 = vsel %vm2649, %v4074, %v4078
      %v4080 = vshrl.u32 %v3984, 16
      %v4082 = vor.u32 %v4080, %v4078
      %v4084 = vshll.u32 %v3987, 16
      %v4086 = vrot.slane %v4084, 1
      %v4087 = vsel %vm2649, %v4082, %v4086
      %4088 = vrot.lane.b32.xlu0 %v3999, 16
      %v4089 = vpop.permute.xlu0 %4088
      %4090 = vrot.lane.b32.xlu0 %v4007, 16
      %v4091 = vpop.permute.xlu0 %4090
      %4092 = vrot.lane.b32.xlu0 %v4015, 16
      %v4093 = vpop.permute.xlu0 %4092
      %4094 = vrot.lane.b32.xlu0 %v4023, 16
      %v4095 = vpop.permute.xlu0 %4094
      %4096 = vrot.lane.b32.xlu0 %v4031, 16
      %v4097 = vpop.permute.xlu0 %4096
      %4098 = vrot.lane.b32.xlu0 %v4039, 16
      %v4099 = vpop.permute.xlu0 %4098
      %4100 = vrot.lane.b32.xlu0 %v4047, 16
      %v4101 = vpop.permute.xlu0 %4100
      %4102 = vrot.lane.b32.xlu0 %v4055, 16
      %v4103 = vpop.permute.xlu0 %4102
      %4104 = vrot.lane.b32.xlu0 %v4063, 16
      %v4105 = vpop.permute.xlu0 %4104
      %4106 = vrot.lane.b32.xlu0 %v4071, 16
      %v4107 = vpop.permute.xlu0 %4106
      %4108 = vrot.lane.b32.xlu0 %v4079, 16
      %v4109 = vpop.permute.xlu0 %4108
      %4110 = vrot.lane.b32.xlu0 %v4087, 16
      %v4111 = vpop.permute.xlu0 %4110
      %v4113 = vunpack.c.l.b16 %v3922
      %v4114 = vpack.c.b16 %v3950, %v4113
      %v4115 = vrot.slane %v4114, 1
      %v4116 = vrot.slane %v3974, 1
      %v4117 = vsel %vm2777, %v4115, %v4116
      %v4118 = vrot.slane %v3975, 1
      %v4119 = vsel %vm2777, %v4116, %v4118
      %v4120 = vrot.slane %v3976, 1
      %v4121 = vsel %vm2777, %v4118, %v4120
      %v4122 = vrot.slane %v3977, 1
      %v4123 = vsel %vm2777, %v4120, %v4122
      %v4124 = vrot.slane %v3978, 1
      %v4125 = vsel %vm2777, %v4122, %v4124
      %v4126 = vrot.slane %v3979, 1
      %v4127 = vsel %vm2777, %v4124, %v4126
      %v4128 = vrot.slane %v3980, 1
      %v4129 = vsel %vm2777, %v4126, %v4128
      %v4130 = vrot.slane %v3981, 1
      %v4131 = vsel %vm2777, %v4128, %v4130
      %v4132 = vrot.slane %v3982, 1
      %v4133 = vsel %vm2777, %v4130, %v4132
      %v4134 = vrot.slane %v3983, 1
      %v4135 = vsel %vm2777, %v4132, %v4134
      %v4136 = vrot.slane %v3984, 1
      %v4137 = vsel %vm2777, %v4134, %v4136
      %v4138 = vrot.slane %v3987, 1
      %v4139 = vsel %vm2777, %v4136, %v4138
      %4140 = vrot.lane.b32.xlu0 %v4117, 32
      %v4141 = vpop.permute.xlu0 %4140
      %4142 = vrot.lane.b32.xlu0 %v4119, 32
      %v4143 = vpop.permute.xlu0 %4142
      %4144 = vrot.lane.b32.xlu0 %v4121, 32
      %v4145 = vpop.permute.xlu0 %4144
      %4146 = vrot.lane.b32.xlu0 %v4123, 32
      %v4147 = vpop.permute.xlu0 %4146
      %4148 = vrot.lane.b32.xlu0 %v4125, 32
      %v4149 = vpop.permute.xlu0 %4148
      %4150 = vrot.lane.b32.xlu0 %v4127, 32
      %v4151 = vpop.permute.xlu0 %4150
      %4152 = vrot.lane.b32.xlu0 %v4129, 32
      %v4153 = vpop.permute.xlu0 %4152
      %4154 = vrot.lane.b32.xlu0 %v4131, 32
      %v4155 = vpop.permute.xlu0 %4154
      %4156 = vrot.lane.b32.xlu0 %v4133, 32
      %v4157 = vpop.permute.xlu0 %4156
      %4158 = vrot.lane.b32.xlu0 %v4135, 32
      %v4159 = vpop.permute.xlu0 %4158
      %4160 = vrot.lane.b32.xlu0 %v4137, 32
      %v4161 = vpop.permute.xlu0 %4160
      %4162 = vrot.lane.b32.xlu0 %v4139, 32
      %v4163 = vpop.permute.xlu0 %4162
      %v4165 = vunpack.c.l.b16 %v3923
      %v4166 = vpack.c.b16 %v4165, %v4165
      %v4168 = vshrl.u32 %v4114, 16
      %v4170 = vrot.slane %v4168, 1
      %v4171 = vshll.u32 %v4114, 16
      %v4173 = vrot.slane %v4171, 2
      %v4174 = vor.u32 %v4170, %v4173
      %v4175 = vrot.slane %v4000, 1
      %v4176 = vrot.slane %v3996, 2
      %v4177 = vor.u32 %v4175, %v4176
      %v4178 = vsel %vm2830, %v4174, %v4177
      %v4179 = vrot.slane %v4008, 1
      %v4180 = vrot.slane %v4004, 2
      %v4181 = vor.u32 %v4179, %v4180
      %v4182 = vsel %vm2830, %v4177, %v4181
      %v4183 = vrot.slane %v4016, 1
      %v4184 = vrot.slane %v4012, 2
      %v4185 = vor.u32 %v4183, %v4184
      %v4186 = vsel %vm2830, %v4181, %v4185
      %v4187 = vrot.slane %v4024, 1
      %v4188 = vrot.slane %v4020, 2
      %v4189 = vor.u32 %v4187, %v4188
      %v4190 = vsel %vm2830, %v4185, %v4189
      %v4191 = vrot.slane %v4032, 1
      %v4192 = vrot.slane %v4028, 2
      %v4193 = vor.u32 %v4191, %v4192
      %v4194 = vsel %vm2830, %v4189, %v4193
      %v4195 = vrot.slane %v4040, 1
      %v4196 = vrot.slane %v4036, 2
      %v4197 = vor.u32 %v4195, %v4196
      %v4198 = vsel %vm2830, %v4193, %v4197
      %v4199 = vrot.slane %v4048, 1
      %v4200 = vrot.slane %v4044, 2
      %v4201 = vor.u32 %v4199, %v4200
      %v4202 = vsel %vm2830, %v4197, %v4201
      %v4203 = vrot.slane %v4056, 1
      %v4204 = vrot.slane %v4052, 2
      %v4205 = vor.u32 %v4203, %v4204
      %v4206 = vsel %vm2830, %v4201, %v4205
      %v4207 = vrot.slane %v4064, 1
      %v4208 = vrot.slane %v4060, 2
      %v4209 = vor.u32 %v4207, %v4208
      %v4210 = vsel %vm2830, %v4205, %v4209
      %v4211 = vrot.slane %v4072, 1
      %v4212 = vrot.slane %v4068, 2
      %v4213 = vor.u32 %v4211, %v4212
      %v4214 = vsel %vm2830, %v4209, %v4213
      %v4215 = vrot.slane %v4080, 1
      %v4216 = vrot.slane %v4076, 2
      %v4217 = vor.u32 %v4215, %v4216
      %v4218 = vsel %vm2830, %v4213, %v4217
      %v4220 = vshrl.u32 %v4166, 16
      %v4222 = vrot.slane %v4220, 1
      %v4223 = vshll.u32 %v4166, 16
      %v4225 = vrot.slane %v4223, 2
      %v4226 = vor.u32 %v4222, %v4225
      %v4227 = vsel %vm2830, %v4217, %v4226
      %4228 = vrot.lane.b32.xlu0 %v4178, 48
      %v4229 = vpop.permute.xlu0 %4228
      %4230 = vrot.lane.b32.xlu0 %v4182, 48
      %v4231 = vpop.permute.xlu0 %4230
      %4232 = vrot.lane.b32.xlu0 %v4186, 48
      %v4233 = vpop.permute.xlu0 %4232
      %4234 = vrot.lane.b32.xlu0 %v4190, 48
      %v4235 = vpop.permute.xlu0 %4234
      %4236 = vrot.lane.b32.xlu0 %v4194, 48
      %v4237 = vpop.permute.xlu0 %4236
      %4238 = vrot.lane.b32.xlu0 %v4198, 48
      %v4239 = vpop.permute.xlu0 %4238
      %4240 = vrot.lane.b32.xlu0 %v4202, 48
      %v4241 = vpop.permute.xlu0 %4240
      %4242 = vrot.lane.b32.xlu0 %v4206, 48
      %v4243 = vpop.permute.xlu0 %4242
      %4244 = vrot.lane.b32.xlu0 %v4210, 48
      %v4245 = vpop.permute.xlu0 %4244
      %4246 = vrot.lane.b32.xlu0 %v4214, 48
      %v4247 = vpop.permute.xlu0 %4246
      %4248 = vrot.lane.b32.xlu0 %v4218, 48
      %v4249 = vpop.permute.xlu0 %4248
      %4250 = vrot.lane.b32.xlu0 %v4227, 48
      %v4251 = vpop.permute.xlu0 %4250
      %v4253 = vunpack.c.l.b16 %v3924
      %v4254 = vpack.c.b16 %v3950, %v4253
      %v4255 = vrot.slane %v4254, 2
      %v4256 = vrot.slane %v3974, 2
      %v4257 = vsel %vm2919, %v4255, %v4256
      %v4258 = vrot.slane %v3975, 2
      %v4259 = vsel %vm2919, %v4256, %v4258
      %v4260 = vrot.slane %v3976, 2
      %v4261 = vsel %vm2919, %v4258, %v4260
      %v4262 = vrot.slane %v3977, 2
      %v4263 = vsel %vm2919, %v4260, %v4262
      %v4264 = vrot.slane %v3978, 2
      %v4265 = vsel %vm2919, %v4262, %v4264
      %v4266 = vrot.slane %v3979, 2
      %v4267 = vsel %vm2919, %v4264, %v4266
      %v4268 = vrot.slane %v3980, 2
      %v4269 = vsel %vm2919, %v4266, %v4268
      %v4270 = vrot.slane %v3981, 2
      %v4271 = vsel %vm2919, %v4268, %v4270
      %v4272 = vrot.slane %v3982, 2
      %v4273 = vsel %vm2919, %v4270, %v4272
      %v4274 = vrot.slane %v3983, 2
      %v4275 = vsel %vm2919, %v4272, %v4274
      %v4276 = vrot.slane %v3984, 2
      %v4277 = vsel %vm2919, %v4274, %v4276
      %v4278 = vrot.slane %v4166, 2
      %v4279 = vsel %vm2919, %v4276, %v4278
      %4280 = vrot.lane.b32.xlu0 %v4257, 64
      %v4281 = vpop.permute.xlu0 %4280
      %4282 = vrot.lane.b32.xlu0 %v4259, 64
      %v4283 = vpop.permute.xlu0 %4282
      %4284 = vrot.lane.b32.xlu0 %v4261, 64
      %v4285 = vpop.permute.xlu0 %4284
      %4286 = vrot.lane.b32.xlu0 %v4263, 64
      %v4287 = vpop.permute.xlu0 %4286
      %4288 = vrot.lane.b32.xlu0 %v4265, 64
      %v4289 = vpop.permute.xlu0 %4288
      %4290 = vrot.lane.b32.xlu0 %v4267, 64
      %v4291 = vpop.permute.xlu0 %4290
      %4292 = vrot.lane.b32.xlu0 %v4269, 64
      %v4293 = vpop.permute.xlu0 %4292
      %4294 = vrot.lane.b32.xlu0 %v4271, 64
      %v4295 = vpop.permute.xlu0 %4294
      %4296 = vrot.lane.b32.xlu0 %v4273, 64
      %v4297 = vpop.permute.xlu0 %4296
      %4298 = vrot.lane.b32.xlu0 %v4275, 64
      %v4299 = vpop.permute.xlu0 %4298
      %4300 = vrot.lane.b32.xlu0 %v4277, 64
      %v4301 = vpop.permute.xlu0 %4300
      %4302 = vrot.lane.b32.xlu0 %v4279, 64
      %v4303 = vpop.permute.xlu0 %4302
      %v4305 = vsel %vm2969, %v3973, %v4089
      %v4307 = vsel %vm2969, %v3974, %v4091
      %v4309 = vsel %vm2969, %v3975, %v4093
      %v4311 = vsel %vm2969, %v3976, %v4095
      %v4313 = vsel %vm2969, %v3977, %v4097
      %v4315 = vsel %vm2969, %v3978, %v4099
      %v4317 = vsel %vm2969, %v3979, %v4101
      %v4319 = vsel %vm2969, %v3980, %v4103
      %v4321 = vsel %vm2969, %v3981, %v4105
      %v4323 = vsel %vm2969, %v3982, %v4107
      %v4325 = vsel %vm2969, %v3983, %v4109
      %v4327 = vsel %vm2969, %v3984, %v4111
      %v4329 = vsel %vm2994, %v4305, %v4141
      %v4331 = vsel %vm2994, %v4307, %v4143
      %v4333 = vsel %vm2994, %v4309, %v4145
      %v4335 = vsel %vm2994, %v4311, %v4147
      %v4337 = vsel %vm2994, %v4313, %v4149
      %v4339 = vsel %vm2994, %v4315, %v4151
      %v4341 = vsel %vm2994, %v4317, %v4153
      %v4343 = vsel %vm2994, %v4319, %v4155
      %v4345 = vsel %vm2994, %v4321, %v4157
      %v4347 = vsel %vm2994, %v4323, %v4159
      %v4349 = vsel %vm2994, %v4325, %v4161
      %v4351 = vsel %vm2994, %v4327, %v4163
      %v4353 = vsel %vm3019, %v4329, %v4229
      %v4355 = vsel %vm3019, %v4331, %v4231
      %v4357 = vsel %vm3019, %v4333, %v4233
      %v4359 = vsel %vm3019, %v4335, %v4235
      %v4361 = vsel %vm3019, %v4337, %v4237
      %v4363 = vsel %vm3019, %v4339, %v4239
      %v4365 = vsel %vm3019, %v4341, %v4241
      %v4367 = vsel %vm3019, %v4343, %v4243
      %v4369 = vsel %vm3019, %v4345, %v4245
      %v4371 = vsel %vm3019, %v4347, %v4247
      %v4373 = vsel %vm3019, %v4349, %v4249
      %v4375 = vsel %vm3019, %v4351, %v4251
      %v4377 = vsel %vm3044, %v4353, %v4281
      %v4379 = vsel %vm3044, %v4355, %v4283
      %v4381 = vsel %vm3044, %v4357, %v4285
      %v4383 = vsel %vm3044, %v4359, %v4287
      %v4385 = vsel %vm3044, %v4361, %v4289
      %v4387 = vsel %vm3044, %v4363, %v4291
      %v4389 = vsel %vm3044, %v4365, %v4293
      %v4391 = vsel %vm3044, %v4367, %v4295
      %v4393 = vsel %vm3044, %v4369, %v4297
      %v4395 = vsel %vm3044, %v4371, %v4299
      %v4397 = vsel %vm3044, %v4373, %v4301
      %v4399 = vsel %vm3044, %v4375, %v4303
      %s4400 = scalar_lea.vmem %s5, 80
      %v4401 = vld [vmem:[%s4400] sm:$0xf]
      %v4402 = vld [vmem:[%s4400 + $0x4] sm:$0xf]
      %v4403 = vld [vmem:[%s4400 + $0x8] sm:$0xf]
      %v4404 = vld [vmem:[%s4400 + $0xc] sm:$0xf]
      %v4405 = vld [vmem:[%s4400 + $0x10] sm:$0xf]
      %v4406 = vld [vmem:[%s4400 + $0x14] sm:$0xf]
      %v4407 = vld [vmem:[%s4400 + $0x18] sm:$0xf]
      %v4408 = vld [vmem:[%s4400 + $0x1c] sm:$0xf]
      %v4409 = vld [vmem:[%s4400 + $0x20] sm:$0xf]
      %v4410 = vld [vmem:[%s4400 + $0x24] sm:$0xf]
      %v4421 = vunpack.c.l.b16 %v4401
      %v4422 = vunpack.c.l.b16 %v4402
      %v4423 = vunpack.c.l.b16 %v4403
      %v4424 = vunpack.c.l.b16 %v4404
      %v4425 = vunpack.c.l.b16 %v4405
      %v4426 = vunpack.c.l.b16 %v4406
      %v4427 = vunpack.c.l.b16 %v4407
      %v4428 = vunpack.c.l.b16 %v4408
      %v4429 = vunpack.c.l.b16 %v4409
      %v4430 = vunpack.c.l.b16 %v4410
      %v4431 = vpack.c.b16 %v4422, %v4421
      %v4432 = vpack.c.b16 %v4424, %v4423
      %v4433 = vpack.c.b16 %v4426, %v4425
      %v4434 = vpack.c.b16 %v4428, %v4427
      %v4435 = vpack.c.b16 %v4430, %v4429
      %v4441 = vsel %vm3560, %v4377, 0
      %v4443 = vsel %vm3560, %v4379, 0
      %v4445 = vsel %vm3560, %v4381, 0
      %v4447 = vsel %vm3560, %v4383, 0
      %v4449 = vsel %vm3560, %v4385, 0
      %v4451 = vsel %vm3560, %v4387, 0
      %v4453 = vsel %vm3560, %v4389, 0
      %v4455 = vsel %vm3560, %v4391, 0
      %v4457 = vsel %vm3560, %v4393, 0
      %v4459 = vsel %vm3560, %v4395, 0
      %v4461 = vsel %vm3560, %v4397, 0
      %v4463 = vsel %vm3560, %v4399, 0
      %4465 = vmatprep.subr.bf16.mxu0 0
      %4466 = vmatpush1.bf16.msra.mxu0 %v4431
      %4467 = vmatprep.subr.bf16.mxu0 0
      %4468 = vmatpush1.bf16.msra.mxu0 %v4432
      %4469 = vmatprep.subr.bf16.mxu0 0
      %4470 = vmatpush1.bf16.msra.mxu0 %v4433
      %4471 = vmatprep.subr.bf16.mxu0 0
      %4472 = vmatpush1.bf16.msra.mxu0 %v4434
      %4473 = vmatprep.subr.bf16.mxu0 0
      %4474 = vmatpush1.bf16.msra.mxu0 %v4435
      %4475 = vmatprep.subr.bf16.mxu0 0
      %4476 = vmatpush1.bf16.msra.mxu0 0
      %4477 = vmatprep.subr.bf16.mxu0 0
      %4478 = vmatpush1.bf16.msra.mxu0 0
      %4479 = vmatprep.subr.bf16.mxu0 0
      %4480 = vmatpush1.bf16.msra.mxu0 0
      %4481 = vmatprep.subr.bf16.mxu0 0
      %4482 = vmatpush1.bf16.msra.mxu0 0
      %4483 = vmatprep.subr.bf16.mxu0 0
      %4484 = vmatpush1.bf16.msra.mxu0 0
      %4485 = vmatprep.subr.bf16.mxu0 0
      %4486 = vmatpush1.bf16.msra.mxu0 0
      %4487 = vmatprep.subr.bf16.mxu0 0
      %4488 = vmatpush1.bf16.msra.mxu0 0
      %4489 = vmatprep.subr.bf16.mxu0 0
      %4490 = vmatpush1.bf16.msra.mxu0 0
      %4491 = vmatprep.subr.bf16.mxu0 0
      %4492 = vmatpush1.bf16.msra.mxu0 0
      %4493 = vmatprep.subr.bf16.mxu0 0
      %4494 = vmatpush1.bf16.msra.mxu0 0
      %4495 = vmatprep.subr.bf16.mxu0 0
      %4496 = vmatpush1.bf16.msra.mxu0 0
      %4497 = vmatprep.mubr.bf16.mxu0 0
      %4498 = vmatmul.mubr.bf16.gmra.mrb[0].mxu0 %v4441
      %v4499 = vpop.f32.mrb[0].mxu0
      %v4500 = vadd.f32 0.0, %v4499
      %v4501 = vpop.f32.mrb[0].mxu0
      %v4502 = vpop.f32.mrb[0].mxu0
      %v4503 = vadd.f32 0.0, %v4502
      %v4504 = vpop.f32.mrb[0].mxu0
      %4505 = vmatprep.mubr.bf16.mxu0 0
      %4506 = vmatmul.mubr.bf16.gmra.mrb[0].mxu0 %v4443
      %v4507 = vpop.f32.mrb[0].mxu0
      %v4508 = vadd.f32 0.0, %v4507
      %v4509 = vpop.f32.mrb[0].mxu0
      %v4510 = vpop.f32.mrb[0].mxu0
      %v4511 = vadd.f32 0.0, %v4510
      %v4512 = vpop.f32.mrb[0].mxu0
      %4513 = vmatprep.mubr.bf16.mxu0 0
      %4514 = vmatmul.mubr.bf16.gmra.mrb[0].mxu0 %v4445
      %v4515 = vpop.f32.mrb[0].mxu0
      %v4516 = vadd.f32 0.0, %v4515
      %v4517 = vpop.f32.mrb[0].mxu0
      %v4518 = vpop.f32.mrb[0].mxu0
      %v4519 = vadd.f32 0.0, %v4518
      %v4520 = vpop.f32.mrb[0].mxu0
      %4521 = vmatprep.mubr.bf16.mxu0 0
      %4522 = vmatmul.mubr.bf16.gmra.mrb[0].mxu0 %v4447
      %v4523 = vpop.f32.mrb[0].mxu0
      %v4524 = vadd.f32 0.0, %v4523
      %v4525 = vpop.f32.mrb[0].mxu0
      %v4526 = vpop.f32.mrb[0].mxu0
      %v4527 = vadd.f32 0.0, %v4526
      %v4528 = vpop.f32.mrb[0].mxu0
      %4529 = vmatprep.mubr.bf16.mxu0 0
      %4530 = vmatmul.mubr.bf16.gmra.mrb[0].mxu0 %v4449
      %v4531 = vpop.f32.mrb[0].mxu0
      %v4532 = vadd.f32 0.0, %v4531
      %v4533 = vpop.f32.mrb[0].mxu0
      %v4534 = vpop.f32.mrb[0].mxu0
      %v4535 = vadd.f32 0.0, %v4534
      %v4536 = vpop.f32.mrb[0].mxu0
      %4537 = vmatprep.mubr.bf16.mxu0 0
      %4538 = vmatmul.mubr.bf16.gmra.mrb[0].mxu0 %v4451
      %v4539 = vpop.f32.mrb[0].mxu0
      %v4540 = vadd.f32 0.0, %v4539
      %v4541 = vpop.f32.mrb[0].mxu0
      %v4542 = vpop.f32.mrb[0].mxu0
      %v4543 = vadd.f32 0.0, %v4542
      %v4544 = vpop.f32.mrb[0].mxu0
      %4545 = vmatprep.mubr.bf16.mxu0 0
      %4546 = vmatmul.mubr.bf16.gmra.mrb[0].mxu0 %v4453
      %v4547 = vpop.f32.mrb[0].mxu0
      %v4548 = vadd.f32 0.0, %v4547
      %v4549 = vpop.f32.mrb[0].mxu0
      %v4550 = vpop.f32.mrb[0].mxu0
      %v4551 = vadd.f32 0.0, %v4550
      %v4552 = vpop.f32.mrb[0].mxu0
      %4553 = vmatprep.mubr.bf16.mxu0 0
      %4554 = vmatmul.mubr.bf16.gmra.mrb[0].mxu0 %v4455
      %v4555 = vpop.f32.mrb[0].mxu0
      %v4556 = vadd.f32 0.0, %v4555
      %v4557 = vpop.f32.mrb[0].mxu0
      %v4558 = vpop.f32.mrb[0].mxu0
      %v4559 = vadd.f32 0.0, %v4558
      %v4560 = vpop.f32.mrb[0].mxu0
      %4561 = vmatprep.mubr.bf16.mxu0 0
      %4562 = vmatmul.mubr.bf16.gmra.mrb[0].mxu0 %v4457
      %v4563 = vpop.f32.mrb[0].mxu0
      %v4564 = vadd.f32 0.0, %v4563
      %v4565 = vpop.f32.mrb[0].mxu0
      %v4566 = vpop.f32.mrb[0].mxu0
      %v4567 = vadd.f32 0.0, %v4566
      %v4568 = vpop.f32.mrb[0].mxu0
      %4569 = vmatprep.mubr.bf16.mxu0 0
      %4570 = vmatmul.mubr.bf16.gmra.mrb[0].mxu0 %v4459
      %v4571 = vpop.f32.mrb[0].mxu0
      %v4572 = vadd.f32 0.0, %v4571
      %v4573 = vpop.f32.mrb[0].mxu0
      %v4574 = vpop.f32.mrb[0].mxu0
      %v4575 = vadd.f32 0.0, %v4574
      %v4576 = vpop.f32.mrb[0].mxu0
      %4577 = vmatprep.mubr.bf16.mxu0 0
      %4578 = vmatmul.mubr.bf16.gmra.mrb[0].mxu0 %v4461
      %v4579 = vpop.f32.mrb[0].mxu0
      %v4580 = vadd.f32 0.0, %v4579
      %v4581 = vpop.f32.mrb[0].mxu0
      %v4582 = vpop.f32.mrb[0].mxu0
      %v4583 = vadd.f32 0.0, %v4582
      %v4584 = vpop.f32.mrb[0].mxu0
      %4585 = vmatprep.mubr.bf16.mxu0 0
      %4586 = vmatmul.mubr.bf16.gmra.mrb[0].mxu0 %v4463
      %v4587 = vpop.f32.mrb[0].mxu0
      %v4588 = vadd.f32 0.0, %v4587
      %v4589 = vpop.f32.mrb[0].mxu0
      %v4590 = vpop.f32.mrb[0].mxu0
      %v4591 = vadd.f32 0.0, %v4590
      %v4592 = vpop.f32.mrb[0].mxu0
      %4593 = vdwg.mxu0
      %v4594 = vadd.f32 %v3803, %v4500
      %v4595 = vadd.f32 %v3806, %v4503
      %v4596 = vadd.f32 %v3811, %v4508
      %v4597 = vadd.f32 %v3814, %v4511
      %v4598 = vadd.f32 %v3819, %v4516
      %v4599 = vadd.f32 %v3822, %v4519
      %v4600 = vadd.f32 %v3827, %v4524
      %v4601 = vadd.f32 %v3830, %v4527
      %v4602 = vadd.f32 %v3835, %v4532
      %v4603 = vadd.f32 %v3838, %v4535
      %v4604 = vadd.f32 %v3843, %v4540
      %v4605 = vadd.f32 %v3846, %v4543
      %v4606 = vadd.f32 %v3851, %v4548
      %v4607 = vadd.f32 %v3854, %v4551
      %v4608 = vadd.f32 %v3859, %v4556
      %v4609 = vadd.f32 %v3862, %v4559
      %v4610 = vadd.f32 %v3867, %v4564
      %v4611 = vadd.f32 %v3870, %v4567
      %v4612 = vadd.f32 %v3875, %v4572
      %v4613 = vadd.f32 %v3878, %v4575
      %v4614 = vadd.f32 %v3883, %v4580
      %v4615 = vadd.f32 %v3886, %v4583
      %v4616 = vadd.f32 %v3891, %v4588
      %v4617 = vadd.f32 %v3894, %v4591
      %v4618 = vld [vmem:[#allocation2 + $0x24] sm:$0xf]
      %v4619 = vld [vmem:[#allocation2 + $0x28] sm:$0xf]
      %v4620 = vld [vmem:[#allocation2 + $0x2c] sm:$0xf]
      %v4621 = vld [vmem:[#allocation2 + $0x30] sm:$0xf]
      %v4622 = vld [vmem:[#allocation2 + $0x34] sm:$0xf]
      %v4623 = vld [vmem:[#allocation2 + $0x38] sm:$0xf]
      %v4624 = vld [vmem:[#allocation2 + $0x3c] sm:$0xf]
      %v4625 = vld [vmem:[#allocation2 + $0x40] sm:$0xf]
      %v4626 = vld [vmem:[#allocation2 + $0x44] sm:$0xf]
      %v4627 = vld [vmem:[#allocation2 + $0x48] sm:$0xf]
      %v4628 = vld [vmem:[#allocation2 + $0x4c] sm:$0xf]
      %v4629 = vld [vmem:[#allocation2 + $0x50] sm:$0xf]
      %v4630 = vld [vmem:[#allocation2 + $0x54] sm:$0xf]
      %v4631 = vld [vmem:[#allocation2 + $0x58] sm:$0xf]
      %v4632 = vld [vmem:[#allocation2 + $0x5c] sm:$0xf]
      %v4633 = vld [vmem:[#allocation2 + $0x60] sm:$0xf]
      %v4634 = vld [vmem:[#allocation2 + $0x64] sm:$0xf]
      %v4635 = vld [vmem:[#allocation2 + $0x68] sm:$0xf]
      %v4636 = vld [vmem:[#allocation2 + $0x6c] sm:$0xf]
      %v4637 = vld [vmem:[#allocation2 + $0x70] sm:$0xf]
      %v4638 = vld [vmem:[#allocation2 + $0x74] sm:$0xf]
      %v4639 = vld [vmem:[#allocation2 + $0x78] sm:$0xf]
      %v4640 = vld [vmem:[#allocation2 + $0x7c] sm:$0xf]
      %v4641 = vld [vmem:[#allocation2 + $0x80] sm:$0xf]
      %v4642 = vld [vmem:[#allocation2 + $0x84] sm:$0x1]
      %v4643 = vld [vmem:[#allocation2 + $0x24] sm:$0xe]
      %v4644 = vld [vmem:[#allocation2 + $0x84] sm:$0x3]
      %v4645 = vld [vmem:[#allocation2 + $0x24] sm:$0xc]
      %v4670 = vunpack.c.l.b16 %v4618
      %v4671 = vunpack.c.l.b16 %v4619
      %v4672 = vunpack.c.l.b16 %v4620
      %v4673 = vunpack.c.l.b16 %v4621
      %v4674 = vunpack.c.l.b16 %v4622
      %v4675 = vunpack.c.l.b16 %v4623
      %v4676 = vunpack.c.l.b16 %v4624
      %v4677 = vunpack.c.l.b16 %v4625
      %v4678 = vunpack.c.l.b16 %v4626
      %v4679 = vunpack.c.l.b16 %v4627
      %v4680 = vunpack.c.l.b16 %v4628
      %v4681 = vunpack.c.l.b16 %v4629
      %v4682 = vunpack.c.l.b16 %v4630
      %v4683 = vunpack.c.l.b16 %v4631
      %v4684 = vunpack.c.l.b16 %v4632
      %v4685 = vunpack.c.l.b16 %v4633
      %v4686 = vunpack.c.l.b16 %v4634
      %v4687 = vunpack.c.l.b16 %v4635
      %v4688 = vunpack.c.l.b16 %v4636
      %v4689 = vunpack.c.l.b16 %v4637
      %v4690 = vunpack.c.l.b16 %v4638
      %v4691 = vunpack.c.l.b16 %v4639
      %v4692 = vunpack.c.l.b16 %v4640
      %v4693 = vunpack.c.l.b16 %v4641
      %v4694 = vpack.c.b16 %v4671, %v4670
      %v4695 = vpack.c.b16 %v4673, %v4672
      %v4696 = vpack.c.b16 %v4675, %v4674
      %v4697 = vpack.c.b16 %v4677, %v4676
      %v4698 = vpack.c.b16 %v4679, %v4678
      %v4699 = vpack.c.b16 %v4681, %v4680
      %v4700 = vpack.c.b16 %v4683, %v4682
      %v4701 = vpack.c.b16 %v4685, %v4684
      %v4702 = vpack.c.b16 %v4687, %v4686
      %v4703 = vpack.c.b16 %v4689, %v4688
      %v4704 = vpack.c.b16 %v4691, %v4690
      %v4705 = vpack.c.b16 %v4693, %v4692
      %v4707 = vunpack.c.l.b16 %v4642
      %v4708 = vpack.c.b16 %v4707, %v4707
      %v4710 = vshrl.u32 %v4694, 16
      %v4712 = vshll.u32 %v4694, 16
      %v4714 = vrot.slane %v4712, 1
      %v4715 = vor.u32 %v4710, %v4714
      %v4717 = vshll.u32 %v4695, 16
      %v4719 = vrot.slane %v4717, 1
      %v4720 = vsel %vm2649, %v4715, %v4719
      %v4721 = vshrl.u32 %v4695, 16
      %v4723 = vor.u32 %v4721, %v4719
      %v4725 = vshll.u32 %v4696, 16
      %v4727 = vrot.slane %v4725, 1
      %v4728 = vsel %vm2649, %v4723, %v4727
      %v4729 = vshrl.u32 %v4696, 16
      %v4731 = vor.u32 %v4729, %v4727
      %v4733 = vshll.u32 %v4697, 16
      %v4735 = vrot.slane %v4733, 1
      %v4736 = vsel %vm2649, %v4731, %v4735
      %v4737 = vshrl.u32 %v4697, 16
      %v4739 = vor.u32 %v4737, %v4735
      %v4741 = vshll.u32 %v4698, 16
      %v4743 = vrot.slane %v4741, 1
      %v4744 = vsel %vm2649, %v4739, %v4743
      %v4745 = vshrl.u32 %v4698, 16
      %v4747 = vor.u32 %v4745, %v4743
      %v4749 = vshll.u32 %v4699, 16
      %v4751 = vrot.slane %v4749, 1
      %v4752 = vsel %vm2649, %v4747, %v4751
      %v4753 = vshrl.u32 %v4699, 16
      %v4755 = vor.u32 %v4753, %v4751
      %v4757 = vshll.u32 %v4700, 16
      %v4759 = vrot.slane %v4757, 1
      %v4760 = vsel %vm2649, %v4755, %v4759
      %v4761 = vshrl.u32 %v4700, 16
      %v4763 = vor.u32 %v4761, %v4759
      %v4765 = vshll.u32 %v4701, 16
      %v4767 = vrot.slane %v4765, 1
      %v4768 = vsel %vm2649, %v4763, %v4767
      %v4769 = vshrl.u32 %v4701, 16
      %v4771 = vor.u32 %v4769, %v4767
      %v4773 = vshll.u32 %v4702, 16
      %v4775 = vrot.slane %v4773, 1
      %v4776 = vsel %vm2649, %v4771, %v4775
      %v4777 = vshrl.u32 %v4702, 16
      %v4779 = vor.u32 %v4777, %v4775
      %v4781 = vshll.u32 %v4703, 16
      %v4783 = vrot.slane %v4781, 1
      %v4784 = vsel %vm2649, %v4779, %v4783
      %v4785 = vshrl.u32 %v4703, 16
      %v4787 = vor.u32 %v4785, %v4783
      %v4789 = vshll.u32 %v4704, 16
      %v4791 = vrot.slane %v4789, 1
      %v4792 = vsel %vm2649, %v4787, %v4791
      %v4793 = vshrl.u32 %v4704, 16
      %v4795 = vor.u32 %v4793, %v4791
      %v4797 = vshll.u32 %v4705, 16
      %v4799 = vrot.slane %v4797, 1
      %v4800 = vsel %vm2649, %v4795, %v4799
      %v4801 = vshrl.u32 %v4705, 16
      %v4803 = vor.u32 %v4801, %v4799
      %v4805 = vshll.u32 %v4708, 16
      %v4807 = vrot.slane %v4805, 1
      %v4808 = vsel %vm2649, %v4803, %v4807
      %4809 = vrot.lane.b32.xlu0 %v4720, 16
      %v4810 = vpop.permute.xlu0 %4809
      %4811 = vrot.lane.b32.xlu0 %v4728, 16
      %v4812 = vpop.permute.xlu0 %4811
      %4813 = vrot.lane.b32.xlu0 %v4736, 16
      %v4814 = vpop.permute.xlu0 %4813
      %4815 = vrot.lane.b32.xlu0 %v4744, 16
      %v4816 = vpop.permute.xlu0 %4815
      %4817 = vrot.lane.b32.xlu0 %v4752, 16
      %v4818 = vpop.permute.xlu0 %4817
      %4819 = vrot.lane.b32.xlu0 %v4760, 16
      %v4820 = vpop.permute.xlu0 %4819
      %4821 = vrot.lane.b32.xlu0 %v4768, 16
      %v4822 = vpop.permute.xlu0 %4821
      %4823 = vrot.lane.b32.xlu0 %v4776, 16
      %v4824 = vpop.permute.xlu0 %4823
      %4825 = vrot.lane.b32.xlu0 %v4784, 16
      %v4826 = vpop.permute.xlu0 %4825
      %4827 = vrot.lane.b32.xlu0 %v4792, 16
      %v4828 = vpop.permute.xlu0 %4827
      %4829 = vrot.lane.b32.xlu0 %v4800, 16
      %v4830 = vpop.permute.xlu0 %4829
      %4831 = vrot.lane.b32.xlu0 %v4808, 16
      %v4832 = vpop.permute.xlu0 %4831
      %v4834 = vunpack.c.l.b16 %v4643
      %v4835 = vpack.c.b16 %v4671, %v4834
      %v4836 = vrot.slane %v4835, 1
      %v4837 = vrot.slane %v4695, 1
      %v4838 = vsel %vm2777, %v4836, %v4837
      %v4839 = vrot.slane %v4696, 1
      %v4840 = vsel %vm2777, %v4837, %v4839
      %v4841 = vrot.slane %v4697, 1
      %v4842 = vsel %vm2777, %v4839, %v4841
      %v4843 = vrot.slane %v4698, 1
      %v4844 = vsel %vm2777, %v4841, %v4843
      %v4845 = vrot.slane %v4699, 1
      %v4846 = vsel %vm2777, %v4843, %v4845
      %v4847 = vrot.slane %v4700, 1
      %v4848 = vsel %vm2777, %v4845, %v4847
      %v4849 = vrot.slane %v4701, 1
      %v4850 = vsel %vm2777, %v4847, %v4849
      %v4851 = vrot.slane %v4702, 1
      %v4852 = vsel %vm2777, %v4849, %v4851
      %v4853 = vrot.slane %v4703, 1
      %v4854 = vsel %vm2777, %v4851, %v4853
      %v4855 = vrot.slane %v4704, 1
      %v4856 = vsel %vm2777, %v4853, %v4855
      %v4857 = vrot.slane %v4705, 1
      %v4858 = vsel %vm2777, %v4855, %v4857
      %v4859 = vrot.slane %v4708, 1
      %v4860 = vsel %vm2777, %v4857, %v4859
      %4861 = vrot.lane.b32.xlu0 %v4838, 32
      %v4862 = vpop.permute.xlu0 %4861
      %4863 = vrot.lane.b32.xlu0 %v4840, 32
      %v4864 = vpop.permute.xlu0 %4863
      %4865 = vrot.lane.b32.xlu0 %v4842, 32
      %v4866 = vpop.permute.xlu0 %4865
      %4867 = vrot.lane.b32.xlu0 %v4844, 32
      %v4868 = vpop.permute.xlu0 %4867
      %4869 = vrot.lane.b32.xlu0 %v4846, 32
      %v4870 = vpop.permute.xlu0 %4869
      %4871 = vrot.lane.b32.xlu0 %v4848, 32
      %v4872 = vpop.permute.xlu0 %4871
      %4873 = vrot.lane.b32.xlu0 %v4850, 32
      %v4874 = vpop.permute.xlu0 %4873
      %4875 = vrot.lane.b32.xlu0 %v4852, 32
      %v4876 = vpop.permute.xlu0 %4875
      %4877 = vrot.lane.b32.xlu0 %v4854, 32
      %v4878 = vpop.permute.xlu0 %4877
      %4879 = vrot.lane.b32.xlu0 %v4856, 32
      %v4880 = vpop.permute.xlu0 %4879
      %4881 = vrot.lane.b32.xlu0 %v4858, 32
      %v4882 = vpop.permute.xlu0 %4881
      %4883 = vrot.lane.b32.xlu0 %v4860, 32
      %v4884 = vpop.permute.xlu0 %4883
      %v4886 = vunpack.c.l.b16 %v4644
      %v4887 = vpack.c.b16 %v4886, %v4886
      %v4889 = vshrl.u32 %v4835, 16
      %v4891 = vrot.slane %v4889, 1
      %v4892 = vshll.u32 %v4835, 16
      %v4894 = vrot.slane %v4892, 2
      %v4895 = vor.u32 %v4891, %v4894
      %v4896 = vrot.slane %v4721, 1
      %v4897 = vrot.slane %v4717, 2
      %v4898 = vor.u32 %v4896, %v4897
      %v4899 = vsel %vm2830, %v4895, %v4898
      %v4900 = vrot.slane %v4729, 1
      %v4901 = vrot.slane %v4725, 2
      %v4902 = vor.u32 %v4900, %v4901
      %v4903 = vsel %vm2830, %v4898, %v4902
      %v4904 = vrot.slane %v4737, 1
      %v4905 = vrot.slane %v4733, 2
      %v4906 = vor.u32 %v4904, %v4905
      %v4907 = vsel %vm2830, %v4902, %v4906
      %v4908 = vrot.slane %v4745, 1
      %v4909 = vrot.slane %v4741, 2
      %v4910 = vor.u32 %v4908, %v4909
      %v4911 = vsel %vm2830, %v4906, %v4910
      %v4912 = vrot.slane %v4753, 1
      %v4913 = vrot.slane %v4749, 2
      %v4914 = vor.u32 %v4912, %v4913
      %v4915 = vsel %vm2830, %v4910, %v4914
      %v4916 = vrot.slane %v4761, 1
      %v4917 = vrot.slane %v4757, 2
      %v4918 = vor.u32 %v4916, %v4917
      %v4919 = vsel %vm2830, %v4914, %v4918
      %v4920 = vrot.slane %v4769, 1
      %v4921 = vrot.slane %v4765, 2
      %v4922 = vor.u32 %v4920, %v4921
      %v4923 = vsel %vm2830, %v4918, %v4922
      %v4924 = vrot.slane %v4777, 1
      %v4925 = vrot.slane %v4773, 2
      %v4926 = vor.u32 %v4924, %v4925
      %v4927 = vsel %vm2830, %v4922, %v4926
      %v4928 = vrot.slane %v4785, 1
      %v4929 = vrot.slane %v4781, 2
      %v4930 = vor.u32 %v4928, %v4929
      %v4931 = vsel %vm2830, %v4926, %v4930
      %v4932 = vrot.slane %v4793, 1
      %v4933 = vrot.slane %v4789, 2
      %v4934 = vor.u32 %v4932, %v4933
      %v4935 = vsel %vm2830, %v4930, %v4934
      %v4936 = vrot.slane %v4801, 1
      %v4937 = vrot.slane %v4797, 2
      %v4938 = vor.u32 %v4936, %v4937
      %v4939 = vsel %vm2830, %v4934, %v4938
      %v4941 = vshrl.u32 %v4887, 16
      %v4943 = vrot.slane %v4941, 1
      %v4944 = vshll.u32 %v4887, 16
      %v4946 = vrot.slane %v4944, 2
      %v4947 = vor.u32 %v4943, %v4946
      %v4948 = vsel %vm2830, %v4938, %v4947
      %4949 = vrot.lane.b32.xlu0 %v4899, 48
      %v4950 = vpop.permute.xlu0 %4949
      %4951 = vrot.lane.b32.xlu0 %v4903, 48
      %v4952 = vpop.permute.xlu0 %4951
      %4953 = vrot.lane.b32.xlu0 %v4907, 48
      %v4954 = vpop.permute.xlu0 %4953
      %4955 = vrot.lane.b32.xlu0 %v4911, 48
      %v4956 = vpop.permute.xlu0 %4955
      %4957 = vrot.lane.b32.xlu0 %v4915, 48
      %v4958 = vpop.permute.xlu0 %4957
      %4959 = vrot.lane.b32.xlu0 %v4919, 48
      %v4960 = vpop.permute.xlu0 %4959
      %4961 = vrot.lane.b32.xlu0 %v4923, 48
      %v4962 = vpop.permute.xlu0 %4961
      %4963 = vrot.lane.b32.xlu0 %v4927, 48
      %v4964 = vpop.permute.xlu0 %4963
      %4965 = vrot.lane.b32.xlu0 %v4931, 48
      %v4966 = vpop.permute.xlu0 %4965
      %4967 = vrot.lane.b32.xlu0 %v4935, 48
      %v4968 = vpop.permute.xlu0 %4967
      %4969 = vrot.lane.b32.xlu0 %v4939, 48
      %v4970 = vpop.permute.xlu0 %4969
      %4971 = vrot.lane.b32.xlu0 %v4948, 48
      %v4972 = vpop.permute.xlu0 %4971
      %v4974 = vunpack.c.l.b16 %v4645
      %v4975 = vpack.c.b16 %v4671, %v4974
      %v4976 = vrot.slane %v4975, 2
      %v4977 = vrot.slane %v4695, 2
      %v4978 = vsel %vm2919, %v4976, %v4977
      %v4979 = vrot.slane %v4696, 2
      %v4980 = vsel %vm2919, %v4977, %v4979
      %v4981 = vrot.slane %v4697, 2
      %v4982 = vsel %vm2919, %v4979, %v4981
      %v4983 = vrot.slane %v4698, 2
      %v4984 = vsel %vm2919, %v4981, %v4983
      %v4985 = vrot.slane %v4699, 2
      %v4986 = vsel %vm2919, %v4983, %v4985
      %v4987 = vrot.slane %v4700, 2
      %v4988 = vsel %vm2919, %v4985, %v4987
      %v4989 = vrot.slane %v4701, 2
      %v4990 = vsel %vm2919, %v4987, %v4989
      %v4991 = vrot.slane %v4702, 2
      %v4992 = vsel %vm2919, %v4989, %v4991
      %v4993 = vrot.slane %v4703, 2
      %v4994 = vsel %vm2919, %v4991, %v4993
      %v4995 = vrot.slane %v4704, 2
      %v4996 = vsel %vm2919, %v4993, %v4995
      %v4997 = vrot.slane %v4705, 2
      %v4998 = vsel %vm2919, %v4995, %v4997
      %v4999 = vrot.slane %v4887, 2
      %v5000 = vsel %vm2919, %v4997, %v4999
      %5001 = vrot.lane.b32.xlu0 %v4978, 64
      %v5002 = vpop.permute.xlu0 %5001
      %5003 = vrot.lane.b32.xlu0 %v4980, 64
      %v5004 = vpop.permute.xlu0 %5003
      %5005 = vrot.lane.b32.xlu0 %v4982, 64
      %v5006 = vpop.permute.xlu0 %5005
      %5007 = vrot.lane.b32.xlu0 %v4984, 64
      %v5008 = vpop.permute.xlu0 %5007
      %5009 = vrot.lane.b32.xlu0 %v4986, 64
      %v5010 = vpop.permute.xlu0 %5009
      %5011 = vrot.lane.b32.xlu0 %v4988, 64
      %v5012 = vpop.permute.xlu0 %5011
      %5013 = vrot.lane.b32.xlu0 %v4990, 64
      %v5014 = vpop.permute.xlu0 %5013
      %5015 = vrot.lane.b32.xlu0 %v4992, 64
      %v5016 = vpop.permute.xlu0 %5015
      %5017 = vrot.lane.b32.xlu0 %v4994, 64
      %v5018 = vpop.permute.xlu0 %5017
      %5019 = vrot.lane.b32.xlu0 %v4996, 64
      %v5020 = vpop.permute.xlu0 %5019
      %5021 = vrot.lane.b32.xlu0 %v4998, 64
      %v5022 = vpop.permute.xlu0 %5021
      %5023 = vrot.lane.b32.xlu0 %v5000, 64
      %v5024 = vpop.permute.xlu0 %5023
      %v5026 = vsel %vm2969, %v4694, %v4810
      %v5028 = vsel %vm2969, %v4695, %v4812
      %v5030 = vsel %vm2969, %v4696, %v4814
      %v5032 = vsel %vm2969, %v4697, %v4816
      %v5034 = vsel %vm2969, %v4698, %v4818
      %v5036 = vsel %vm2969, %v4699, %v4820
      %v5038 = vsel %vm2969, %v4700, %v4822
      %v5040 = vsel %vm2969, %v4701, %v4824
      %v5042 = vsel %vm2969, %v4702, %v4826
      %v5044 = vsel %vm2969, %v4703, %v4828
      %v5046 = vsel %vm2969, %v4704, %v4830
      %v5048 = vsel %vm2969, %v4705, %v4832
      %v5050 = vsel %vm2994, %v5026, %v4862
      %v5052 = vsel %vm2994, %v5028, %v4864
      %v5054 = vsel %vm2994, %v5030, %v4866
      %v5056 = vsel %vm2994, %v5032, %v4868
      %v5058 = vsel %vm2994, %v5034, %v4870
      %v5060 = vsel %vm2994, %v5036, %v4872
      %v5062 = vsel %vm2994, %v5038, %v4874
      %v5064 = vsel %vm2994, %v5040, %v4876
      %v5066 = vsel %vm2994, %v5042, %v4878
      %v5068 = vsel %vm2994, %v5044, %v4880
      %v5070 = vsel %vm2994, %v5046, %v4882
      %v5072 = vsel %vm2994, %v5048, %v4884
      %v5074 = vsel %vm3019, %v5050, %v4950
      %v5076 = vsel %vm3019, %v5052, %v4952
      %v5078 = vsel %vm3019, %v5054, %v4954
      %v5080 = vsel %vm3019, %v5056, %v4956
      %v5082 = vsel %vm3019, %v5058, %v4958
      %v5084 = vsel %vm3019, %v5060, %v4960
      %v5086 = vsel %vm3019, %v5062, %v4962
      %v5088 = vsel %vm3019, %v5064, %v4964
      %v5090 = vsel %vm3019, %v5066, %v4966
      %v5092 = vsel %vm3019, %v5068, %v4968
      %v5094 = vsel %vm3019, %v5070, %v4970
      %v5096 = vsel %vm3019, %v5072, %v4972
      %v5098 = vsel %vm3044, %v5074, %v5002
      %v5100 = vsel %vm3044, %v5076, %v5004
      %v5102 = vsel %vm3044, %v5078, %v5006
      %v5104 = vsel %vm3044, %v5080, %v5008
      %v5106 = vsel %vm3044, %v5082, %v5010
      %v5108 = vsel %vm3044, %v5084, %v5012
      %v5110 = vsel %vm3044, %v5086, %v5014
      %v5112 = vsel %vm3044, %v5088, %v5016
      %v5114 = vsel %vm3044, %v5090, %v5018
      %v5116 = vsel %vm3044, %v5092, %v5020
      %v5118 = vsel %vm3044, %v5094, %v5022
      %v5120 = vsel %vm3044, %v5096, %v5024
      %s5121 = scalar_lea.vmem %s5, 120
      %v5122 = vld [vmem:[%s5121] sm:$0xf]
      %v5123 = vld [vmem:[%s5121 + $0x4] sm:$0xf]
      %v5124 = vld [vmem:[%s5121 + $0x8] sm:$0xf]
      %v5125 = vld [vmem:[%s5121 + $0xc] sm:$0xf]
      %v5126 = vld [vmem:[%s5121 + $0x10] sm:$0xf]
      %v5127 = vld [vmem:[%s5121 + $0x14] sm:$0xf]
      %v5128 = vld [vmem:[%s5121 + $0x18] sm:$0xf]
      %v5129 = vld [vmem:[%s5121 + $0x1c] sm:$0xf]
      %v5130 = vld [vmem:[%s5121 + $0x20] sm:$0xf]
      %v5131 = vld [vmem:[%s5121 + $0x24] sm:$0xf]
      %v5142 = vunpack.c.l.b16 %v5122
      %v5143 = vunpack.c.l.b16 %v5123
      %v5144 = vunpack.c.l.b16 %v5124
      %v5145 = vunpack.c.l.b16 %v5125
      %v5146 = vunpack.c.l.b16 %v5126
      %v5147 = vunpack.c.l.b16 %v5127
      %v5148 = vunpack.c.l.b16 %v5128
      %v5149 = vunpack.c.l.b16 %v5129
      %v5150 = vunpack.c.l.b16 %v5130
      %v5151 = vunpack.c.l.b16 %v5131
      %v5152 = vpack.c.b16 %v5143, %v5142
      %v5153 = vpack.c.b16 %v5145, %v5144
      %v5154 = vpack.c.b16 %v5147, %v5146
      %v5155 = vpack.c.b16 %v5149, %v5148
      %v5156 = vpack.c.b16 %v5151, %v5150
      %v5162 = vsel %vm3560, %v5098, 0
      %v5164 = vsel %vm3560, %v5100, 0
      %v5166 = vsel %vm3560, %v5102, 0
      %v5168 = vsel %vm3560, %v5104, 0
      %v5170 = vsel %vm3560, %v5106, 0
      %v5172 = vsel %vm3560, %v5108, 0
      %v5174 = vsel %vm3560, %v5110, 0
      %v5176 = vsel %vm3560, %v5112, 0
      %v5178 = vsel %vm3560, %v5114, 0
      %v5180 = vsel %vm3560, %v5116, 0
      %v5182 = vsel %vm3560, %v5118, 0
      %v5184 = vsel %vm3560, %v5120, 0
      %5186 = vmatprep.subr.bf16.mxu0 0
      %5187 = vmatpush1.bf16.msra.mxu0 %v5152
      %5188 = vmatprep.subr.bf16.mxu0 0
      %5189 = vmatpush1.bf16.msra.mxu0 %v5153
      %5190 = vmatprep.subr.bf16.mxu0 0
      %5191 = vmatpush1.bf16.msra.mxu0 %v5154
      %5192 = vmatprep.subr.bf16.mxu0 0
      %5193 = vmatpush1.bf16.msra.mxu0 %v5155
      %5194 = vmatprep.subr.bf16.mxu0 0
      %5195 = vmatpush1.bf16.msra.mxu0 %v5156
      %5196 = vmatprep.subr.bf16.mxu0 0
      %5197 = vmatpush1.bf16.msra.mxu0 0
      %5198 = vmatprep.subr.bf16.mxu0 0
      %5199 = vmatpush1.bf16.msra.mxu0 0
      %5200 = vmatprep.subr.bf16.mxu0 0
      %5201 = vmatpush1.bf16.msra.mxu0 0
      %5202 = vmatprep.subr.bf16.mxu0 0
      %5203 = vmatpush1.bf16.msra.mxu0 0
      %5204 = vmatprep.subr.bf16.mxu0 0
      %5205 = vmatpush1.bf16.msra.mxu0 0
      %5206 = vmatprep.subr.bf16.mxu0 0
      %5207 = vmatpush1.bf16.msra.mxu0 0
      %5208 = vmatprep.subr.bf16.mxu0 0
      %5209 = vmatpush1.bf16.msra.mxu0 0
      %5210 = vmatprep.subr.bf16.mxu0 0
      %5211 = vmatpush1.bf16.msra.mxu0 0
      %5212 = vmatprep.subr.bf16.mxu0 0
      %5213 = vmatpush1.bf16.msra.mxu0 0
      %5214 = vmatprep.subr.bf16.mxu0 0
      %5215 = vmatpush1.bf16.msra.mxu0 0
      %5216 = vmatprep.subr.bf16.mxu0 0
      %5217 = vmatpush1.bf16.msra.mxu0 0
      %5218 = vmatprep.mubr.bf16.mxu0 0
      %5219 = vmatmul.mubr.bf16.gmra.mrb[0].mxu0 %v5162
      %v5220 = vpop.f32.mrb[0].mxu0
      %v5221 = vadd.f32 0.0, %v5220
      %v5222 = vpop.f32.mrb[0].mxu0
      %v5223 = vpop.f32.mrb[0].mxu0
      %v5224 = vadd.f32 0.0, %v5223
      %v5225 = vpop.f32.mrb[0].mxu0
      %5226 = vmatprep.mubr.bf16.mxu0 0
      %5227 = vmatmul.mubr.bf16.gmra.mrb[0].mxu0 %v5164
      %v5228 = vpop.f32.mrb[0].mxu0
      %v5229 = vadd.f32 0.0, %v5228
      %v5230 = vpop.f32.mrb[0].mxu0
      %v5231 = vpop.f32.mrb[0].mxu0
      %v5232 = vadd.f32 0.0, %v5231
      %v5233 = vpop.f32.mrb[0].mxu0
      %5234 = vmatprep.mubr.bf16.mxu0 0
      %5235 = vmatmul.mubr.bf16.gmra.mrb[0].mxu0 %v5166
      %v5236 = vpop.f32.mrb[0].mxu0
      %v5237 = vadd.f32 0.0, %v5236
      %v5238 = vpop.f32.mrb[0].mxu0
      %v5239 = vpop.f32.mrb[0].mxu0
      %v5240 = vadd.f32 0.0, %v5239
      %v5241 = vpop.f32.mrb[0].mxu0
      %5242 = vmatprep.mubr.bf16.mxu0 0
      %5243 = vmatmul.mubr.bf16.gmra.mrb[0].mxu0 %v5168
      %v5244 = vpop.f32.mrb[0].mxu0
      %v5245 = vadd.f32 0.0, %v5244
      %v5246 = vpop.f32.mrb[0].mxu0
      %v5247 = vpop.f32.mrb[0].mxu0
      %v5248 = vadd.f32 0.0, %v5247
      %v5249 = vpop.f32.mrb[0].mxu0
      %5250 = vmatprep.mubr.bf16.mxu0 0
      %5251 = vmatmul.mubr.bf16.gmra.mrb[0].mxu0 %v5170
      %v5252 = vpop.f32.mrb[0].mxu0
      %v5253 = vadd.f32 0.0, %v5252
      %v5254 = vpop.f32.mrb[0].mxu0
      %v5255 = vpop.f32.mrb[0].mxu0
      %v5256 = vadd.f32 0.0, %v5255
      %v5257 = vpop.f32.mrb[0].mxu0
      %5258 = vmatprep.mubr.bf16.mxu0 0
      %5259 = vmatmul.mubr.bf16.gmra.mrb[0].mxu0 %v5172
      %v5260 = vpop.f32.mrb[0].mxu0
      %v5261 = vadd.f32 0.0, %v5260
      %v5262 = vpop.f32.mrb[0].mxu0
      %v5263 = vpop.f32.mrb[0].mxu0
      %v5264 = vadd.f32 0.0, %v5263
      %v5265 = vpop.f32.mrb[0].mxu0
      %5266 = vmatprep.mubr.bf16.mxu0 0
      %5267 = vmatmul.mubr.bf16.gmra.mrb[0].mxu0 %v5174
      %v5268 = vpop.f32.mrb[0].mxu0
      %v5269 = vadd.f32 0.0, %v5268
      %v5270 = vpop.f32.mrb[0].mxu0
      %v5271 = vpop.f32.mrb[0].mxu0
      %v5272 = vadd.f32 0.0, %v5271
      %v5273 = vpop.f32.mrb[0].mxu0
      %5274 = vmatprep.mubr.bf16.mxu0 0
      %5275 = vmatmul.mubr.bf16.gmra.mrb[0].mxu0 %v5176
      %v5276 = vpop.f32.mrb[0].mxu0
      %v5277 = vadd.f32 0.0, %v5276
      %v5278 = vpop.f32.mrb[0].mxu0
      %v5279 = vpop.f32.mrb[0].mxu0
      %v5280 = vadd.f32 0.0, %v5279
      %v5281 = vpop.f32.mrb[0].mxu0
      %5282 = vmatprep.mubr.bf16.mxu0 0
      %5283 = vmatmul.mubr.bf16.gmra.mrb[0].mxu0 %v5178
      %v5284 = vpop.f32.mrb[0].mxu0
      %v5285 = vadd.f32 0.0, %v5284
      %v5286 = vpop.f32.mrb[0].mxu0
      %v5287 = vpop.f32.mrb[0].mxu0
      %v5288 = vadd.f32 0.0, %v5287
      %v5289 = vpop.f32.mrb[0].mxu0
      %5290 = vmatprep.mubr.bf16.mxu0 0
      %5291 = vmatmul.mubr.bf16.gmra.mrb[0].mxu0 %v5180
      %v5292 = vpop.f32.mrb[0].mxu0
      %v5293 = vadd.f32 0.0, %v5292
      %v5294 = vpop.f32.mrb[0].mxu0
      %v5295 = vpop.f32.mrb[0].mxu0
      %v5296 = vadd.f32 0.0, %v5295
      %v5297 = vpop.f32.mrb[0].mxu0
      %5298 = vmatprep.mubr.bf16.mxu0 0
      %5299 = vmatmul.mubr.bf16.gmra.mrb[0].mxu0 %v5182
      %v5300 = vpop.f32.mrb[0].mxu0
      %v5301 = vadd.f32 0.0, %v5300
      %v5302 = vpop.f32.mrb[0].mxu0
      %v5303 = vpop.f32.mrb[0].mxu0
      %v5304 = vadd.f32 0.0, %v5303
      %v5305 = vpop.f32.mrb[0].mxu0
      %5306 = vmatprep.mubr.bf16.mxu0 0
      %5307 = vmatmul.mubr.bf16.gmra.mrb[0].mxu0 %v5184
      %v5308 = vpop.f32.mrb[0].mxu0
      %v5309 = vadd.f32 0.0, %v5308
      %v5310 = vpop.f32.mrb[0].mxu0
      %v5311 = vpop.f32.mrb[0].mxu0
      %v5312 = vadd.f32 0.0, %v5311
      %v5313 = vpop.f32.mrb[0].mxu0
      %5314 = vdwg.mxu0
      %v5315 = vadd.f32 %v4594, %v5221
      %v5316 = vadd.f32 %v4595, %v5224
      %v5317 = vadd.f32 %v4596, %v5229
      %v5318 = vadd.f32 %v4597, %v5232
      %v5319 = vadd.f32 %v4598, %v5237
      %v5320 = vadd.f32 %v4599, %v5240
      %v5321 = vadd.f32 %v4600, %v5245
      %v5322 = vadd.f32 %v4601, %v5248
      %v5323 = vadd.f32 %v4602, %v5253
      %v5324 = vadd.f32 %v4603, %v5256
      %v5325 = vadd.f32 %v4604, %v5261
      %v5326 = vadd.f32 %v4605, %v5264
      %v5327 = vadd.f32 %v4606, %v5269
      %v5328 = vadd.f32 %v4607, %v5272
      %v5329 = vadd.f32 %v4608, %v5277
      %v5330 = vadd.f32 %v4609, %v5280
      %v5331 = vadd.f32 %v4610, %v5285
      %v5332 = vadd.f32 %v4611, %v5288
      %v5333 = vadd.f32 %v4612, %v5293
      %v5334 = vadd.f32 %v4613, %v5296
      %v5335 = vadd.f32 %v4614, %v5301
      %v5336 = vadd.f32 %v4615, %v5304
      %v5337 = vadd.f32 %v4616, %v5309
      %v5338 = vadd.f32 %v4617, %v5312
      %v5339 = vld [vmem:[#allocation2 + $0x30] sm:$0xf]
      %v5340 = vld [vmem:[#allocation2 + $0x34] sm:$0xf]
      %v5341 = vld [vmem:[#allocation2 + $0x38] sm:$0xf]
      %v5342 = vld [vmem:[#allocation2 + $0x3c] sm:$0xf]
      %v5343 = vld [vmem:[#allocation2 + $0x40] sm:$0xf]
      %v5344 = vld [vmem:[#allocation2 + $0x44] sm:$0xf]
      %v5345 = vld [vmem:[#allocation2 + $0x48] sm:$0xf]
      %v5346 = vld [vmem:[#allocation2 + $0x4c] sm:$0xf]
      %v5347 = vld [vmem:[#allocation2 + $0x50] sm:$0xf]
      %v5348 = vld [vmem:[#allocation2 + $0x54] sm:$0xf]
      %v5349 = vld [vmem:[#allocation2 + $0x58] sm:$0xf]
      %v5350 = vld [vmem:[#allocation2 + $0x5c] sm:$0xf]
      %v5351 = vld [vmem:[#allocation2 + $0x60] sm:$0xf]
      %v5352 = vld [vmem:[#allocation2 + $0x64] sm:$0xf]
      %v5353 = vld [vmem:[#allocation2 + $0x68] sm:$0xf]
      %v5354 = vld [vmem:[#allocation2 + $0x6c] sm:$0xf]
      %v5355 = vld [vmem:[#allocation2 + $0x70] sm:$0xf]
      %v5356 = vld [vmem:[#allocation2 + $0x74] sm:$0xf]
      %v5357 = vld [vmem:[#allocation2 + $0x78] sm:$0xf]
      %v5358 = vld [vmem:[#allocation2 + $0x7c] sm:$0xf]
      %v5359 = vld [vmem:[#allocation2 + $0x80] sm:$0xf]
      %v5360 = vld [vmem:[#allocation2 + $0x84] sm:$0xf]
      %v5361 = vld [vmem:[#allocation2 + $0x88] sm:$0xf]
      %v5362 = vld [vmem:[#allocation2 + $0x8c] sm:$0xf]
      %v5363 = vld [vmem:[#allocation2 + $0x90] sm:$0x1]
      %v5364 = vld [vmem:[#allocation2 + $0x30] sm:$0xe]
      %v5365 = vld [vmem:[#allocation2 + $0x90] sm:$0x3]
      %v5366 = vld [vmem:[#allocation2 + $0x30] sm:$0xc]
      %v5391 = vunpack.c.l.b16 %v5339
      %v5392 = vunpack.c.l.b16 %v5340
      %v5393 = vunpack.c.l.b16 %v5341
      %v5394 = vunpack.c.l.b16 %v5342
      %v5395 = vunpack.c.l.b16 %v5343
      %v5396 = vunpack.c.l.b16 %v5344
      %v5397 = vunpack.c.l.b16 %v5345
      %v5398 = vunpack.c.l.b16 %v5346
      %v5399 = vunpack.c.l.b16 %v5347
      %v5400 = vunpack.c.l.b16 %v5348
      %v5401 = vunpack.c.l.b16 %v5349
      %v5402 = vunpack.c.l.b16 %v5350
      %v5403 = vunpack.c.l.b16 %v5351
      %v5404 = vunpack.c.l.b16 %v5352
      %v5405 = vunpack.c.l.b16 %v5353
      %v5406 = vunpack.c.l.b16 %v5354
      %v5407 = vunpack.c.l.b16 %v5355
      %v5408 = vunpack.c.l.b16 %v5356
      %v5409 = vunpack.c.l.b16 %v5357
      %v5410 = vunpack.c.l.b16 %v5358
      %v5411 = vunpack.c.l.b16 %v5359
      %v5412 = vunpack.c.l.b16 %v5360
      %v5413 = vunpack.c.l.b16 %v5361
      %v5414 = vunpack.c.l.b16 %v5362
      %v5415 = vpack.c.b16 %v5392, %v5391
      %v5416 = vpack.c.b16 %v5394, %v5393
      %v5417 = vpack.c.b16 %v5396, %v5395
      %v5418 = vpack.c.b16 %v5398, %v5397
      %v5419 = vpack.c.b16 %v5400, %v5399
      %v5420 = vpack.c.b16 %v5402, %v5401
      %v5421 = vpack.c.b16 %v5404, %v5403
      %v5422 = vpack.c.b16 %v5406, %v5405
      %v5423 = vpack.c.b16 %v5408, %v5407
      %v5424 = vpack.c.b16 %v5410, %v5409
      %v5425 = vpack.c.b16 %v5412, %v5411
      %v5426 = vpack.c.b16 %v5414, %v5413
      %v5428 = vunpack.c.l.b16 %v5363
      %v5429 = vpack.c.b16 %v5428, %v5428
      %v5431 = vshrl.u32 %v5415, 16
      %v5433 = vshll.u32 %v5415, 16
      %v5435 = vrot.slane %v5433, 1
      %v5436 = vor.u32 %v5431, %v5435
      %v5438 = vshll.u32 %v5416, 16
      %v5440 = vrot.slane %v5438, 1
      %v5441 = vsel %vm2649, %v5436, %v5440
      %v5442 = vshrl.u32 %v5416, 16
      %v5444 = vor.u32 %v5442, %v5440
      %v5446 = vshll.u32 %v5417, 16
      %v5448 = vrot.slane %v5446, 1
      %v5449 = vsel %vm2649, %v5444, %v5448
      %v5450 = vshrl.u32 %v5417, 16
      %v5452 = vor.u32 %v5450, %v5448
      %v5454 = vshll.u32 %v5418, 16
      %v5456 = vrot.slane %v5454, 1
      %v5457 = vsel %vm2649, %v5452, %v5456
      %v5458 = vshrl.u32 %v5418, 16
      %v5460 = vor.u32 %v5458, %v5456
      %v5462 = vshll.u32 %v5419, 16
      %v5464 = vrot.slane %v5462, 1
      %v5465 = vsel %vm2649, %v5460, %v5464
      %v5466 = vshrl.u32 %v5419, 16
      %v5468 = vor.u32 %v5466, %v5464
      %v5470 = vshll.u32 %v5420, 16
      %v5472 = vrot.slane %v5470, 1
      %v5473 = vsel %vm2649, %v5468, %v5472
      %v5474 = vshrl.u32 %v5420, 16
      %v5476 = vor.u32 %v5474, %v5472
      %v5478 = vshll.u32 %v5421, 16
      %v5480 = vrot.slane %v5478, 1
      %v5481 = vsel %vm2649, %v5476, %v5480
      %v5482 = vshrl.u32 %v5421, 16
      %v5484 = vor.u32 %v5482, %v5480
      %v5486 = vshll.u32 %v5422, 16
      %v5488 = vrot.slane %v5486, 1
      %v5489 = vsel %vm2649, %v5484, %v5488
      %v5490 = vshrl.u32 %v5422, 16
      %v5492 = vor.u32 %v5490, %v5488
      %v5494 = vshll.u32 %v5423, 16
      %v5496 = vrot.slane %v5494, 1
      %v5497 = vsel %vm2649, %v5492, %v5496
      %v5498 = vshrl.u32 %v5423, 16
      %v5500 = vor.u32 %v5498, %v5496
      %v5502 = vshll.u32 %v5424, 16
      %v5504 = vrot.slane %v5502, 1
      %v5505 = vsel %vm2649, %v5500, %v5504
      %v5506 = vshrl.u32 %v5424, 16
      %v5508 = vor.u32 %v5506, %v5504
      %v5510 = vshll.u32 %v5425, 16
      %v5512 = vrot.slane %v5510, 1
      %v5513 = vsel %vm2649, %v5508, %v5512
      %v5514 = vshrl.u32 %v5425, 16
      %v5516 = vor.u32 %v5514, %v5512
      %v5518 = vshll.u32 %v5426, 16
      %v5520 = vrot.slane %v5518, 1
      %v5521 = vsel %vm2649, %v5516, %v5520
      %v5522 = vshrl.u32 %v5426, 16
      %v5524 = vor.u32 %v5522, %v5520
      %v5526 = vshll.u32 %v5429, 16
      %v5528 = vrot.slane %v5526, 1
      %v5529 = vsel %vm2649, %v5524, %v5528
      %5530 = vrot.lane.b32.xlu0 %v5441, 16
      %v5531 = vpop.permute.xlu0 %5530
      %5532 = vrot.lane.b32.xlu0 %v5449, 16
      %v5533 = vpop.permute.xlu0 %5532
      %5534 = vrot.lane.b32.xlu0 %v5457, 16
      %v5535 = vpop.permute.xlu0 %5534
      %5536 = vrot.lane.b32.xlu0 %v5465, 16
      %v5537 = vpop.permute.xlu0 %5536
      %5538 = vrot.lane.b32.xlu0 %v5473, 16
      %v5539 = vpop.permute.xlu0 %5538
      %5540 = vrot.lane.b32.xlu0 %v5481, 16
      %v5541 = vpop.permute.xlu0 %5540
      %5542 = vrot.lane.b32.xlu0 %v5489, 16
      %v5543 = vpop.permute.xlu0 %5542
      %5544 = vrot.lane.b32.xlu0 %v5497, 16
      %v5545 = vpop.permute.xlu0 %5544
      %5546 = vrot.lane.b32.xlu0 %v5505, 16
      %v5547 = vpop.permute.xlu0 %5546
      %5548 = vrot.lane.b32.xlu0 %v5513, 16
      %v5549 = vpop.permute.xlu0 %5548
      %5550 = vrot.lane.b32.xlu0 %v5521, 16
      %v5551 = vpop.permute.xlu0 %5550
      %5552 = vrot.lane.b32.xlu0 %v5529, 16
      %v5553 = vpop.permute.xlu0 %5552
      %v5555 = vunpack.c.l.b16 %v5364
      %v5556 = vpack.c.b16 %v5392, %v5555
      %v5557 = vrot.slane %v5556, 1
      %v5558 = vrot.slane %v5416, 1
      %v5559 = vsel %vm2777, %v5557, %v5558
      %v5560 = vrot.slane %v5417, 1
      %v5561 = vsel %vm2777, %v5558, %v5560
      %v5562 = vrot.slane %v5418, 1
      %v5563 = vsel %vm2777, %v5560, %v5562
      %v5564 = vrot.slane %v5419, 1
      %v5565 = vsel %vm2777, %v5562, %v5564
      %v5566 = vrot.slane %v5420, 1
      %v5567 = vsel %vm2777, %v5564, %v5566
      %v5568 = vrot.slane %v5421, 1
      %v5569 = vsel %vm2777, %v5566, %v5568
      %v5570 = vrot.slane %v5422, 1
      %v5571 = vsel %vm2777, %v5568, %v5570
      %v5572 = vrot.slane %v5423, 1
      %v5573 = vsel %vm2777, %v5570, %v5572
      %v5574 = vrot.slane %v5424, 1
      %v5575 = vsel %vm2777, %v5572, %v5574
      %v5576 = vrot.slane %v5425, 1
      %v5577 = vsel %vm2777, %v5574, %v5576
      %v5578 = vrot.slane %v5426, 1
      %v5579 = vsel %vm2777, %v5576, %v5578
      %v5580 = vrot.slane %v5429, 1
      %v5581 = vsel %vm2777, %v5578, %v5580
      %5582 = vrot.lane.b32.xlu0 %v5559, 32
      %v5583 = vpop.permute.xlu0 %5582
      %5584 = vrot.lane.b32.xlu0 %v5561, 32
      %v5585 = vpop.permute.xlu0 %5584
      %5586 = vrot.lane.b32.xlu0 %v5563, 32
      %v5587 = vpop.permute.xlu0 %5586
      %5588 = vrot.lane.b32.xlu0 %v5565, 32
      %v5589 = vpop.permute.xlu0 %5588
      %5590 = vrot.lane.b32.xlu0 %v5567, 32
      %v5591 = vpop.permute.xlu0 %5590
      %5592 = vrot.lane.b32.xlu0 %v5569, 32
      %v5593 = vpop.permute.xlu0 %5592
      %5594 = vrot.lane.b32.xlu0 %v5571, 32
      %v5595 = vpop.permute.xlu0 %5594
      %5596 = vrot.lane.b32.xlu0 %v5573, 32
      %v5597 = vpop.permute.xlu0 %5596
      %5598 = vrot.lane.b32.xlu0 %v5575, 32
      %v5599 = vpop.permute.xlu0 %5598
      %5600 = vrot.lane.b32.xlu0 %v5577, 32
      %v5601 = vpop.permute.xlu0 %5600
      %5602 = vrot.lane.b32.xlu0 %v5579, 32
      %v5603 = vpop.permute.xlu0 %5602
      %5604 = vrot.lane.b32.xlu0 %v5581, 32
      %v5605 = vpop.permute.xlu0 %5604
      %v5607 = vunpack.c.l.b16 %v5365
      %v5608 = vpack.c.b16 %v5607, %v5607
      %v5610 = vshrl.u32 %v5556, 16
      %v5612 = vrot.slane %v5610, 1
      %v5613 = vshll.u32 %v5556, 16
      %v5615 = vrot.slane %v5613, 2
      %v5616 = vor.u32 %v5612, %v5615
      %v5617 = vrot.slane %v5442, 1
      %v5618 = vrot.slane %v5438, 2
      %v5619 = vor.u32 %v5617, %v5618
      %v5620 = vsel %vm2830, %v5616, %v5619
      %v5621 = vrot.slane %v5450, 1
      %v5622 = vrot.slane %v5446, 2
      %v5623 = vor.u32 %v5621, %v5622
      %v5624 = vsel %vm2830, %v5619, %v5623
      %v5625 = vrot.slane %v5458, 1
      %v5626 = vrot.slane %v5454, 2
      %v5627 = vor.u32 %v5625, %v5626
      %v5628 = vsel %vm2830, %v5623, %v5627
      %v5629 = vrot.slane %v5466, 1
      %v5630 = vrot.slane %v5462, 2
      %v5631 = vor.u32 %v5629, %v5630
      %v5632 = vsel %vm2830, %v5627, %v5631
      %v5633 = vrot.slane %v5474, 1
      %v5634 = vrot.slane %v5470, 2
      %v5635 = vor.u32 %v5633, %v5634
      %v5636 = vsel %vm2830, %v5631, %v5635
      %v5637 = vrot.slane %v5482, 1
      %v5638 = vrot.slane %v5478, 2
      %v5639 = vor.u32 %v5637, %v5638
      %v5640 = vsel %vm2830, %v5635, %v5639
      %v5641 = vrot.slane %v5490, 1
      %v5642 = vrot.slane %v5486, 2
      %v5643 = vor.u32 %v5641, %v5642
      %v5644 = vsel %vm2830, %v5639, %v5643
      %v5645 = vrot.slane %v5498, 1
      %v5646 = vrot.slane %v5494, 2
      %v5647 = vor.u32 %v5645, %v5646
      %v5648 = vsel %vm2830, %v5643, %v5647
      %v5649 = vrot.slane %v5506, 1
      %v5650 = vrot.slane %v5502, 2
      %v5651 = vor.u32 %v5649, %v5650
      %v5652 = vsel %vm2830, %v5647, %v5651
      %v5653 = vrot.slane %v5514, 1
      %v5654 = vrot.slane %v5510, 2
      %v5655 = vor.u32 %v5653, %v5654
      %v5656 = vsel %vm2830, %v5651, %v5655
      %v5657 = vrot.slane %v5522, 1
      %v5658 = vrot.slane %v5518, 2
      %v5659 = vor.u32 %v5657, %v5658
      %v5660 = vsel %vm2830, %v5655, %v5659
      %v5662 = vshrl.u32 %v5608, 16
      %v5664 = vrot.slane %v5662, 1
      %v5665 = vshll.u32 %v5608, 16
      %v5667 = vrot.slane %v5665, 2
      %v5668 = vor.u32 %v5664, %v5667
      %v5669 = vsel %vm2830, %v5659, %v5668
      %5670 = vrot.lane.b32.xlu0 %v5620, 48
      %v5671 = vpop.permute.xlu0 %5670
      %5672 = vrot.lane.b32.xlu0 %v5624, 48
      %v5673 = vpop.permute.xlu0 %5672
      %5674 = vrot.lane.b32.xlu0 %v5628, 48
      %v5675 = vpop.permute.xlu0 %5674
      %5676 = vrot.lane.b32.xlu0 %v5632, 48
      %v5677 = vpop.permute.xlu0 %5676
      %5678 = vrot.lane.b32.xlu0 %v5636, 48
      %v5679 = vpop.permute.xlu0 %5678
      %5680 = vrot.lane.b32.xlu0 %v5640, 48
      %v5681 = vpop.permute.xlu0 %5680
      %5682 = vrot.lane.b32.xlu0 %v5644, 48
      %v5683 = vpop.permute.xlu0 %5682
      %5684 = vrot.lane.b32.xlu0 %v5648, 48
      %v5685 = vpop.permute.xlu0 %5684
      %5686 = vrot.lane.b32.xlu0 %v5652, 48
      %v5687 = vpop.permute.xlu0 %5686
      %5688 = vrot.lane.b32.xlu0 %v5656, 48
      %v5689 = vpop.permute.xlu0 %5688
      %5690 = vrot.lane.b32.xlu0 %v5660, 48
      %v5691 = vpop.permute.xlu0 %5690
      %5692 = vrot.lane.b32.xlu0 %v5669, 48
      %v5693 = vpop.permute.xlu0 %5692
      %v5695 = vunpack.c.l.b16 %v5366
      %v5696 = vpack.c.b16 %v5392, %v5695
      %v5697 = vrot.slane %v5696, 2
      %v5698 = vrot.slane %v5416, 2
      %v5699 = vsel %vm2919, %v5697, %v5698
      %v5700 = vrot.slane %v5417, 2
      %v5701 = vsel %vm2919, %v5698, %v5700
      %v5702 = vrot.slane %v5418, 2
      %v5703 = vsel %vm2919, %v5700, %v5702
      %v5704 = vrot.slane %v5419, 2
      %v5705 = vsel %vm2919, %v5702, %v5704
      %v5706 = vrot.slane %v5420, 2
      %v5707 = vsel %vm2919, %v5704, %v5706
      %v5708 = vrot.slane %v5421, 2
      %v5709 = vsel %vm2919, %v5706, %v5708
      %v5710 = vrot.slane %v5422, 2
      %v5711 = vsel %vm2919, %v5708, %v5710
      %v5712 = vrot.slane %v5423, 2
      %v5713 = vsel %vm2919, %v5710, %v5712
      %v5714 = vrot.slane %v5424, 2
      %v5715 = vsel %vm2919, %v5712, %v5714
      %v5716 = vrot.slane %v5425, 2
      %v5717 = vsel %vm2919, %v5714, %v5716
      %v5718 = vrot.slane %v5426, 2
      %v5719 = vsel %vm2919, %v5716, %v5718
      %v5720 = vrot.slane %v5608, 2
      %v5721 = vsel %vm2919, %v5718, %v5720
      %5722 = vrot.lane.b32.xlu0 %v5699, 64
      %v5723 = vpop.permute.xlu0 %5722
      %5724 = vrot.lane.b32.xlu0 %v5701, 64
      %v5725 = vpop.permute.xlu0 %5724
      %5726 = vrot.lane.b32.xlu0 %v5703, 64
      %v5727 = vpop.permute.xlu0 %5726
      %5728 = vrot.lane.b32.xlu0 %v5705, 64
      %v5729 = vpop.permute.xlu0 %5728
      %5730 = vrot.lane.b32.xlu0 %v5707, 64
      %v5731 = vpop.permute.xlu0 %5730
      %5732 = vrot.lane.b32.xlu0 %v5709, 64
      %v5733 = vpop.permute.xlu0 %5732
      %5734 = vrot.lane.b32.xlu0 %v5711, 64
      %v5735 = vpop.permute.xlu0 %5734
      %5736 = vrot.lane.b32.xlu0 %v5713, 64
      %v5737 = vpop.permute.xlu0 %5736
      %5738 = vrot.lane.b32.xlu0 %v5715, 64
      %v5739 = vpop.permute.xlu0 %5738
      %5740 = vrot.lane.b32.xlu0 %v5717, 64
      %v5741 = vpop.permute.xlu0 %5740
      %5742 = vrot.lane.b32.xlu0 %v5719, 64
      %v5743 = vpop.permute.xlu0 %5742
      %5744 = vrot.lane.b32.xlu0 %v5721, 64
      %v5745 = vpop.permute.xlu0 %5744
      %v5747 = vsel %vm2969, %v5415, %v5531
      %v5749 = vsel %vm2969, %v5416, %v5533
      %v5751 = vsel %vm2969, %v5417, %v5535
      %v5753 = vsel %vm2969, %v5418, %v5537
      %v5755 = vsel %vm2969, %v5419, %v5539
      %v5757 = vsel %vm2969, %v5420, %v5541
      %v5759 = vsel %vm2969, %v5421, %v5543
      %v5761 = vsel %vm2969, %v5422, %v5545
      %v5763 = vsel %vm2969, %v5423, %v5547
      %v5765 = vsel %vm2969, %v5424, %v5549
      %v5767 = vsel %vm2969, %v5425, %v5551
      %v5769 = vsel %vm2969, %v5426, %v5553
      %v5771 = vsel %vm2994, %v5747, %v5583
      %v5773 = vsel %vm2994, %v5749, %v5585
      %v5775 = vsel %vm2994, %v5751, %v5587
      %v5777 = vsel %vm2994, %v5753, %v5589
      %v5779 = vsel %vm2994, %v5755, %v5591
      %v5781 = vsel %vm2994, %v5757, %v5593
      %v5783 = vsel %vm2994, %v5759, %v5595
      %v5785 = vsel %vm2994, %v5761, %v5597
      %v5787 = vsel %vm2994, %v5763, %v5599
      %v5789 = vsel %vm2994, %v5765, %v5601
      %v5791 = vsel %vm2994, %v5767, %v5603
      %v5793 = vsel %vm2994, %v5769, %v5605
      %v5795 = vsel %vm3019, %v5771, %v5671
      %v5797 = vsel %vm3019, %v5773, %v5673
      %v5799 = vsel %vm3019, %v5775, %v5675
      %v5801 = vsel %vm3019, %v5777, %v5677
      %v5803 = vsel %vm3019, %v5779, %v5679
      %v5805 = vsel %vm3019, %v5781, %v5681
      %v5807 = vsel %vm3019, %v5783, %v5683
      %v5809 = vsel %vm3019, %v5785, %v5685
      %v5811 = vsel %vm3019, %v5787, %v5687
      %v5813 = vsel %vm3019, %v5789, %v5689
      %v5815 = vsel %vm3019, %v5791, %v5691
      %v5817 = vsel %vm3019, %v5793, %v5693
      %v5819 = vsel %vm3044, %v5795, %v5723
      %v5821 = vsel %vm3044, %v5797, %v5725
      %v5823 = vsel %vm3044, %v5799, %v5727
      %v5825 = vsel %vm3044, %v5801, %v5729
      %v5827 = vsel %vm3044, %v5803, %v5731
      %v5829 = vsel %vm3044, %v5805, %v5733
      %v5831 = vsel %vm3044, %v5807, %v5735
      %v5833 = vsel %vm3044, %v5809, %v5737
      %v5835 = vsel %vm3044, %v5811, %v5739
      %v5837 = vsel %vm3044, %v5813, %v5741
      %v5839 = vsel %vm3044, %v5815, %v5743
      %v5841 = vsel %vm3044, %v5817, %v5745
      %s5842 = scalar_lea.vmem %s5, 160
      %v5843 = vld [vmem:[%s5842] sm:$0xf]
      %v5844 = vld [vmem:[%s5842 + $0x4] sm:$0xf]
      %v5845 = vld [vmem:[%s5842 + $0x8] sm:$0xf]
      %v5846 = vld [vmem:[%s5842 + $0xc] sm:$0xf]
      %v5847 = vld [vmem:[%s5842 + $0x10] sm:$0xf]
      %v5848 = vld [vmem:[%s5842 + $0x14] sm:$0xf]
      %v5849 = vld [vmem:[%s5842 + $0x18] sm:$0xf]
      %v5850 = vld [vmem:[%s5842 + $0x1c] sm:$0xf]
      %v5851 = vld [vmem:[%s5842 + $0x20] sm:$0xf]
      %v5852 = vld [vmem:[%s5842 + $0x24] sm:$0xf]
      %v5863 = vunpack.c.l.b16 %v5843
      %v5864 = vunpack.c.l.b16 %v5844
      %v5865 = vunpack.c.l.b16 %v5845
      %v5866 = vunpack.c.l.b16 %v5846
      %v5867 = vunpack.c.l.b16 %v5847
      %v5868 = vunpack.c.l.b16 %v5848
      %v5869 = vunpack.c.l.b16 %v5849
      %v5870 = vunpack.c.l.b16 %v5850
      %v5871 = vunpack.c.l.b16 %v5851
      %v5872 = vunpack.c.l.b16 %v5852
      %v5873 = vpack.c.b16 %v5864, %v5863
      %v5874 = vpack.c.b16 %v5866, %v5865
      %v5875 = vpack.c.b16 %v5868, %v5867
      %v5876 = vpack.c.b16 %v5870, %v5869
      %v5877 = vpack.c.b16 %v5872, %v5871
      %v5883 = vsel %vm3560, %v5819, 0
      %v5885 = vsel %vm3560, %v5821, 0
      %v5887 = vsel %vm3560, %v5823, 0
      %v5889 = vsel %vm3560, %v5825, 0
      %v5891 = vsel %vm3560, %v5827, 0
      %v5893 = vsel %vm3560, %v5829, 0
      %v5895 = vsel %vm3560, %v5831, 0
      %v5897 = vsel %vm3560, %v5833, 0
      %v5899 = vsel %vm3560, %v5835, 0
      %v5901 = vsel %vm3560, %v5837, 0
      %v5903 = vsel %vm3560, %v5839, 0
      %v5905 = vsel %vm3560, %v5841, 0
      %5907 = vmatprep.subr.bf16.mxu0 0
      %5908 = vmatpush1.bf16.msra.mxu0 %v5873
      %5909 = vmatprep.subr.bf16.mxu0 0
      %5910 = vmatpush1.bf16.msra.mxu0 %v5874
      %5911 = vmatprep.subr.bf16.mxu0 0
      %5912 = vmatpush1.bf16.msra.mxu0 %v5875
      %5913 = vmatprep.subr.bf16.mxu0 0
      %5914 = vmatpush1.bf16.msra.mxu0 %v5876
      %5915 = vmatprep.subr.bf16.mxu0 0
      %5916 = vmatpush1.bf16.msra.mxu0 %v5877
      %5917 = vmatprep.subr.bf16.mxu0 0
      %5918 = vmatpush1.bf16.msra.mxu0 0
      %5919 = vmatprep.subr.bf16.mxu0 0
      %5920 = vmatpush1.bf16.msra.mxu0 0
      %5921 = vmatprep.subr.bf16.mxu0 0
      %5922 = vmatpush1.bf16.msra.mxu0 0
      %5923 = vmatprep.subr.bf16.mxu0 0
      %5924 = vmatpush1.bf16.msra.mxu0 0
      %5925 = vmatprep.subr.bf16.mxu0 0
      %5926 = vmatpush1.bf16.msra.mxu0 0
      %5927 = vmatprep.subr.bf16.mxu0 0
      %5928 = vmatpush1.bf16.msra.mxu0 0
      %5929 = vmatprep.subr.bf16.mxu0 0
      %5930 = vmatpush1.bf16.msra.mxu0 0
      %5931 = vmatprep.subr.bf16.mxu0 0
      %5932 = vmatpush1.bf16.msra.mxu0 0
      %5933 = vmatprep.subr.bf16.mxu0 0
      %5934 = vmatpush1.bf16.msra.mxu0 0
      %5935 = vmatprep.subr.bf16.mxu0 0
      %5936 = vmatpush1.bf16.msra.mxu0 0
      %5937 = vmatprep.subr.bf16.mxu0 0
      %5938 = vmatpush1.bf16.msra.mxu0 0
      %5939 = vmatprep.mubr.bf16.mxu0 0
      %5940 = vmatmul.mubr.bf16.gmra.mrb[0].mxu0 %v5883
      %v5941 = vpop.f32.mrb[0].mxu0
      %v5942 = vadd.f32 0.0, %v5941
      %v5943 = vpop.f32.mrb[0].mxu0
      %v5944 = vpop.f32.mrb[0].mxu0
      %v5945 = vadd.f32 0.0, %v5944
      %v5946 = vpop.f32.mrb[0].mxu0
      %5947 = vmatprep.mubr.bf16.mxu0 0
      %5948 = vmatmul.mubr.bf16.gmra.mrb[0].mxu0 %v5885
      %v5949 = vpop.f32.mrb[0].mxu0
      %v5950 = vadd.f32 0.0, %v5949
      %v5951 = vpop.f32.mrb[0].mxu0
      %v5952 = vpop.f32.mrb[0].mxu0
      %v5953 = vadd.f32 0.0, %v5952
      %v5954 = vpop.f32.mrb[0].mxu0
      %5955 = vmatprep.mubr.bf16.mxu0 0
      %5956 = vmatmul.mubr.bf16.gmra.mrb[0].mxu0 %v5887
      %v5957 = vpop.f32.mrb[0].mxu0
      %v5958 = vadd.f32 0.0, %v5957
      %v5959 = vpop.f32.mrb[0].mxu0
      %v5960 = vpop.f32.mrb[0].mxu0
      %v5961 = vadd.f32 0.0, %v5960
      %v5962 = vpop.f32.mrb[0].mxu0
      %5963 = vmatprep.mubr.bf16.mxu0 0
      %5964 = vmatmul.mubr.bf16.gmra.mrb[0].mxu0 %v5889
      %v5965 = vpop.f32.mrb[0].mxu0
      %v5966 = vadd.f32 0.0, %v5965
      %v5967 = vpop.f32.mrb[0].mxu0
      %v5968 = vpop.f32.mrb[0].mxu0
      %v5969 = vadd.f32 0.0, %v5968
      %v5970 = vpop.f32.mrb[0].mxu0
      %5971 = vmatprep.mubr.bf16.mxu0 0
      %5972 = vmatmul.mubr.bf16.gmra.mrb[0].mxu0 %v5891
      %v5973 = vpop.f32.mrb[0].mxu0
      %v5974 = vadd.f32 0.0, %v5973
      %v5975 = vpop.f32.mrb[0].mxu0
      %v5976 = vpop.f32.mrb[0].mxu0
      %v5977 = vadd.f32 0.0, %v5976
      %v5978 = vpop.f32.mrb[0].mxu0
      %5979 = vmatprep.mubr.bf16.mxu0 0
      %5980 = vmatmul.mubr.bf16.gmra.mrb[0].mxu0 %v5893
      %v5981 = vpop.f32.mrb[0].mxu0
      %v5982 = vadd.f32 0.0, %v5981
      %v5983 = vpop.f32.mrb[0].mxu0
      %v5984 = vpop.f32.mrb[0].mxu0
      %v5985 = vadd.f32 0.0, %v5984
      %v5986 = vpop.f32.mrb[0].mxu0
      %5987 = vmatprep.mubr.bf16.mxu0 0
      %5988 = vmatmul.mubr.bf16.gmra.mrb[0].mxu0 %v5895
      %v5989 = vpop.f32.mrb[0].mxu0
      %v5990 = vadd.f32 0.0, %v5989
      %v5991 = vpop.f32.mrb[0].mxu0
      %v5992 = vpop.f32.mrb[0].mxu0
      %v5993 = vadd.f32 0.0, %v5992
      %v5994 = vpop.f32.mrb[0].mxu0
      %5995 = vmatprep.mubr.bf16.mxu0 0
      %5996 = vmatmul.mubr.bf16.gmra.mrb[0].mxu0 %v5897
      %v5997 = vpop.f32.mrb[0].mxu0
      %v5998 = vadd.f32 0.0, %v5997
      %v5999 = vpop.f32.mrb[0].mxu0
      %v6000 = vpop.f32.mrb[0].mxu0
      %v6001 = vadd.f32 0.0, %v6000
      %v6002 = vpop.f32.mrb[0].mxu0
      %6003 = vmatprep.mubr.bf16.mxu0 0
      %6004 = vmatmul.mubr.bf16.gmra.mrb[0].mxu0 %v5899
      %v6005 = vpop.f32.mrb[0].mxu0
      %v6006 = vadd.f32 0.0, %v6005
      %v6007 = vpop.f32.mrb[0].mxu0
      %v6008 = vpop.f32.mrb[0].mxu0
      %v6009 = vadd.f32 0.0, %v6008
      %v6010 = vpop.f32.mrb[0].mxu0
      %6011 = vmatprep.mubr.bf16.mxu0 0
      %6012 = vmatmul.mubr.bf16.gmra.mrb[0].mxu0 %v5901
      %v6013 = vpop.f32.mrb[0].mxu0
      %v6014 = vadd.f32 0.0, %v6013
      %v6015 = vpop.f32.mrb[0].mxu0
      %v6016 = vpop.f32.mrb[0].mxu0
      %v6017 = vadd.f32 0.0, %v6016
      %v6018 = vpop.f32.mrb[0].mxu0
      %6019 = vmatprep.mubr.bf16.mxu0 0
      %6020 = vmatmul.mubr.bf16.gmra.mrb[0].mxu0 %v5903
      %v6021 = vpop.f32.mrb[0].mxu0
      %v6022 = vadd.f32 0.0, %v6021
      %v6023 = vpop.f32.mrb[0].mxu0
      %v6024 = vpop.f32.mrb[0].mxu0
      %v6025 = vadd.f32 0.0, %v6024
      %v6026 = vpop.f32.mrb[0].mxu0
      %6027 = vmatprep.mubr.bf16.mxu0 0
      %6028 = vmatmul.mubr.bf16.gmra.mrb[0].mxu0 %v5905
      %v6029 = vpop.f32.mrb[0].mxu0
      %v6030 = vadd.f32 0.0, %v6029
      %v6031 = vpop.f32.mrb[0].mxu0
      %v6032 = vpop.f32.mrb[0].mxu0
      %v6033 = vadd.f32 0.0, %v6032
      %v6034 = vpop.f32.mrb[0].mxu0
      %6035 = vdwg.mxu0
      %v6036 = vadd.f32 %v5315, %v5942
      %v6037 = vadd.f32 %v5316, %v5945
      %v6038 = vadd.f32 %v5317, %v5950
      %v6039 = vadd.f32 %v5318, %v5953
      %v6040 = vadd.f32 %v5319, %v5958
      %v6041 = vadd.f32 %v5320, %v5961
      %v6042 = vadd.f32 %v5321, %v5966
      %v6043 = vadd.f32 %v5322, %v5969
      %v6044 = vadd.f32 %v5323, %v5974
      %v6045 = vadd.f32 %v5324, %v5977
      %v6046 = vadd.f32 %v5325, %v5982
      %v6047 = vadd.f32 %v5326, %v5985
      %v6048 = vadd.f32 %v5327, %v5990
      %v6049 = vadd.f32 %v5328, %v5993
      %v6050 = vadd.f32 %v5329, %v5998
      %v6051 = vadd.f32 %v5330, %v6001
      %v6052 = vadd.f32 %v5331, %v6006
      %v6053 = vadd.f32 %v5332, %v6009
      %v6054 = vadd.f32 %v5333, %v6014
      %v6055 = vadd.f32 %v5334, %v6017
      %v6056 = vadd.f32 %v5335, %v6022
      %v6057 = vadd.f32 %v5336, %v6025
      %v6058 = vadd.f32 %v5337, %v6030
      %v6059 = vadd.f32 %v5338, %v6033
      %v6060 = vld [vmem:[%s6] sm:$0x1]
      %v6062 = vlaneseq
      %v6063 = vshrl.u32 %v6062, 7
      %v6064 = vsub.s32 0, %v6063
      %v6065 = vrot.slane %v6060, %v6064
      %v6067 = vadd.f32 %v6036, %v6065
      %v6068 = vadd.f32 %v6037, %v6065
      %v6069 = vadd.f32 %v6038, %v6065
      %v6070 = vadd.f32 %v6039, %v6065
      %v6071 = vadd.f32 %v6040, %v6065
      %v6072 = vadd.f32 %v6041, %v6065
      %v6073 = vadd.f32 %v6042, %v6065
      %v6074 = vadd.f32 %v6043, %v6065
      %v6075 = vadd.f32 %v6044, %v6065
      %v6076 = vadd.f32 %v6045, %v6065
      %v6077 = vadd.f32 %v6046, %v6065
      %v6078 = vadd.f32 %v6047, %v6065
      %v6079 = vadd.f32 %v6048, %v6065
      %v6080 = vadd.f32 %v6049, %v6065
      %v6081 = vadd.f32 %v6050, %v6065
      %v6082 = vadd.f32 %v6051, %v6065
      %v6083 = vadd.f32 %v6052, %v6065
      %v6084 = vadd.f32 %v6053, %v6065
      %v6085 = vadd.f32 %v6054, %v6065
      %v6086 = vadd.f32 %v6055, %v6065
      %v6087 = vadd.f32 %v6056, %v6065
      %v6088 = vadd.f32 %v6057, %v6065
      %v6089 = vadd.f32 %v6058, %v6065
      %v6090 = vadd.f32 %v6059, %v6065
      %6091 = vst.msk [vmem:[%s348] sm:$0xff] %vm2994, %v6067
      %6092 = vst.msk [vmem:[%s348 + $0x8] sm:$0xff] %vm2994, %v6068
      %6093 = vst.msk [vmem:[%s348 + $0x10] sm:$0xff] %vm2994, %v6069
      %6094 = vst.msk [vmem:[%s348 + $0x18] sm:$0xff] %vm2994, %v6070
      %6095 = vst.msk [vmem:[%s348 + $0x20] sm:$0xff] %vm2994, %v6071
      %6096 = vst.msk [vmem:[%s348 + $0x28] sm:$0xff] %vm2994, %v6072
      %6097 = vst.msk [vmem:[%s348 + $0x30] sm:$0xff] %vm2994, %v6073
      %6098 = vst.msk [vmem:[%s348 + $0x38] sm:$0xff] %vm2994, %v6074
      %6099 = vst.msk [vmem:[%s348 + $0x40] sm:$0xff] %vm2994, %v6075
      %6100 = vst.msk [vmem:[%s348 + $0x48] sm:$0xff] %vm2994, %v6076
      %6101 = vst.msk [vmem:[%s348 + $0x50] sm:$0xff] %vm2994, %v6077
      %6102 = vst.msk [vmem:[%s348 + $0x58] sm:$0xff] %vm2994, %v6078
      %6103 = vst.msk [vmem:[%s348 + $0x60] sm:$0xff] %vm2994, %v6079
      %6104 = vst.msk [vmem:[%s348 + $0x68] sm:$0xff] %vm2994, %v6080
      %6105 = vst.msk [vmem:[%s348 + $0x70] sm:$0xff] %vm2994, %v6081
      %6106 = vst.msk [vmem:[%s348 + $0x78] sm:$0xff] %vm2994, %v6082
      %6107 = vst.msk [vmem:[%s348 + $0x80] sm:$0xff] %vm2994, %v6083
      %6108 = vst.msk [vmem:[%s348 + $0x88] sm:$0xff] %vm2994, %v6084
      %6109 = vst.msk [vmem:[%s348 + $0x90] sm:$0xff] %vm2994, %v6085
      %6110 = vst.msk [vmem:[%s348 + $0x98] sm:$0xff] %vm2994, %v6086
      %6111 = vst.msk [vmem:[%s348 + $0xa0] sm:$0xff] %vm2994, %v6087
      %6112 = vst.msk [vmem:[%s348 + $0xa8] sm:$0xff] %vm2994, %v6088
      %6113 = vst.msk [vmem:[%s348 + $0xb0] sm:$0xff] %vm2994, %v6089
      %6114 = vst.msk [vmem:[%s348 + $0xb8] sm:$0xff] %vm2994, %v6090
      %s6115 = smul.u32 24, %s23
      %p6116 = scmp.lt.s32.totalorder %s22, 1
      %s6117 = scalar_select %p6116, %s22, 1
      %p6118 = scmp.lt.s32.totalorder %s6115, 47
      %s6119 = scalar_select %p6118, %s6115, 47
      %s6120 = smul.addr %s6117, 48
      %s6121 = sadd.s32 %s6119, %s6120
      %s6122 = smul.addr %s6121, 8
      %s6123 = scalar_lea.vmem %s7, %s6122
      // Predicated region
      $region49: #{tpu_custom_call.1} parent=47 // pred_check
        %p6124 = pneg %p217
      $region50: #{tpu_custom_call.1} parent=47 // pred_check_branch
        %6126 = sbr.rel (%p6124) target = $region52
      $region51: #{tpu_custom_call.1} parent=47 // pred_region
        %s6127 = smul.u32 24, %s23
      $region52: #{tpu_custom_call.1} parent=47 // pred_fallthru
        _
    $region48: #{tpu_custom_call.1} parent=5 // pred_fallthru
      _
    %p6128 = scmp.le.s32.totalorder 2, %s13
    // Predicated region
    $region53: #{tpu_custom_call.1} parent=5 // pred_check
      %p6129 = pneg %p6128
    $region54: #{tpu_custom_call.1} parent=5 // pred_check_branch
      %6131 = sbr.rel (%p6129) target = $region56
    $region55: #{tpu_custom_call.1} parent=5 // pred_region
      %s6132 = ssub.s32 %s13, 2
      // Predicated region
      $region57: #{tpu_custom_call.1} parent=55 // pred_check
        %p6133 = pneg %p223
      $region58: #{tpu_custom_call.1} parent=55 // pred_check_branch
        %6135 = sbr.rel (%p6133) target = $region60
      $region59: #{tpu_custom_call.1} parent=55 // pred_region
        %s6136 = smul.u32 24, %s25
        %p6137 = scmp.lt.s32.totalorder %s24, 1
        %s6138 = scalar_select %p6137, %s24, 1
        %p6139 = scmp.lt.s32.totalorder %s6136, 47
        %s6140 = scalar_select %p6139, %s6136, 47
        %s6141 = smul.addr %s6138, 48
        %s6142 = sadd.s32 %s6140, %s6141
        %s6143 = smul.addr %s6142, 8
        %s6144 = scalar_lea.vmem %s7, %s6143
      $region60: #{tpu_custom_call.1} parent=55 // pred_fallthru
        _
    $region56: #{tpu_custom_call.1} parent=5 // pred_fallthru
      _
  $region6: #{tpu_custom_call.1} parent=0 // loop_footer
    %s17 = sadd.s32 1, %s13
  $region7: #{tpu_custom_call.1} parent=0 // loop_footer_branch
    %12 = sbr.rel target = $region3
  $region8: #{tpu_custom_call.1} parent=0 // loop_exit
    _

</llo_original>
